<compile_context>
chip_gen: v7x
topology: tpu7x:2x2x1
jax: 0.10.0
libtpu: 0.0.40
codegen_flags: <defaults>
</compile_context>

<pallas_src>
import functools

import jax
import jax.numpy as jnp
from jax.experimental import pallas as pl
from jax.experimental.pallas import tpu as pltpu


def _round_up(x, m):
    return ((x + m - 1) // m) * m


def _vmem_capacity_bytes():
    try:
        info = pltpu.get_tpu_info()
        cap = int(getattr(info, "vmem_capacity_bytes", 0) or 0)
        if cap > 0:
            return cap
    except Exception:
        pass
    return 128 * 1024 * 1024          # v5e / v6e default


def _vmem_footprint(bblk, N, H, Hp, itemsize, refold, single_buffer):
    """Rough per-grid-step VMEM working set in bytes (weights + blocks + temporaries)."""
    M = bblk * N
    wbuf = 1 if single_buffer else 2
    if refold:
        weights = 9 * Hp * Hp * itemsize + 12 * Hp * 4
        a_block = bblk * N * 2 * N * itemsize
        inter = M * 20 * Hp * 4        # hf(9Hp) + pre(6Hp) + gi(3Hp) + h/h_new
    else:
        weights = 11 * Hp * Hp * itemsize + 8 * Hp * 4
        a_block = 2 * bblk * N * N * itemsize
        inter = M * 16 * Hp * 4
    act_blocks = a_block + 2 * bblk * N * H * 4      # hidden in + out blocks
    pad = M * Hp * 4 if Hp != H else 0               # in-kernel padding scratch
    return wbuf * weights + 2 * act_blocks + inter + pad


def _pick_batch_block(B, N, H, Hp, itemsize, refold, vmem_cap):
    """Generation-aware batch block: smaller row targets on 64 MiB (v7x-like) parts,
    prefer >= 2 grid steps (keeps both v7x TensorCores / the DMA pipeline busy) and
    shrink until the per-step working set fits comfortably in VMEM."""
    small_vmem = vmem_cap < (96 << 20)
    target_rows = 256 if small_vmem else 512
    min_rows = 128 if small_vmem else 256
    divs = sorted(d for d in range(1, B + 1) if B % d == 0)
    cand = [d for d in divs if d * N <= target_rows] or [1]
    bb = max(cand)
    if B // bb < 2:
        smaller = [d for d in cand if B // d >= 2 and d * N >= min_rows]
        if smaller:
            bb = max(smaller)
    budget = int(0.6 * vmem_cap)
    while bb > 1 and _vmem_footprint(bb, N, H, Hp, itemsize, refold, True) > budget:
        bb = max(d for d in divs if d < bb)
    return bb


def _gru_update(gi, gh, h, Hp):
    """Gates live at 128-aligned Hp boundaries -> no relayout copies on the slices."""
    r = jax.nn.sigmoid(gi[:, :Hp] + gh[:, :Hp])
    z = jax.nn.sigmoid(gi[:, Hp:2 * Hp] + gh[:, Hp:2 * Hp])
    ng = jnp.tanh(gi[:, 2 * Hp:] + r * gh[:, 2 * Hp:])
    return ng + z * (h - ng)


def _iterate_hidden(cell, h_ref, out_ref, scratch, step, Hp, H, Bblk, N):
    """Load (and zero-pad to Hp lanes) the hidden state, run `step` GRU cells, store."""
    M = Bblk * N
    if Hp == H:
        h = h_ref[...].astype(jnp.float32).reshape(M, Hp)
    else:
        pad_ref, = scratch
        pad_ref[...] = jnp.zeros_like(pad_ref)       # padded lanes must be zero
        pad_ref[:, :, :H] = h_ref[...].astype(jnp.float32)
        h = pad_ref[...].reshape(M, Hp)

    if step <= 8:
        for _ in range(step):                        # small step: fully unrolled
            h = cell(h)
    else:                                            # large step: rolled, lightly unrolled
        h = jax.lax.fori_loop(0, step, lambda _, hh: cell(hh), h, unroll=2)

    h = h.reshape(Bblk, N, Hp)
    out_ref[...] = (h if Hp == H else h[:, :, :H]).astype(out_ref.dtype)


def _ggnn_refold_kernel(a_ref, h_ref, w_h_ref, b_h_ref, b_g_ref, out_ref, *scratch,
                        step, hp, h_dim, bblk, n):
    """Gate weights folded *before* aggregation (best when N << Hp)."""
    Hp, H, N, Bblk = hp, h_dim, n, bblk
    M = Bblk * N
    G = 3 * Hp

    a = a_ref[...]                   # (Bblk, N, 2N)  compute dtype, [A_in | A_out]
    w_h = w_h_ref[...]               # (Hp, 9Hp) = [hh gates | Wein^T@w_a | Weout^T@w_b]
    cdt = w_h.dtype
    b_h = b_h_ref[...]               # (1, 9Hp) f32 -- broadcast in the add, not materialized
    b_g = b_g_ref[...]               # (1, 3Hp) f32

    def cell(h):                     # h: (M, Hp) f32
        # ONE fused MXU call for everything with h as LHS
        hf = jnp.dot(h.astype(cdt), w_h,
                     preferred_element_type=jnp.float32) + b_h           # (M, 9Hp)
        gh = hf[:, :G]
        pre_in = hf[:, G:2 * G].reshape(Bblk, N, G)                      # f32 reshape, cast after
        pre_out = hf[:, 2 * G:].reshape(Bblk, N, G)
        # single K=2N aggregation matmul per graph: [A_in|A_out] @ [pre_in; pre_out]
        pre = jnp.concatenate([pre_in, pre_out], axis=1).astype(cdt)     # (Bblk, 2N, 3Hp)
        gi = jnp.einsum('bnk,bkg->bng', a, pre,
                        preferred_element_type=jnp.float32).reshape(M, G) + b_g
        return _gru_update(gi, gh, h, Hp)

    _iterate_hidden(cell, h_ref, out_ref, scratch, step, Hp, H, Bblk, N)


def _ggnn_split_kernel(a_in_ref, a_out_ref, h_ref, w_h_ref, b_h_ref,
                       w_ga_ref, w_gb_ref, b_g_ref, out_ref, *scratch,
                       step, hp, h_dim, bblk, n):
    """Original formulation (gate matmuls after aggregation) -- used when N > Hp/2."""
    Hp, H, N, Bblk = hp, h_dim, n, bblk
    M = Bblk * N

    a_in = a_in_ref[...]             # (Bblk, N, N)
    a_out = a_out_ref[...]
    w_h = w_h_ref[...]               # (Hp, 5Hp) = [edge_in | edge_out | hh gates]
    cdt = w_h.dtype
    w_ga = w_ga_ref[...]             # (Hp, 3Hp)   in-half  of w_ih
    w_gb = w_gb_ref[...]             # (Hp, 3Hp)   out-half of w_ih
    b_h = b_h_ref[...]               # (1, 5Hp) f32
    b_g = b_g_ref[...]               # (1, 3Hp) f32

    def cell(h):                     # h: (M, Hp) f32
        hf = jnp.dot(h.astype(cdt), w_h,
                     preferred_element_type=jnp.float32) + b_h           # (M, 5Hp)
        eh_in = hf[:, :Hp].reshape(Bblk, N, Hp).astype(cdt)
        eh_out = hf[:, Hp:2 * Hp].reshape(Bblk, N, Hp).astype(cdt)
        gh = hf[:, 2 * Hp:]
        agg_in = jnp.einsum('bnm,bmh->bnh', a_in, eh_in,
                            preferred_element_type=jnp.float32).reshape(M, Hp)
        agg_out = jnp.einsum('bnm,bmh->bnh', a_out, eh_out,
                             preferred_element_type=jnp.float32).reshape(M, Hp)
        gi = (jnp.dot(agg_in.astype(cdt), w_ga, preferred_element_type=jnp.float32)
              + jnp.dot(agg_out.astype(cdt), w_gb, preferred_element_type=jnp.float32)
              + b_g)
        return _gru_update(gi, gh, h, Hp)

    _iterate_hidden(cell, h_ref, out_ref, scratch, step, Hp, H, Bblk, N)


def ggnn_forward(A, hidden, params, *, step=1, batch_block=None,
                 compute_dtype=jnp.bfloat16, force_refold=None,
                 single_buffer_weights=True):
    """A: (B, N, 2N), hidden: (B, N, H) -> (B, N, H).

    compute_dtype=bf16 (default) runs the matmul operands in bf16 with f32
    accumulation; gate math and the carried hidden state stay f32.  Pass
    compute_dtype=jnp.float32 for tight parity with an all-f32 reference.
    """
    B, N, H = hidden.shape
    assert A.shape == (B, N, 2 * N)
    (w_ein, b_ein, w_eout, b_eout,
     w_ih, w_hh, b_ih, b_hh, b_iah, b_oah) = params

    Hp = _round_up(H, 128)
    # fold gate weights before the adjacency aggregation when graphs are small
    refold = (Hp >= 2 * N) if force_refold is None else bool(force_refold)

    # ---- host-side weight plumbing (done once): transpose / split / fuse / pad ----
    def pad_w(w):                    # (H, H) -> (Hp, Hp), zero padded
        return jnp.zeros((Hp, Hp), jnp.float32).at[:H, :H].set(w)

    def pad_b(b):                    # (H,) -> (1, Hp)
        return jnp.zeros((1, Hp), jnp.float32).at[0, :H].set(b)

    def pad_gate_w(w):               # (H, 3H) -> (Hp, 3Hp), per-gate padding (invariant:
        return jnp.concatenate(      # padded rows/lanes are zero so padded lanes of h stay 0)
            [pad_w(w[:, :H]), pad_w(w[:, H:2 * H]), pad_w(w[:, 2 * H:])], axis=1)

    def pad_gate_b(b):               # (3H,) -> (1, 3Hp)
        return jnp.concatenate(
            [pad_b(b[:H]), pad_b(b[H:2 * H]), pad_b(b[2 * H:])], axis=1)

    wt_ih = w_ih.T                   # (2H, 3H)
    w_a, w_b = wt_ih[:H], wt_ih[H:]  # in-half, out-half
    wt_hh = w_hh.T                   # (H, 3H)
    # b_iah / b_oah only reach the output through w_ih -> fold into one gate bias
    b_g = pad_gate_b(b_ih + b_iah @ w_a + b_oah @ w_b)                   # (1, 3Hp)

    itemsize = jnp.dtype(compute_dtype).itemsize

    if refold:
        # gi = A_in@(h@Wein^T@w_a + b_ein@w_a) + A_out@(h@Weout^T@w_b + b_eout@w_b) + b_g
        w_h = jnp.concatenate([pad_gate_w(wt_hh),
                               pad_gate_w(w_ein.T @ w_a),
                               pad_gate_w(w_eout.T @ w_b)], axis=1)      # (Hp, 9Hp)
        b_h = jnp.concatenate([pad_gate_b(b_hh),
                               pad_gate_b(b_ein @ w_a),
                               pad_gate_b(b_eout @ w_b)], axis=1)        # (1, 9Hp)
        operands = (A.astype(compute_dtype), hidden,
                    w_h.astype(compute_dtype), b_h, b_g)
        kernel_fn = _ggnn_refold_kernel
    else:
        w_h = jnp.concatenate([pad_w(w_ein.T), pad_w(w_eout.T),
                               pad_gate_w(wt_hh)], axis=1)               # (Hp, 5Hp)
        b_h = jnp.concatenate([pad_b(b_ein), pad_b(b_eout),
                               pad_gate_b(b_hh)], axis=1)                # (1, 5Hp)
        w_ga, w_gb = pad_gate_w(w_a), pad_gate_w(w_b)
        operands = (A[:, :, :N].astype(compute_dtype),
                    A[:, :, N:].astype(compute_dtype), hidden,
                    w_h.astype(compute_dtype), b_h,
                    w_ga.astype(compute_dtype), w_gb.astype(compute_dtype), b_g)
        kernel_fn = _ggnn_split_kernel

    vmem_cap = _vmem_capacity_bytes()
    if batch_block is None:
        batch_block = _pick_batch_block(B, N, H, Hp, itemsize, refold, vmem_cap)
    assert B % batch_block == 0
    grid = (B // batch_block,)

    footprint = _vmem_footprint(batch_block, N, H, Hp, itemsize, refold,
                                single_buffer_weights)
    ceiling = (100 << 20) if vmem_cap >= (100 << 20) else max(vmem_cap - (8 << 20),
                                                              32 << 20)
    vmem_limit = int(max(32 << 20, min(ceiling, int(1.5 * footprint))))

    if refold:
        flops = 2 * step * B * N * (9 * Hp * Hp + 2 * N * 3 * Hp)
        bytes_accessed = (B * N * 2 * N * itemsize + 2 * B * N * H * 4
                          + 9 * Hp * Hp * itemsize + 12 * Hp * 4)
    else:
        flops = 2 * step * B * N * (11 * Hp * Hp + 2 * N * Hp)
        bytes_accessed = (2 * B * N * N * itemsize + 2 * B * N * H * 4
                          + 11 * Hp * Hp * itemsize + 8 * Hp * 4)
    cost = pl.CostEstimate(flops=int(flops),
                           transcendentals=int(step * B * N * 3 * Hp),
                           bytes_accessed=int(bytes_accessed))

    kernel = functools.partial(kernel_fn, step=step, hp=Hp, h_dim=H,
                               bblk=batch_block, n=N)
    batch_map = lambda i: (i, 0, 0)
    wmap = lambda i: (0, 0)
    scratch = ([pltpu.VMEM((batch_block, N, Hp), jnp.float32)] if Hp != H else [])

    def run(single_buffer):
        def wspec(shape):
            if single_buffer:
                # constant index_map -> never re-DMA'd; one VMEM buffer is enough
                return pl.BlockSpec(shape, wmap, pipeline_mode=pl.Buffered(1))
            return pl.BlockSpec(shape, wmap)

        if refold:
            in_specs = [
                pl.BlockSpec((batch_block, N, 2 * N), batch_map),   # A (in|out halves)
                pl.BlockSpec((batch_block, N, H), batch_map),       # hidden (unpadded)
                wspec((Hp, 9 * Hp)),                                # fused h-side weights
                wspec((1, 9 * Hp)),                                 # fused h-side biases
                wspec((1, 3 * Hp)),                                 # folded gate bias
            ]
        else:
            in_specs = [
                pl.BlockSpec((batch_block, N, N), batch_map),       # A_in
                pl.BlockSpec((batch_block, N, N), batch_map),       # A_out
                pl.BlockSpec((batch_block, N, H), batch_map),       # hidden (unpadded)
                wspec((Hp, 5 * Hp)), wspec((1, 5 * Hp)),
                wspec((Hp, 3 * Hp)), wspec((Hp, 3 * Hp)), wspec((1, 3 * Hp)),
            ]

        return pl.pallas_call(
            kernel,
            out_shape=jax.ShapeDtypeStruct((B, N, H), hidden.dtype),
            grid=grid,
            in_specs=in_specs,
            out_specs=pl.BlockSpec((batch_block, N, H), batch_map),
            scratch_shapes=scratch,
            compiler_params=pltpu.CompilerParams(
                dimension_semantics=("parallel",),
                vmem_limit_bytes=vmem_limit),
            cost_estimate=cost,
        )(*operands)

    try:
        return run(single_buffer_weights)
    except Exception:
        if not single_buffer_weights:
            raise
        # pipeline_mode=pl.Buffered(1) unsupported on this jax build -> default specs
        return run(False)


def ggnn_reference(A, hidden, params, *, step=1):
    (w_ein, b_ein, w_eout, b_eout,
     w_ih, w_hh, b_ih, b_hh, b_iah, b_oah) = params
    N = A.shape[1]
    h = hidden
    for _ in range(step):
        eh_in = jnp.einsum('bnh,gh->bng', h, w_ein) + b_ein
        eh_out = jnp.einsum('bnh,gh->bng', h, w_eout) + b_eout
        input_in = jnp.matmul(A[:, :, :N], eh_in) + b_iah
        input_out = jnp.matmul(A[:, :, N:2 * N], eh_out) + b_oah
        inputs = jnp.concatenate([input_in, input_out], axis=2)
        gi = jnp.einsum('bni,gi->bng', inputs, w_ih) + b_ih
        gh = jnp.einsum('bnh,gh->bng', h, w_hh) + b_hh
        i_r, i_i, i_n = jnp.split(gi, 3, axis=2)
        h_r, h_i, h_n = jnp.split(gh, 3, axis=2)
        r = jax.nn.sigmoid(i_r + h_r)
        ig = jax.nn.sigmoid(i_i + h_i)
        ng = jnp.tanh(i_n + r * h_n)
        h = ng + ig * (h - ng)
    return h


if __name__ == "__main__":
    B, N, H = 2, 8, 32
    STEP = 2

    key = jax.random.PRNGKey(0)
    keys = jax.random.split(key, 12)

    scale = 0.1
    w_ein = scale * jax.random.normal(keys[0], (H, H), jnp.float32)
    b_ein = scale * jax.random.normal(keys[1], (H,), jnp.float32)
    w_eout = scale * jax.random.normal(keys[2], (H, H), jnp.float32)
    b_eout = scale * jax.random.normal(keys[3], (H,), jnp.float32)
    w_ih = scale * jax.random.normal(keys[4], (3 * H, 2 * H), jnp.float32)
    w_hh = scale * jax.random.normal(keys[5], (3 * H, H), jnp.float32)
    b_ih = scale * jax.random.normal(keys[6], (3 * H,), jnp.float32)
    b_hh = scale * jax.random.normal(keys[7], (3 * H,), jnp.float32)
    b_iah = scale * jax.random.normal(keys[8], (H,), jnp.float32)
    b_oah = scale * jax.random.normal(keys[9], (H,), jnp.float32)
    # NOTE: linear_edge_f is declared in GGNN.__init__ but never used in forward(); omitted.

    params = (w_ein, b_ein, w_eout, b_eout,
              w_ih, w_hh, b_ih, b_hh, b_iah, b_oah)

    A = jax.random.uniform(keys[10], (B, N, 2 * N), jnp.float32)
    hidden = jax.random.normal(keys[11], (B, N, H), jnp.float32)

    ref = ggnn_reference(A, hidden, params, step=STEP)

    # 1) f32 compute, refolded-aggregation path (auto-selected since N << Hp): tight check
    out = jax.block_until_ready(
        ggnn_forward(A, hidden, params, step=STEP, compute_dtype=jnp.float32))
    assert out.shape == (B, N, H)
    assert jnp.allclose(out, ref, atol=1e-4, rtol=1e-4), "refold f32 mismatch"

    # 2) f32 compute, original split-A path (used when N > Hp/2): tight check
    out_split = jax.block_until_ready(
        ggnn_forward(A, hidden, params, step=STEP, compute_dtype=jnp.float32,
                     force_refold=False))
    assert jnp.allclose(out_split, ref, atol=1e-4, rtol=1e-4), "split f32 mismatch"

    # 3) bf16 matmuls / f32 accumulation (performance default): looser check
    out_bf16 = jax.block_until_ready(ggnn_forward(A, hidden, params, step=STEP))
    assert jnp.allclose(out_bf16, ref, atol=3e-2, rtol=3e-2), "bf16 mismatch"

    # 4) rolled (fori_loop, unroll=2) step path
    STEP_L = 9
    ref_l = ggnn_reference(A, hidden, params, step=STEP_L)
    out_l = jax.block_until_ready(
        ggnn_forward(A, hidden, params, step=STEP_L, compute_dtype=jnp.float32))
    assert jnp.allclose(out_l, ref_l, atol=5e-4, rtol=5e-4), "rolled-loop mismatch"

    print("KERNEL_OK")
</pallas_src>

<mosaic_0001>
module attributes {stable_mosaic.version = 11 : i64} {
  func.func @_ggnn_refold_kernel(%arg0: i32, %arg1: memref<2x8x16xf32, #tpu.memory_space<vmem>>, %arg2: memref<2x8x32xf32, #tpu.memory_space<vmem>>, %arg3: memref<128x1152xf32, #tpu.memory_space<vmem>>, %arg4: memref<1x1152xf32, #tpu.memory_space<vmem>>, %arg5: memref<1x384xf32, #tpu.memory_space<vmem>>, %arg6: memref<2x8x32xf32, #tpu.memory_space<vmem>>, %arg7: memref<2x8x128xf32, #tpu.memory_space<vmem>>) attributes {dimension_semantics = [#tpu.dimension_semantics<parallel>], iteration_bounds = array<i64: 1>, scalar_prefetch = 0 : i64, scratch_operands = 1 : i64, tpu.core_type = #tpu.core_type<tc>, window_params = [{transform_indices = @transform_0, window_bounds = array<i64: 2, 8, 16>}, {transform_indices = @transform_1, window_bounds = array<i64: 2, 8, 32>}, {pipeline_mode = #tpu.pipeline_mode<synchronous>, transform_indices = @transform_2, window_bounds = array<i64: 128, 1152>}, {pipeline_mode = #tpu.pipeline_mode<synchronous>, transform_indices = @transform_3, window_bounds = array<i64: 1, 1152>}, {pipeline_mode = #tpu.pipeline_mode<synchronous>, transform_indices = @transform_4, window_bounds = array<i64: 1, 384>}, {transform_indices = @transform_5, window_bounds = array<i64: 2, 8, 32>}]} {
    %c0 = arith.constant 0 : index
    %c0_0 = arith.constant 0 : index
    %c0_1 = arith.constant 0 : index
    %0 = vector.load %arg1[%c0, %c0_0, %c0_1] : memref<2x8x16xf32, #tpu.memory_space<vmem>>, vector<2x8x16xf32>
    %c0_2 = arith.constant 0 : index
    %c0_3 = arith.constant 0 : index
    %1 = vector.load %arg3[%c0_2, %c0_3] : memref<128x1152xf32, #tpu.memory_space<vmem>>, vector<128x1152xf32>
    %c0_4 = arith.constant 0 : index
    %c0_5 = arith.constant 0 : index
    %2 = vector.load %arg4[%c0_4, %c0_5] : memref<1x1152xf32, #tpu.memory_space<vmem>>, vector<1x1152xf32>
    %c0_6 = arith.constant 0 : index
    %c0_7 = arith.constant 0 : index
    %3 = vector.load %arg5[%c0_6, %c0_7] : memref<1x384xf32, #tpu.memory_space<vmem>>, vector<1x384xf32>
    %cst = arith.constant 0.000000e+00 : f32
    %4 = vector.broadcast %cst : f32 to vector<2x8x128xf32>
    %c0_8 = arith.constant 0 : index
    %c0_9 = arith.constant 0 : index
    %c0_10 = arith.constant 0 : index
    %5 = vector.load %arg7[%c0_8, %c0_9, %c0_10] : memref<2x8x128xf32, #tpu.memory_space<vmem>>, vector<2x8x128xf32>
    tpu.vector_store %arg7[%c0_8, %c0_9, %c0_10], %4 {strides = array<i32>} : memref<2x8x128xf32, #tpu.memory_space<vmem>>, vector<2x8x128xf32>,
    %c0_11 = arith.constant 0 : index
    %c0_12 = arith.constant 0 : index
    %c0_13 = arith.constant 0 : index
    %6 = vector.load %arg2[%c0_11, %c0_12, %c0_13] : memref<2x8x32xf32, #tpu.memory_space<vmem>>, vector<2x8x32xf32>
    %c0_14 = arith.constant 0 : index
    %c0_15 = arith.constant 0 : index
    %c0_16 = arith.constant 0 : index
    %7 = vector.load %arg7[%c0_14, %c0_15, %c0_16] : memref<2x8x128xf32, #tpu.memory_space<vmem>>, vector<2x8x32xf32>
    tpu.vector_store %arg7[%c0_14, %c0_15, %c0_16], %6 {strides = array<i32>} : memref<2x8x128xf32, #tpu.memory_space<vmem>>, vector<2x8x32xf32>,
    %c0_17 = arith.constant 0 : index
    %c0_18 = arith.constant 0 : index
    %c0_19 = arith.constant 0 : index
    %8 = vector.load %arg7[%c0_17, %c0_18, %c0_19] : memref<2x8x128xf32, #tpu.memory_space<vmem>>, vector<2x8x128xf32>
    %9 = vector.shape_cast %8 : vector<2x8x128xf32> to vector<16x128xf32>
    %cst_20 = arith.constant dense<0.000000e+00> : vector<16x1152xf32>
    %10 = tpu.matmul %9, %1, %cst_20 {dimension_numbers = #tpu.dot_dimension_numbers<[1], [0], [0], [1], [0, 0, 1, 1], [], []>} : vector<16x128xf32>, vector<128x1152xf32>, vector<16x1152xf32> -> vector<16x1152xf32>
    %11 = vector.broadcast %2 : vector<1x1152xf32> to vector<16x1152xf32>
    %12 = arith.addf %10, %11 : vector<16x1152xf32>
    %13 = vector.extract_strided_slice %12 {offsets = [0, 0], sizes = [16, 384], strides = [1, 1]} : vector<16x1152xf32> to vector<16x384xf32>
    %14 = vector.extract_strided_slice %12 {offsets = [0, 384], sizes = [16, 384], strides = [1, 1]} : vector<16x1152xf32> to vector<16x384xf32>
    %15 = vector.shape_cast %14 : vector<16x384xf32> to vector<2x8x384xf32>
    %16 = vector.extract_strided_slice %12 {offsets = [0, 768], sizes = [16, 384], strides = [1, 1]} : vector<16x1152xf32> to vector<16x384xf32>
    %17 = vector.shape_cast %16 : vector<16x384xf32> to vector<2x8x384xf32>
    %18 = tpu.concatenate %15, %17 in 1 : vector<2x8x384xf32>, vector<2x8x384xf32> -> vector<2x16x384xf32>
    "tpu.trace_start"() <{level = 10 : i32, message = "bnk,bkg->bng"}> : () -> ()
    %cst_21 = arith.constant dense<0.000000e+00> : vector<2x8x384xf32>
    %19 = tpu.matmul %0, %18, %cst_21 {dimension_numbers = #tpu.dot_dimension_numbers<[2], [1], [1], [2], [0, 0, 0, 1, 1, 2], [0], [0]>} : vector<2x8x16xf32>, vector<2x16x384xf32>, vector<2x8x384xf32> -> vector<2x8x384xf32>
    "tpu.trace_stop"() : () -> ()
    %20 = vector.shape_cast %19 : vector<2x8x384xf32> to vector<16x384xf32>
    %21 = vector.broadcast %3 : vector<1x384xf32> to vector<16x384xf32>
    %22 = arith.addf %20, %21 : vector<16x384xf32>
    %23 = vector.extract_strided_slice %22 {offsets = [0, 0], sizes = [16, 128], strides = [1, 1]} : vector<16x384xf32> to vector<16x128xf32>
    %24 = vector.extract_strided_slice %13 {offsets = [0, 0], sizes = [16, 128], strides = [1, 1]} : vector<16x384xf32> to vector<16x128xf32>
    %25 = arith.addf %23, %24 : vector<16x128xf32>
    %26 = arith.negf %25 : vector<16x128xf32>
    %27 = math.exp %26 : vector<16x128xf32>
    %cst_22 = arith.constant 1.000000e+00 : f32
    %28 = vector.broadcast %cst_22 : f32 to vector<16x128xf32>
    %29 = arith.addf %28, %27 : vector<16x128xf32>
    %30 = arith.divf %28, %29 : vector<16x128xf32>
    %31 = vector.extract_strided_slice %22 {offsets = [0, 128], sizes = [16, 128], strides = [1, 1]} : vector<16x384xf32> to vector<16x128xf32>
    %32 = vector.extract_strided_slice %13 {offsets = [0, 128], sizes = [16, 128], strides = [1, 1]} : vector<16x384xf32> to vector<16x128xf32>
    %33 = arith.addf %31, %32 : vector<16x128xf32>
    %34 = arith.negf %33 : vector<16x128xf32>
    %35 = math.exp %34 : vector<16x128xf32>
    %cst_23 = arith.constant 1.000000e+00 : f32
    %36 = vector.broadcast %cst_23 : f32 to vector<16x128xf32>
    %37 = arith.addf %36, %35 : vector<16x128xf32>
    %38 = arith.divf %36, %37 : vector<16x128xf32>
    %39 = vector.extract_strided_slice %22 {offsets = [0, 256], sizes = [16, 128], strides = [1, 1]} : vector<16x384xf32> to vector<16x128xf32>
    %40 = vector.extract_strided_slice %13 {offsets = [0, 256], sizes = [16, 128], strides = [1, 1]} : vector<16x384xf32> to vector<16x128xf32>
    %41 = arith.mulf %30, %40 : vector<16x128xf32>
    %42 = arith.addf %39, %41 : vector<16x128xf32>
    %43 = math.tanh %42 : vector<16x128xf32>
    %44 = arith.subf %9, %43 : vector<16x128xf32>
    %45 = arith.mulf %38, %44 : vector<16x128xf32>
    %46 = arith.addf %43, %45 : vector<16x128xf32>
    %cst_24 = arith.constant dense<0.000000e+00> : vector<16x1152xf32>
    %47 = tpu.matmul %46, %1, %cst_24 {dimension_numbers = #tpu.dot_dimension_numbers<[1], [0], [0], [1], [0, 0, 1, 1], [], []>} : vector<16x128xf32>, vector<128x1152xf32>, vector<16x1152xf32> -> vector<16x1152xf32>
    %48 = vector.broadcast %2 : vector<1x1152xf32> to vector<16x1152xf32>
    %49 = arith.addf %47, %48 : vector<16x1152xf32>
    %50 = vector.extract_strided_slice %49 {offsets = [0, 0], sizes = [16, 384], strides = [1, 1]} : vector<16x1152xf32> to vector<16x384xf32>
    %51 = vector.extract_strided_slice %49 {offsets = [0, 384], sizes = [16, 384], strides = [1, 1]} : vector<16x1152xf32> to vector<16x384xf32>
    %52 = vector.shape_cast %51 : vector<16x384xf32> to vector<2x8x384xf32>
    %53 = vector.extract_strided_slice %49 {offsets = [0, 768], sizes = [16, 384], strides = [1, 1]} : vector<16x1152xf32> to vector<16x384xf32>
    %54 = vector.shape_cast %53 : vector<16x384xf32> to vector<2x8x384xf32>
    %55 = tpu.concatenate %52, %54 in 1 : vector<2x8x384xf32>, vector<2x8x384xf32> -> vector<2x16x384xf32>
    "tpu.trace_start"() <{level = 10 : i32, message = "bnk,bkg->bng"}> : () -> ()
    %cst_25 = arith.constant dense<0.000000e+00> : vector<2x8x384xf32>
    %56 = tpu.matmul %0, %55, %cst_25 {dimension_numbers = #tpu.dot_dimension_numbers<[2], [1], [1], [2], [0, 0, 0, 1, 1, 2], [0], [0]>} : vector<2x8x16xf32>, vector<2x16x384xf32>, vector<2x8x384xf32> -> vector<2x8x384xf32>
    "tpu.trace_stop"() : () -> ()
    %57 = vector.shape_cast %56 : vector<2x8x384xf32> to vector<16x384xf32>
    %58 = vector.broadcast %3 : vector<1x384xf32> to vector<16x384xf32>
    %59 = arith.addf %57, %58 : vector<16x384xf32>
    %60 = vector.extract_strided_slice %59 {offsets = [0, 0], sizes = [16, 128], strides = [1, 1]} : vector<16x384xf32> to vector<16x128xf32>
    %61 = vector.extract_strided_slice %50 {offsets = [0, 0], sizes = [16, 128], strides = [1, 1]} : vector<16x384xf32> to vector<16x128xf32>
    %62 = arith.addf %60, %61 : vector<16x128xf32>
    %63 = arith.negf %62 : vector<16x128xf32>
    %64 = math.exp %63 : vector<16x128xf32>
    %cst_26 = arith.constant 1.000000e+00 : f32
    %65 = vector.broadcast %cst_26 : f32 to vector<16x128xf32>
    %66 = arith.addf %65, %64 : vector<16x128xf32>
    %67 = arith.divf %65, %66 : vector<16x128xf32>
    %68 = vector.extract_strided_slice %59 {offsets = [0, 128], sizes = [16, 128], strides = [1, 1]} : vector<16x384xf32> to vector<16x128xf32>
    %69 = vector.extract_strided_slice %50 {offsets = [0, 128], sizes = [16, 128], strides = [1, 1]} : vector<16x384xf32> to vector<16x128xf32>
    %70 = arith.addf %68, %69 : vector<16x128xf32>
    %71 = arith.negf %70 : vector<16x128xf32>
    %72 = math.exp %71 : vector<16x128xf32>
    %cst_27 = arith.constant 1.000000e+00 : f32
    %73 = vector.broadcast %cst_27 : f32 to vector<16x128xf32>
    %74 = arith.addf %73, %72 : vector<16x128xf32>
    %75 = arith.divf %73, %74 : vector<16x128xf32>
    %76 = vector.extract_strided_slice %59 {offsets = [0, 256], sizes = [16, 128], strides = [1, 1]} : vector<16x384xf32> to vector<16x128xf32>
    %77 = vector.extract_strided_slice %50 {offsets = [0, 256], sizes = [16, 128], strides = [1, 1]} : vector<16x384xf32> to vector<16x128xf32>
    %78 = arith.mulf %67, %77 : vector<16x128xf32>
    %79 = arith.addf %76, %78 : vector<16x128xf32>
    %80 = math.tanh %79 : vector<16x128xf32>
    %81 = arith.subf %46, %80 : vector<16x128xf32>
    %82 = arith.mulf %75, %81 : vector<16x128xf32>
    %83 = arith.addf %80, %82 : vector<16x128xf32>
    %84 = vector.shape_cast %83 : vector<16x128xf32> to vector<2x8x128xf32>
    %85 = vector.extract_strided_slice %84 {offsets = [0, 0, 0], sizes = [2, 8, 32], strides = [1, 1, 1]} : vector<2x8x128xf32> to vector<2x8x32xf32>
    %c0_28 = arith.constant 0 : index
    %c0_29 = arith.constant 0 : index
    %c0_30 = arith.constant 0 : index
    %86 = vector.load %arg6[%c0_28, %c0_29, %c0_30] : memref<2x8x32xf32, #tpu.memory_space<vmem>>, vector<2x8x32xf32>
    tpu.vector_store %arg6[%c0_28, %c0_29, %c0_30], %85 {strides = array<i32>} : memref<2x8x32xf32, #tpu.memory_space<vmem>>, vector<2x8x32xf32>,
    return
  }
  func.func @transform_0(%arg0: i32) -> (i32, i32, i32) {
    %c0_i32 = arith.constant 0 : i32
    %c0_i32_0 = arith.constant 0 : i32
    %c0_i32_1 = arith.constant 0 : i32
    return %arg0, %c0_i32, %c0_i32_0 : i32, i32, i32
  }
  func.func @transform_1(%arg0: i32) -> (i32, i32, i32) {
    %c0_i32 = arith.constant 0 : i32
    %c0_i32_0 = arith.constant 0 : i32
    %c0_i32_1 = arith.constant 0 : i32
    return %arg0, %c0_i32, %c0_i32_0 : i32, i32, i32
  }
  func.func @transform_2(%arg0: i32) -> (i32, i32) {
    %c0_i32 = arith.constant 0 : i32
    %c0_i32_0 = arith.constant 0 : i32
    %c0_i32_1 = arith.constant 0 : i32
    return %c0_i32, %c0_i32_0 : i32, i32
  }
  func.func @transform_3(%arg0: i32) -> (i32, i32) {
    %c0_i32 = arith.constant 0 : i32
    %c0_i32_0 = arith.constant 0 : i32
    %c0_i32_1 = arith.constant 0 : i32
    return %c0_i32, %c0_i32_0 : i32, i32
  }
  func.func @transform_4(%arg0: i32) -> (i32, i32) {
    %c0_i32 = arith.constant 0 : i32
    %c0_i32_0 = arith.constant 0 : i32
    %c0_i32_1 = arith.constant 0 : i32
    return %c0_i32, %c0_i32_0 : i32, i32
  }
  func.func @transform_5(%arg0: i32) -> (i32, i32, i32) {
    %c0_i32 = arith.constant 0 : i32
    %c0_i32_0 = arith.constant 0 : i32
    %c0_i32_1 = arith.constant 0 : i32
    return %arg0, %c0_i32, %c0_i32_0 : i32, i32, i32
  }
}

module attributes {stable_mosaic.version = 11 : i64} {
  func.func @_ggnn_refold_kernel(%arg0: i32, %arg1: memref<2x8x16xf32, #tpu.memory_space<vmem>>, %arg2: memref<2x8x32xf32, #tpu.memory_space<vmem>>, %arg3: memref<128x1152xf32, #tpu.memory_space<vmem>>, %arg4: memref<1x1152xf32, #tpu.memory_space<vmem>>, %arg5: memref<1x384xf32, #tpu.memory_space<vmem>>, %arg6: memref<2x8x32xf32, #tpu.memory_space<vmem>>, %arg7: memref<2x8x128xf32, #tpu.memory_space<vmem>>) attributes {dimension_semantics = [#tpu.dimension_semantics<parallel>], iteration_bounds = array<i64: 1>, scalar_prefetch = 0 : i64, scratch_operands = 1 : i64, tpu.core_type = #tpu.core_type<tc>, window_params = [{transform_indices = @transform_0, window_bounds = array<i64: 2, 8, 16>}, {transform_indices = @transform_1, window_bounds = array<i64: 2, 8, 32>}, {pipeline_mode = #tpu.pipeline_mode<synchronous>, transform_indices = @transform_2, window_bounds = array<i64: 128, 1152>}, {pipeline_mode = #tpu.pipeline_mode<synchronous>, transform_indices = @transform_3, window_bounds = array<i64: 1, 1152>}, {pipeline_mode = #tpu.pipeline_mode<synchronous>, transform_indices = @transform_4, window_bounds = array<i64: 1, 384>}, {transform_indices = @transform_5, window_bounds = array<i64: 2, 8, 32>}]} {
    %c0 = arith.constant 0 : index
    %c0_0 = arith.constant 0 : index
    %c0_1 = arith.constant 0 : index
    %0 = vector.load %arg1[%c0, %c0_0, %c0_1] : memref<2x8x16xf32, #tpu.memory_space<vmem>>, vector<2x8x16xf32>
    %c0_2 = arith.constant 0 : index
    %c0_3 = arith.constant 0 : index
    %1 = vector.load %arg3[%c0_2, %c0_3] : memref<128x1152xf32, #tpu.memory_space<vmem>>, vector<128x1152xf32>
    %c0_4 = arith.constant 0 : index
    %c0_5 = arith.constant 0 : index
    %2 = vector.load %arg4[%c0_4, %c0_5] : memref<1x1152xf32, #tpu.memory_space<vmem>>, vector<1x1152xf32>
    %c0_6 = arith.constant 0 : index
    %c0_7 = arith.constant 0 : index
    %3 = vector.load %arg5[%c0_6, %c0_7] : memref<1x384xf32, #tpu.memory_space<vmem>>, vector<1x384xf32>
    %cst = arith.constant 0.000000e+00 : f32
    %4 = vector.broadcast %cst : f32 to vector<2x8x128xf32>
    %c0_8 = arith.constant 0 : index
    %c0_9 = arith.constant 0 : index
    %c0_10 = arith.constant 0 : index
    %5 = vector.load %arg7[%c0_8, %c0_9, %c0_10] : memref<2x8x128xf32, #tpu.memory_space<vmem>>, vector<2x8x128xf32>
    tpu.vector_store %arg7[%c0_8, %c0_9, %c0_10], %4 {strides = array<i32>} : memref<2x8x128xf32, #tpu.memory_space<vmem>>, vector<2x8x128xf32>,
    %c0_11 = arith.constant 0 : index
    %c0_12 = arith.constant 0 : index
    %c0_13 = arith.constant 0 : index
    %6 = vector.load %arg2[%c0_11, %c0_12, %c0_13] : memref<2x8x32xf32, #tpu.memory_space<vmem>>, vector<2x8x32xf32>
    %c0_14 = arith.constant 0 : index
    %c0_15 = arith.constant 0 : index
    %c0_16 = arith.constant 0 : index
    %7 = vector.load %arg7[%c0_14, %c0_15, %c0_16] : memref<2x8x128xf32, #tpu.memory_space<vmem>>, vector<2x8x32xf32>
    tpu.vector_store %arg7[%c0_14, %c0_15, %c0_16], %6 {strides = array<i32>} : memref<2x8x128xf32, #tpu.memory_space<vmem>>, vector<2x8x32xf32>,
    %c0_17 = arith.constant 0 : index
    %c0_18 = arith.constant 0 : index
    %c0_19 = arith.constant 0 : index
    %8 = vector.load %arg7[%c0_17, %c0_18, %c0_19] : memref<2x8x128xf32, #tpu.memory_space<vmem>>, vector<2x8x128xf32>
    %9 = vector.shape_cast %8 : vector<2x8x128xf32> to vector<16x128xf32>
    %cst_20 = arith.constant dense<0.000000e+00> : vector<16x1152xf32>
    %10 = tpu.matmul %9, %1, %cst_20 {dimension_numbers = #tpu.dot_dimension_numbers<[1], [0], [0], [1], [0, 0, 1, 1], [], []>} : vector<16x128xf32>, vector<128x1152xf32>, vector<16x1152xf32> -> vector<16x1152xf32>
    %11 = vector.broadcast %2 : vector<1x1152xf32> to vector<16x1152xf32>
    %12 = arith.addf %10, %11 : vector<16x1152xf32>
    %13 = vector.extract_strided_slice %12 {offsets = [0, 0], sizes = [16, 384], strides = [1, 1]} : vector<16x1152xf32> to vector<16x384xf32>
    %14 = vector.extract_strided_slice %12 {offsets = [0, 384], sizes = [16, 384], strides = [1, 1]} : vector<16x1152xf32> to vector<16x384xf32>
    %15 = vector.shape_cast %14 : vector<16x384xf32> to vector<2x8x384xf32>
    %16 = vector.extract_strided_slice %12 {offsets = [0, 768], sizes = [16, 384], strides = [1, 1]} : vector<16x1152xf32> to vector<16x384xf32>
    %17 = vector.shape_cast %16 : vector<16x384xf32> to vector<2x8x384xf32>
    %18 = tpu.concatenate %15, %17 in 1 : vector<2x8x384xf32>, vector<2x8x384xf32> -> vector<2x16x384xf32>
    "tpu.trace_start"() <{level = 10 : i32, message = "bnk,bkg->bng"}> : () -> ()
    %cst_21 = arith.constant dense<0.000000e+00> : vector<2x8x384xf32>
    %19 = tpu.matmul %0, %18, %cst_21 {dimension_numbers = #tpu.dot_dimension_numbers<[2], [1], [1], [2], [0, 0, 0, 1, 1, 2], [0], [0]>} : vector<2x8x16xf32>, vector<2x16x384xf32>, vector<2x8x384xf32> -> vector<2x8x384xf32>
    "tpu.trace_stop"() : () -> ()
    %20 = vector.shape_cast %19 : vector<2x8x384xf32> to vector<16x384xf32>
    %21 = vector.broadcast %3 : vector<1x384xf32> to vector<16x384xf32>
    %22 = arith.addf %20, %21 : vector<16x384xf32>
    %23 = vector.extract_strided_slice %22 {offsets = [0, 0], sizes = [16, 128], strides = [1, 1]} : vector<16x384xf32> to vector<16x128xf32>
    %24 = vector.extract_strided_slice %13 {offsets = [0, 0], sizes = [16, 128], strides = [1, 1]} : vector<16x384xf32> to vector<16x128xf32>
    %25 = arith.addf %23, %24 : vector<16x128xf32>
    %26 = arith.negf %25 : vector<16x128xf32>
    %27 = math.exp %26 : vector<16x128xf32>
    %cst_22 = arith.constant 1.000000e+00 : f32
    %28 = vector.broadcast %cst_22 : f32 to vector<16x128xf32>
    %29 = arith.addf %28, %27 : vector<16x128xf32>
    %30 = arith.divf %28, %29 : vector<16x128xf32>
    %31 = vector.extract_strided_slice %22 {offsets = [0, 128], sizes = [16, 128], strides = [1, 1]} : vector<16x384xf32> to vector<16x128xf32>
    %32 = vector.extract_strided_slice %13 {offsets = [0, 128], sizes = [16, 128], strides = [1, 1]} : vector<16x384xf32> to vector<16x128xf32>
    %33 = arith.addf %31, %32 : vector<16x128xf32>
    %34 = arith.negf %33 : vector<16x128xf32>
    %35 = math.exp %34 : vector<16x128xf32>
    %cst_23 = arith.constant 1.000000e+00 : f32
    %36 = vector.broadcast %cst_23 : f32 to vector<16x128xf32>
    %37 = arith.addf %36, %35 : vector<16x128xf32>
    %38 = arith.divf %36, %37 : vector<16x128xf32>
    %39 = vector.extract_strided_slice %22 {offsets = [0, 256], sizes = [16, 128], strides = [1, 1]} : vector<16x384xf32> to vector<16x128xf32>
    %40 = vector.extract_strided_slice %13 {offsets = [0, 256], sizes = [16, 128], strides = [1, 1]} : vector<16x384xf32> to vector<16x128xf32>
    %41 = arith.mulf %30, %40 : vector<16x128xf32>
    %42 = arith.addf %39, %41 : vector<16x128xf32>
    %43 = math.tanh %42 : vector<16x128xf32>
    %44 = arith.subf %9, %43 : vector<16x128xf32>
    %45 = arith.mulf %38, %44 : vector<16x128xf32>
    %46 = arith.addf %43, %45 : vector<16x128xf32>
    %cst_24 = arith.constant dense<0.000000e+00> : vector<16x1152xf32>
    %47 = tpu.matmul %46, %1, %cst_24 {dimension_numbers = #tpu.dot_dimension_numbers<[1], [0], [0], [1], [0, 0, 1, 1], [], []>} : vector<16x128xf32>, vector<128x1152xf32>, vector<16x1152xf32> -> vector<16x1152xf32>
    %48 = vector.broadcast %2 : vector<1x1152xf32> to vector<16x1152xf32>
    %49 = arith.addf %47, %48 : vector<16x1152xf32>
    %50 = vector.extract_strided_slice %49 {offsets = [0, 0], sizes = [16, 384], strides = [1, 1]} : vector<16x1152xf32> to vector<16x384xf32>
    %51 = vector.extract_strided_slice %49 {offsets = [0, 384], sizes = [16, 384], strides = [1, 1]} : vector<16x1152xf32> to vector<16x384xf32>
    %52 = vector.shape_cast %51 : vector<16x384xf32> to vector<2x8x384xf32>
    %53 = vector.extract_strided_slice %49 {offsets = [0, 768], sizes = [16, 384], strides = [1, 1]} : vector<16x1152xf32> to vector<16x384xf32>
    %54 = vector.shape_cast %53 : vector<16x384xf32> to vector<2x8x384xf32>
    %55 = tpu.concatenate %52, %54 in 1 : vector<2x8x384xf32>, vector<2x8x384xf32> -> vector<2x16x384xf32>
    "tpu.trace_start"() <{level = 10 : i32, message = "bnk,bkg->bng"}> : () -> ()
    %cst_25 = arith.constant dense<0.000000e+00> : vector<2x8x384xf32>
    %56 = tpu.matmul %0, %55, %cst_25 {dimension_numbers = #tpu.dot_dimension_numbers<[2], [1], [1], [2], [0, 0, 0, 1, 1, 2], [0], [0]>} : vector<2x8x16xf32>, vector<2x16x384xf32>, vector<2x8x384xf32> -> vector<2x8x384xf32>
    "tpu.trace_stop"() : () -> ()
    %57 = vector.shape_cast %56 : vector<2x8x384xf32> to vector<16x384xf32>
    %58 = vector.broadcast %3 : vector<1x384xf32> to vector<16x384xf32>
    %59 = arith.addf %57, %58 : vector<16x384xf32>
    %60 = vector.extract_strided_slice %59 {offsets = [0, 0], sizes = [16, 128], strides = [1, 1]} : vector<16x384xf32> to vector<16x128xf32>
    %61 = vector.extract_strided_slice %50 {offsets = [0, 0], sizes = [16, 128], strides = [1, 1]} : vector<16x384xf32> to vector<16x128xf32>
    %62 = arith.addf %60, %61 : vector<16x128xf32>
    %63 = arith.negf %62 : vector<16x128xf32>
    %64 = math.exp %63 : vector<16x128xf32>
    %cst_26 = arith.constant 1.000000e+00 : f32
    %65 = vector.broadcast %cst_26 : f32 to vector<16x128xf32>
    %66 = arith.addf %65, %64 : vector<16x128xf32>
    %67 = arith.divf %65, %66 : vector<16x128xf32>
    %68 = vector.extract_strided_slice %59 {offsets = [0, 128], sizes = [16, 128], strides = [1, 1]} : vector<16x384xf32> to vector<16x128xf32>
    %69 = vector.extract_strided_slice %50 {offsets = [0, 128], sizes = [16, 128], strides = [1, 1]} : vector<16x384xf32> to vector<16x128xf32>
    %70 = arith.addf %68, %69 : vector<16x128xf32>
    %71 = arith.negf %70 : vector<16x128xf32>
    %72 = math.exp %71 : vector<16x128xf32>
    %cst_27 = arith.constant 1.000000e+00 : f32
    %73 = vector.broadcast %cst_27 : f32 to vector<16x128xf32>
    %74 = arith.addf %73, %72 : vector<16x128xf32>
    %75 = arith.divf %73, %74 : vector<16x128xf32>
    %76 = vector.extract_strided_slice %59 {offsets = [0, 256], sizes = [16, 128], strides = [1, 1]} : vector<16x384xf32> to vector<16x128xf32>
    %77 = vector.extract_strided_slice %50 {offsets = [0, 256], sizes = [16, 128], strides = [1, 1]} : vector<16x384xf32> to vector<16x128xf32>
    %78 = arith.mulf %67, %77 : vector<16x128xf32>
    %79 = arith.addf %76, %78 : vector<16x128xf32>
    %80 = math.tanh %79 : vector<16x128xf32>
    %81 = arith.subf %46, %80 : vector<16x128xf32>
    %82 = arith.mulf %75, %81 : vector<16x128xf32>
    %83 = arith.addf %80, %82 : vector<16x128xf32>
    %84 = vector.shape_cast %83 : vector<16x128xf32> to vector<2x8x128xf32>
    %85 = vector.extract_strided_slice %84 {offsets = [0, 0, 0], sizes = [2, 8, 32], strides = [1, 1, 1]} : vector<2x8x128xf32> to vector<2x8x32xf32>
    %c0_28 = arith.constant 0 : index
    %c0_29 = arith.constant 0 : index
    %c0_30 = arith.constant 0 : index
    %86 = vector.load %arg6[%c0_28, %c0_29, %c0_30] : memref<2x8x32xf32, #tpu.memory_space<vmem>>, vector<2x8x32xf32>
    tpu.vector_store %arg6[%c0_28, %c0_29, %c0_30], %85 {strides = array<i32>} : memref<2x8x32xf32, #tpu.memory_space<vmem>>, vector<2x8x32xf32>,
    return
  }
  func.func @transform_0(%arg0: i32) -> (i32, i32, i32) {
    %c0_i32 = arith.constant 0 : i32
    %c0_i32_0 = arith.constant 0 : i32
    %c0_i32_1 = arith.constant 0 : i32
    return %arg0, %c0_i32, %c0_i32_0 : i32, i32, i32
  }
  func.func @transform_1(%arg0: i32) -> (i32, i32, i32) {
    %c0_i32 = arith.constant 0 : i32
    %c0_i32_0 = arith.constant 0 : i32
    %c0_i32_1 = arith.constant 0 : i32
    return %arg0, %c0_i32, %c0_i32_0 : i32, i32, i32
  }
  func.func @transform_2(%arg0: i32) -> (i32, i32) {
    %c0_i32 = arith.constant 0 : i32
    %c0_i32_0 = arith.constant 0 : i32
    %c0_i32_1 = arith.constant 0 : i32
    return %c0_i32, %c0_i32_0 : i32, i32
  }
  func.func @transform_3(%arg0: i32) -> (i32, i32) {
    %c0_i32 = arith.constant 0 : i32
    %c0_i32_0 = arith.constant 0 : i32
    %c0_i32_1 = arith.constant 0 : i32
    return %c0_i32, %c0_i32_0 : i32, i32
  }
  func.func @transform_4(%arg0: i32) -> (i32, i32) {
    %c0_i32 = arith.constant 0 : i32
    %c0_i32_0 = arith.constant 0 : i32
    %c0_i32_1 = arith.constant 0 : i32
    return %c0_i32, %c0_i32_0 : i32, i32
  }
  func.func @transform_5(%arg0: i32) -> (i32, i32, i32) {
    %c0_i32 = arith.constant 0 : i32
    %c0_i32_0 = arith.constant 0 : i32
    %c0_i32_1 = arith.constant 0 : i32
    return %arg0, %c0_i32, %c0_i32_0 : i32, i32, i32
  }
}

</mosaic_0001>

<llo_original>
// kernel: tpu_custom_call.1
$region0: #{tpu_custom_call.1}
  #allocation0 [shape = 'u32[]', space=smem, size = 0x4, offset = 0x4, fixed_abs, tag = 'smem constant byte address 0x4 - core index']
  #allocation1 [shape = 'u32[144,128]{1,0:T(1,128)}', space=vmem, size = 0x12000, scoped, tag = 'internal scratch']
  #allocation2 [shape = 'f32[2,8,128]{2,1,0:T(8,128)}', space=vmem, size = 0x2000, scoped, tag = 'scratch operand']
  %s0 = inlined_call_operand.hbm [shape: f32[2,8,16], index: 0, kind: input, shape index: {}]
  %s1 = inlined_call_operand.hbm [shape: f32[2,8,32], index: 1, kind: input, shape index: {}]
  %s2 = inlined_call_operand.hbm [shape: f32[128,1152], index: 2, kind: input, shape index: {}]
  %s3 = inlined_call_operand.vmem [shape: f32[1,1152], index: 3, kind: input, shape index: {}]
  %s4 = inlined_call_operand.vmem [shape: f32[1,384], index: 4, kind: input, shape index: {}]
  %s5 = inlined_call_operand.hbm [shape: f32[2,8,32], index: 5, kind: output, shape index: {}]
  %s6 = sld [smem:[#allocation0]]
  $region42: #{tpu_custom_call.1} parent=0
    _
  %s8 = ssub.s32 1, %s6
  %s9 = scalar_select 0, %s8, %s6
  $region1: #{tpu_custom_call.1} parent=0
    #allocation3 [shape = 'u8[8192]{0}', space=vmem, size = 0x2000, scoped, tag = 'input window, operand 0, single buffered']
    #allocation4 [shape = 's32[1]{0}', space=sflag, size = 0x4, scoped, tag = 'scoped memory for tpu_custom_call.1']
    #allocation5 [shape = 's32[1]{0}', space=sflag, size = 0x4, scoped, tag = 'scoped memory for tpu_custom_call.1']
    #allocation6 [shape = 'u8[8192]{0}', space=vmem, size = 0x2000, scoped, tag = 'input window, operand 1, single buffered']
    #allocation7 [shape = 's32[1]{0}', space=sflag, size = 0x4, scoped, tag = 'scoped memory for tpu_custom_call.1']
    #allocation8 [shape = 'u8[589824]{0}', space=vmem, size = 0x90000, scoped, tag = 'input window, operand 2, single buffered']
    #allocation9 [shape = 'u8[8192]{0}', space=vmem, size = 0x2000, scoped, tag = 'output window, operand 0, single buffered']
    %10 = vsyncpa [#allocation4], 0
    %11 = vsyncpa [#allocation7], 0
    %12 = vsyncpa [#allocation5], 0
    // Predicated region
    $region2: #{tpu_custom_call.1} parent=1 // pred_check
      _
    $region3: #{tpu_custom_call.1} parent=1 // pred_check_branch
      %14 = sbr.rel (0) target = $region5
    $region4: #{tpu_custom_call.1} parent=1 // pred_region
      %s16 = ssub.s32 256, 256
      %17 = vsyncadd [#allocation4], %s16
      %s18 = sshll.u32 [#allocation3], 4
      %s19 = int_to_ptr.vmem [resolvable:$true] %s18
      %24 = dma.hbm_to_vmem [thread:$0]  %s0, 256, %s19, [#allocation4], 128, 128, 8
    $region5: #{tpu_custom_call.1} parent=1 // pred_fallthru
      _
    // Predicated region
    $region6: #{tpu_custom_call.1} parent=1 // pred_check
      _
    $region7: #{tpu_custom_call.1} parent=1 // pred_check_branch
      %26 = sbr.rel (0) target = $region9
    $region8: #{tpu_custom_call.1} parent=1 // pred_region
      %s28 = ssub.s32 256, 256
      %29 = vsyncadd [#allocation7], %s28
      %s30 = sshll.u32 [#allocation6], 4
      %s31 = int_to_ptr.vmem [resolvable:$true] %s30
      %36 = dma.hbm_to_vmem [thread:$0]  %s1, 256, %s31, [#allocation7], 128, 128, 8
    $region9: #{tpu_custom_call.1} parent=1 // pred_fallthru
      _
    // Predicated region
    $region10: #{tpu_custom_call.1} parent=1 // pred_check
      _
    $region11: #{tpu_custom_call.1} parent=1 // pred_check_branch
      %38 = sbr.rel (0) target = $region13
    $region12: #{tpu_custom_call.1} parent=1 // pred_region
      %s40 = ssub.s32 18432, 18432
      %41 = vsyncadd [#allocation7], %s40
      %s42 = sshll.u32 [#allocation8], 4
      %s43 = int_to_ptr.vmem [resolvable:$true] %s42
      %48 = dma.hbm_to_vmem [thread:$0]  %s2, 18432, %s43, [#allocation7], 1152, 1152, 72
    $region13: #{tpu_custom_call.1} parent=1 // pred_fallthru
      _
    // Predicated region
    $region14: #{tpu_custom_call.1} parent=1 // pred_check
      _
    $region15: #{tpu_custom_call.1} parent=1 // pred_check_branch
      %50 = sbr.rel (0) target = $region17
    $region16: #{tpu_custom_call.1} parent=1 // pred_region
      _
    $region17: #{tpu_custom_call.1} parent=1 // pred_fallthru
      _
    // Predicated region
    $region18: #{tpu_custom_call.1} parent=1 // pred_check
      _
    $region19: #{tpu_custom_call.1} parent=1 // pred_check_branch
      %52 = sbr.rel (0) target = $region21
    $region20: #{tpu_custom_call.1} parent=1 // pred_region
      _
    $region21: #{tpu_custom_call.1} parent=1 // pred_fallthru
      _
    // Predicated region
    $region22: #{tpu_custom_call.1} parent=1 // pred_check
      _
    $region23: #{tpu_custom_call.1} parent=1 // pred_check_branch
      %54 = sbr.rel (0) target = $region25
    $region24: #{tpu_custom_call.1} parent=1 // pred_region
      %55 = dma.done [#allocation4], 256
    $region25: #{tpu_custom_call.1} parent=1 // pred_fallthru
      _
    // Predicated region
    $region26: #{tpu_custom_call.1} parent=1 // pred_check
      _
    $region27: #{tpu_custom_call.1} parent=1 // pred_check_branch
      %57 = sbr.rel (0) target = $region29
    $region28: #{tpu_custom_call.1} parent=1 // pred_region
      %58 = dma.done [#allocation7], 256
    $region29: #{tpu_custom_call.1} parent=1 // pred_fallthru
      _
    // Predicated region
    $region30: #{tpu_custom_call.1} parent=1 // pred_check
      _
    $region31: #{tpu_custom_call.1} parent=1 // pred_check_branch
      %60 = sbr.rel (0) target = $region33
    $region32: #{tpu_custom_call.1} parent=1 // pred_region
      %61 = dma.done [#allocation7], 18432
    $region33: #{tpu_custom_call.1} parent=1 // pred_fallthru
      _
    %v62 = vld [vmem:[#allocation3] sm:$0xff]
    %v63 = vld [vmem:[#allocation3 + $0x8] sm:$0xff]
    %v64 = vld [vmem:[#allocation8] sm:$0xff]
    %v65 = vld [vmem:[#allocation8 + $0x8] sm:$0xff]
    %v66 = vld [vmem:[#allocation8 + $0x10] sm:$0xff]
    %v67 = vld [vmem:[#allocation8 + $0x18] sm:$0xff]
    %v68 = vld [vmem:[#allocation8 + $0x20] sm:$0xff]
    %v69 = vld [vmem:[#allocation8 + $0x28] sm:$0xff]
    %v70 = vld [vmem:[#allocation8 + $0x30] sm:$0xff]
    %v71 = vld [vmem:[#allocation8 + $0x38] sm:$0xff]
    %v72 = vld [vmem:[#allocation8 + $0x40] sm:$0xff]
    %v73 = vld [vmem:[#allocation8 + $0x48] sm:$0xff]
    %v74 = vld [vmem:[#allocation8 + $0x50] sm:$0xff]
    %v75 = vld [vmem:[#allocation8 + $0x58] sm:$0xff]
    %v76 = vld [vmem:[#allocation8 + $0x60] sm:$0xff]
    %v77 = vld [vmem:[#allocation8 + $0x68] sm:$0xff]
    %v78 = vld [vmem:[#allocation8 + $0x70] sm:$0xff]
    %v79 = vld [vmem:[#allocation8 + $0x78] sm:$0xff]
    %v80 = vld [vmem:[#allocation8 + $0x80] sm:$0xff]
    %v81 = vld [vmem:[#allocation8 + $0x88] sm:$0xff]
    %v82 = vld [vmem:[#allocation8 + $0x90] sm:$0xff]
    %v83 = vld [vmem:[#allocation8 + $0x98] sm:$0xff]
    %v84 = vld [vmem:[#allocation8 + $0xa0] sm:$0xff]
    %v85 = vld [vmem:[#allocation8 + $0xa8] sm:$0xff]
    %v86 = vld [vmem:[#allocation8 + $0xb0] sm:$0xff]
    %v87 = vld [vmem:[#allocation8 + $0xb8] sm:$0xff]
    %v88 = vld [vmem:[#allocation8 + $0xc0] sm:$0xff]
    %v89 = vld [vmem:[#allocation8 + $0xc8] sm:$0xff]
    %v90 = vld [vmem:[#allocation8 + $0xd0] sm:$0xff]
    %v91 = vld [vmem:[#allocation8 + $0xd8] sm:$0xff]
    %v92 = vld [vmem:[#allocation8 + $0xe0] sm:$0xff]
    %v93 = vld [vmem:[#allocation8 + $0xe8] sm:$0xff]
    %v94 = vld [vmem:[#allocation8 + $0xf0] sm:$0xff]
    %v95 = vld [vmem:[#allocation8 + $0xf8] sm:$0xff]
    %v96 = vld [vmem:[#allocation8 + $0x100] sm:$0xff]
    %v97 = vld [vmem:[#allocation8 + $0x108] sm:$0xff]
    %v98 = vld [vmem:[#allocation8 + $0x110] sm:$0xff]
    %v99 = vld [vmem:[#allocation8 + $0x118] sm:$0xff]
    %v100 = vld [vmem:[#allocation8 + $0x120] sm:$0xff]
    %v101 = vld [vmem:[#allocation8 + $0x128] sm:$0xff]
    %v102 = vld [vmem:[#allocation8 + $0x130] sm:$0xff]
    %v103 = vld [vmem:[#allocation8 + $0x138] sm:$0xff]
    %v104 = vld [vmem:[#allocation8 + $0x140] sm:$0xff]
    %v105 = vld [vmem:[#allocation8 + $0x148] sm:$0xff]
    %v106 = vld [vmem:[#allocation8 + $0x150] sm:$0xff]
    %v107 = vld [vmem:[#allocation8 + $0x158] sm:$0xff]
    %v108 = vld [vmem:[#allocation8 + $0x160] sm:$0xff]
    %v109 = vld [vmem:[#allocation8 + $0x168] sm:$0xff]
    %v110 = vld [vmem:[#allocation8 + $0x170] sm:$0xff]
    %v111 = vld [vmem:[#allocation8 + $0x178] sm:$0xff]
    %v112 = vld [vmem:[#allocation8 + $0x180] sm:$0xff]
    %v113 = vld [vmem:[#allocation8 + $0x188] sm:$0xff]
    %v114 = vld [vmem:[#allocation8 + $0x190] sm:$0xff]
    %v115 = vld [vmem:[#allocation8 + $0x198] sm:$0xff]
    %v116 = vld [vmem:[#allocation8 + $0x1a0] sm:$0xff]
    %v117 = vld [vmem:[#allocation8 + $0x1a8] sm:$0xff]
    %v118 = vld [vmem:[#allocation8 + $0x1b0] sm:$0xff]
    %v119 = vld [vmem:[#allocation8 + $0x1b8] sm:$0xff]
    %v120 = vld [vmem:[#allocation8 + $0x1c0] sm:$0xff]
    %v121 = vld [vmem:[#allocation8 + $0x1c8] sm:$0xff]
    %v122 = vld [vmem:[#allocation8 + $0x1d0] sm:$0xff]
    %v123 = vld [vmem:[#allocation8 + $0x1d8] sm:$0xff]
    %v124 = vld [vmem:[#allocation8 + $0x1e0] sm:$0xff]
    %v125 = vld [vmem:[#allocation8 + $0x1e8] sm:$0xff]
    %v126 = vld [vmem:[#allocation8 + $0x1f0] sm:$0xff]
    %v127 = vld [vmem:[#allocation8 + $0x1f8] sm:$0xff]
    %v128 = vld [vmem:[#allocation8 + $0x200] sm:$0xff]
    %v129 = vld [vmem:[#allocation8 + $0x208] sm:$0xff]
    %v130 = vld [vmem:[#allocation8 + $0x210] sm:$0xff]
    %v131 = vld [vmem:[#allocation8 + $0x218] sm:$0xff]
    %v132 = vld [vmem:[#allocation8 + $0x220] sm:$0xff]
    %v133 = vld [vmem:[#allocation8 + $0x228] sm:$0xff]
    %v134 = vld [vmem:[#allocation8 + $0x230] sm:$0xff]
    %v135 = vld [vmem:[#allocation8 + $0x238] sm:$0xff]
    %v136 = vld [vmem:[#allocation8 + $0x240] sm:$0xff]
    %v137 = vld [vmem:[#allocation8 + $0x248] sm:$0xff]
    %v138 = vld [vmem:[#allocation8 + $0x250] sm:$0xff]
    %v139 = vld [vmem:[#allocation8 + $0x258] sm:$0xff]
    %v140 = vld [vmem:[#allocation8 + $0x260] sm:$0xff]
    %v141 = vld [vmem:[#allocation8 + $0x268] sm:$0xff]
    %v142 = vld [vmem:[#allocation8 + $0x270] sm:$0xff]
    %v143 = vld [vmem:[#allocation8 + $0x278] sm:$0xff]
    %v144 = vld [vmem:[#allocation8 + $0x280] sm:$0xff]
    %v145 = vld [vmem:[#allocation8 + $0x288] sm:$0xff]
    %v146 = vld [vmem:[#allocation8 + $0x290] sm:$0xff]
    %v147 = vld [vmem:[#allocation8 + $0x298] sm:$0xff]
    %v148 = vld [vmem:[#allocation8 + $0x2a0] sm:$0xff]
    %v149 = vld [vmem:[#allocation8 + $0x2a8] sm:$0xff]
    %v150 = vld [vmem:[#allocation8 + $0x2b0] sm:$0xff]
    %v151 = vld [vmem:[#allocation8 + $0x2b8] sm:$0xff]
    %v152 = vld [vmem:[#allocation8 + $0x2c0] sm:$0xff]
    %v153 = vld [vmem:[#allocation8 + $0x2c8] sm:$0xff]
    %v154 = vld [vmem:[#allocation8 + $0x2d0] sm:$0xff]
    %v155 = vld [vmem:[#allocation8 + $0x2d8] sm:$0xff]
    %v156 = vld [vmem:[#allocation8 + $0x2e0] sm:$0xff]
    %v157 = vld [vmem:[#allocation8 + $0x2e8] sm:$0xff]
    %v158 = vld [vmem:[#allocation8 + $0x2f0] sm:$0xff]
    %v159 = vld [vmem:[#allocation8 + $0x2f8] sm:$0xff]
    %v160 = vld [vmem:[#allocation8 + $0x300] sm:$0xff]
    %v161 = vld [vmem:[#allocation8 + $0x308] sm:$0xff]
    %v162 = vld [vmem:[#allocation8 + $0x310] sm:$0xff]
    %v163 = vld [vmem:[#allocation8 + $0x318] sm:$0xff]
    %v164 = vld [vmem:[#allocation8 + $0x320] sm:$0xff]
    %v165 = vld [vmem:[#allocation8 + $0x328] sm:$0xff]
    %v166 = vld [vmem:[#allocation8 + $0x330] sm:$0xff]
    %v167 = vld [vmem:[#allocation8 + $0x338] sm:$0xff]
    %v168 = vld [vmem:[#allocation8 + $0x340] sm:$0xff]
    %v169 = vld [vmem:[#allocation8 + $0x348] sm:$0xff]
    %v170 = vld [vmem:[#allocation8 + $0x350] sm:$0xff]
    %v171 = vld [vmem:[#allocation8 + $0x358] sm:$0xff]
    %v172 = vld [vmem:[#allocation8 + $0x360] sm:$0xff]
    %v173 = vld [vmem:[#allocation8 + $0x368] sm:$0xff]
    %v174 = vld [vmem:[#allocation8 + $0x370] sm:$0xff]
    %v175 = vld [vmem:[#allocation8 + $0x378] sm:$0xff]
    %v176 = vld [vmem:[#allocation8 + $0x380] sm:$0xff]
    %v177 = vld [vmem:[#allocation8 + $0x388] sm:$0xff]
    %v178 = vld [vmem:[#allocation8 + $0x390] sm:$0xff]
    %v179 = vld [vmem:[#allocation8 + $0x398] sm:$0xff]
    %v180 = vld [vmem:[#allocation8 + $0x3a0] sm:$0xff]
    %v181 = vld [vmem:[#allocation8 + $0x3a8] sm:$0xff]
    %v182 = vld [vmem:[#allocation8 + $0x3b0] sm:$0xff]
    %v183 = vld [vmem:[#allocation8 + $0x3b8] sm:$0xff]
    %v184 = vld [vmem:[#allocation8 + $0x3c0] sm:$0xff]
    %v185 = vld [vmem:[#allocation8 + $0x3c8] sm:$0xff]
    %v186 = vld [vmem:[#allocation8 + $0x3d0] sm:$0xff]
    %v187 = vld [vmem:[#allocation8 + $0x3d8] sm:$0xff]
    %v188 = vld [vmem:[#allocation8 + $0x3e0] sm:$0xff]
    %v189 = vld [vmem:[#allocation8 + $0x3e8] sm:$0xff]
    %v190 = vld [vmem:[#allocation8 + $0x3f0] sm:$0xff]
    %v191 = vld [vmem:[#allocation8 + $0x3f8] sm:$0xff]
    %v192 = vld [vmem:[#allocation8 + $0x400] sm:$0xff]
    %v193 = vld [vmem:[#allocation8 + $0x408] sm:$0xff]
    %v194 = vld [vmem:[#allocation8 + $0x410] sm:$0xff]
    %v195 = vld [vmem:[#allocation8 + $0x418] sm:$0xff]
    %v196 = vld [vmem:[#allocation8 + $0x420] sm:$0xff]
    %v197 = vld [vmem:[#allocation8 + $0x428] sm:$0xff]
    %v198 = vld [vmem:[#allocation8 + $0x430] sm:$0xff]
    %v199 = vld [vmem:[#allocation8 + $0x438] sm:$0xff]
    %v200 = vld [vmem:[#allocation8 + $0x440] sm:$0xff]
    %v201 = vld [vmem:[#allocation8 + $0x448] sm:$0xff]
    %v202 = vld [vmem:[#allocation8 + $0x450] sm:$0xff]
    %v203 = vld [vmem:[#allocation8 + $0x458] sm:$0xff]
    %v204 = vld [vmem:[#allocation8 + $0x460] sm:$0xff]
    %v205 = vld [vmem:[#allocation8 + $0x468] sm:$0xff]
    %v206 = vld [vmem:[#allocation8 + $0x470] sm:$0xff]
    %v207 = vld [vmem:[#allocation8 + $0x478] sm:$0xff]
    %v208 = vld [vmem:[%s3] sm:$0xff]
    %v209 = vld [vmem:[%s3 + $0x8] sm:$0x1]
    %v210 = vld [vmem:[%s4] sm:$0x7]
    %211 = vst [vmem:[#allocation2] sm:$0xff] 0.0
    %212 = vst [vmem:[#allocation2 + $0x8] sm:$0xff] 0.0
    %v213 = vld [vmem:[#allocation6] sm:$0xff]
    %v214 = vld [vmem:[#allocation6 + $0x8] sm:$0xff]
    %vm215 = vcmask 261120
    %216 = vst.msk [vmem:[#allocation2] sm:$0xff] %vm215, %v213
    %217 = vst.msk [vmem:[#allocation2 + $0x8] sm:$0xff] %vm215, %v214
    %v218 = vld [vmem:[#allocation2] sm:$0xff]
    %v219 = vld [vmem:[#allocation2 + $0x8] sm:$0xff]
    %v222 = vlaneseq
    %v223 = vshrl.u32 %v222, 7
    %v224 = vsub.s32 0, %v223
    %v225 = vrot.slane %v208, %v224
    %v226 = vlaneseq
    %v227 = vshrl.u32 %v226, 7
    %v228 = vsub.s32 1, %v227
    %v229 = vrot.slane %v208, %v228
    %v230 = vlaneseq
    %v231 = vshrl.u32 %v230, 7
    %v232 = vsub.s32 2, %v231
    %v233 = vrot.slane %v208, %v232
    %v234 = vlaneseq
    %v235 = vshrl.u32 %v234, 7
    %v236 = vsub.s32 3, %v235
    %v237 = vrot.slane %v208, %v236
    %v238 = vlaneseq
    %v239 = vshrl.u32 %v238, 7
    %v240 = vsub.s32 4, %v239
    %v241 = vrot.slane %v208, %v240
    %v242 = vlaneseq
    %v243 = vshrl.u32 %v242, 7
    %v244 = vsub.s32 5, %v243
    %v245 = vrot.slane %v208, %v244
    %v246 = vlaneseq
    %v247 = vshrl.u32 %v246, 7
    %v248 = vsub.s32 6, %v247
    %v249 = vrot.slane %v208, %v248
    %v250 = vlaneseq
    %v251 = vshrl.u32 %v250, 7
    %v252 = vsub.s32 7, %v251
    %v253 = vrot.slane %v208, %v252
    %v254 = vlaneseq
    %v255 = vshrl.u32 %v254, 7
    %v256 = vsub.s32 0, %v255
    %v257 = vrot.slane %v209, %v256
    %267 = vmatprep.subr.mxu0 %v65
    %268 = vmatpush1.msra.mxu0 %v64
    %269 = vmatprep.subr.mxu0 %v74
    %270 = vmatpush1.msra.mxu0 %v73
    %271 = vmatprep.subr.mxu0 %v83
    %272 = vmatpush1.msra.mxu0 %v82
    %273 = vmatprep.subr.mxu0 %v92
    %274 = vmatpush1.msra.mxu0 %v91
    %275 = vmatprep.subr.mxu0 %v101
    %276 = vmatpush1.msra.mxu0 %v100
    %277 = vmatprep.subr.mxu0 %v110
    %278 = vmatpush1.msra.mxu0 %v109
    %279 = vmatprep.subr.mxu0 %v119
    %280 = vmatpush1.msra.mxu0 %v118
    %281 = vmatprep.subr.mxu0 %v128
    %282 = vmatpush1.msra.mxu0 %v127
    %283 = vmatprep.subr.mxu0 %v137
    %284 = vmatpush1.msra.mxu0 %v136
    %285 = vmatprep.subr.mxu0 %v146
    %286 = vmatpush1.msra.mxu0 %v145
    %287 = vmatprep.subr.mxu0 %v155
    %288 = vmatpush1.msra.mxu0 %v154
    %289 = vmatprep.subr.mxu0 %v164
    %290 = vmatpush1.msra.mxu0 %v163
    %291 = vmatprep.subr.mxu0 %v173
    %292 = vmatpush1.msra.mxu0 %v172
    %293 = vmatprep.subr.mxu0 %v182
    %294 = vmatpush1.msra.mxu0 %v181
    %295 = vmatprep.subr.mxu0 %v191
    %296 = vmatpush1.msra.mxu0 %v190
    %297 = vmatprep.subr.mxu0 %v200
    %298 = vmatpush1.msra.mxu0 %v199
    %299 = vmatprep.subr.mxu0 0.0
    %300 = vmatpush1.msra.mxu0 0.0
    %301 = vmatprep.subr.mxu0 0.0
    %302 = vmatpush1.msra.mxu0 0.0
    %303 = vmatprep.subr.mxu0 0.0
    %304 = vmatpush1.msra.mxu0 0.0
    %305 = vmatprep.subr.mxu0 0.0
    %306 = vmatpush1.msra.mxu0 0.0
    %307 = vmatprep.subr.mxu0 0.0
    %308 = vmatpush1.msra.mxu0 0.0
    %309 = vmatprep.subr.mxu0 0.0
    %310 = vmatpush1.msra.mxu0 0.0
    %311 = vmatprep.subr.mxu0 0.0
    %312 = vmatpush1.msra.mxu0 0.0
    %313 = vmatprep.subr.mxu0 0.0
    %314 = vmatpush1.msra.mxu0 0.0
    %315 = vmatprep.subr.mxu0 0.0
    %316 = vmatpush1.msra.mxu0 0.0
    %317 = vmatprep.subr.mxu0 0.0
    %318 = vmatpush1.msra.mxu0 0.0
    %319 = vmatprep.subr.mxu0 0.0
    %320 = vmatpush1.msra.mxu0 0.0
    %321 = vmatprep.subr.mxu0 0.0
    %322 = vmatpush1.msra.mxu0 0.0
    %323 = vmatprep.subr.mxu0 0.0
    %324 = vmatpush1.msra.mxu0 0.0
    %325 = vmatprep.subr.mxu0 0.0
    %326 = vmatpush1.msra.mxu0 0.0
    %327 = vmatprep.subr.mxu0 0.0
    %328 = vmatpush1.msra.mxu0 0.0
    %329 = vmatprep.subr.mxu0 0.0
    %330 = vmatpush1.msra.mxu0 0.0
    %331 = vmatprep.mubr.f32.mxu0 0.0
    %332 = vmatmul.mubr.f32.gmra.mrb[0].mxu0 %v218
    %v333 = vpop.f32.mrb[0].mxu0
    %v334 = vadd.f32 %v225, %v333
    %v335 = vpop.f32.mrb[0].mxu0
    %v336 = vadd.f32 %v229, %v335
    %337 = vmatprep.mubr.f32.mxu0 0.0
    %338 = vmatmul.mubr.f32.gmra.mrb[0].mxu0 %v219
    %v339 = vpop.f32.mrb[0].mxu0
    %v340 = vadd.f32 %v225, %v339
    %v341 = vpop.f32.mrb[0].mxu0
    %v342 = vadd.f32 %v229, %v341
    %343 = vdwg.mxu0
    %344 = vmatprep.subr.mxu0 %v67
    %345 = vmatpush1.msra.mxu0 %v66
    %346 = vmatprep.subr.mxu0 %v76
    %347 = vmatpush1.msra.mxu0 %v75
    %348 = vmatprep.subr.mxu0 %v85
    %349 = vmatpush1.msra.mxu0 %v84
    %350 = vmatprep.subr.mxu0 %v94
    %351 = vmatpush1.msra.mxu0 %v93
    %352 = vmatprep.subr.mxu0 %v103
    %353 = vmatpush1.msra.mxu0 %v102
    %354 = vmatprep.subr.mxu0 %v112
    %355 = vmatpush1.msra.mxu0 %v111
    %356 = vmatprep.subr.mxu0 %v121
    %357 = vmatpush1.msra.mxu0 %v120
    %358 = vmatprep.subr.mxu0 %v130
    %359 = vmatpush1.msra.mxu0 %v129
    %360 = vmatprep.subr.mxu0 %v139
    %361 = vmatpush1.msra.mxu0 %v138
    %362 = vmatprep.subr.mxu0 %v148
    %363 = vmatpush1.msra.mxu0 %v147
    %364 = vmatprep.subr.mxu0 %v157
    %365 = vmatpush1.msra.mxu0 %v156
    %366 = vmatprep.subr.mxu0 %v166
    %367 = vmatpush1.msra.mxu0 %v165
    %368 = vmatprep.subr.mxu0 %v175
    %369 = vmatpush1.msra.mxu0 %v174
    %370 = vmatprep.subr.mxu0 %v184
    %371 = vmatpush1.msra.mxu0 %v183
    %372 = vmatprep.subr.mxu0 %v193
    %373 = vmatpush1.msra.mxu0 %v192
    %374 = vmatprep.subr.mxu0 %v202
    %375 = vmatpush1.msra.mxu0 %v201
    %376 = vmatprep.subr.mxu0 0.0
    %377 = vmatpush1.msra.mxu0 0.0
    %378 = vmatprep.subr.mxu0 0.0
    %379 = vmatpush1.msra.mxu0 0.0
    %380 = vmatprep.subr.mxu0 0.0
    %381 = vmatpush1.msra.mxu0 0.0
    %382 = vmatprep.subr.mxu0 0.0
    %383 = vmatpush1.msra.mxu0 0.0
    %384 = vmatprep.subr.mxu0 0.0
    %385 = vmatpush1.msra.mxu0 0.0
    %386 = vmatprep.subr.mxu0 0.0
    %387 = vmatpush1.msra.mxu0 0.0
    %388 = vmatprep.subr.mxu0 0.0
    %389 = vmatpush1.msra.mxu0 0.0
    %390 = vmatprep.subr.mxu0 0.0
    %391 = vmatpush1.msra.mxu0 0.0
    %392 = vmatprep.subr.mxu0 0.0
    %393 = vmatpush1.msra.mxu0 0.0
    %394 = vmatprep.subr.mxu0 0.0
    %395 = vmatpush1.msra.mxu0 0.0
    %396 = vmatprep.subr.mxu0 0.0
    %397 = vmatpush1.msra.mxu0 0.0
    %398 = vmatprep.subr.mxu0 0.0
    %399 = vmatpush1.msra.mxu0 0.0
    %400 = vmatprep.subr.mxu0 0.0
    %401 = vmatpush1.msra.mxu0 0.0
    %402 = vmatprep.subr.mxu0 0.0
    %403 = vmatpush1.msra.mxu0 0.0
    %404 = vmatprep.subr.mxu0 0.0
    %405 = vmatpush1.msra.mxu0 0.0
    %406 = vmatprep.subr.mxu0 0.0
    %407 = vmatpush1.msra.mxu0 0.0
    %408 = vmatprep.mubr.f32.mxu0 0.0
    %409 = vmatmul.mubr.f32.gmra.mrb[0].mxu0 %v218
    %v410 = vpop.f32.mrb[0].mxu0
    %v411 = vadd.f32 %v233, %v410
    %v412 = vpop.f32.mrb[0].mxu0
    %v413 = vadd.f32 %v237, %v412
    %414 = vmatprep.mubr.f32.mxu0 0.0
    %415 = vmatmul.mubr.f32.gmra.mrb[0].mxu0 %v219
    %v416 = vpop.f32.mrb[0].mxu0
    %v417 = vadd.f32 %v233, %v416
    %v418 = vpop.f32.mrb[0].mxu0
    %v419 = vadd.f32 %v237, %v418
    %420 = vdwg.mxu0
    %421 = vmatprep.subr.mxu0 %v69
    %422 = vmatpush1.msra.mxu0 %v68
    %423 = vmatprep.subr.mxu0 %v78
    %424 = vmatpush1.msra.mxu0 %v77
    %425 = vmatprep.subr.mxu0 %v87
    %426 = vmatpush1.msra.mxu0 %v86
    %427 = vmatprep.subr.mxu0 %v96
    %428 = vmatpush1.msra.mxu0 %v95
    %429 = vmatprep.subr.mxu0 %v105
    %430 = vmatpush1.msra.mxu0 %v104
    %431 = vmatprep.subr.mxu0 %v114
    %432 = vmatpush1.msra.mxu0 %v113
    %433 = vmatprep.subr.mxu0 %v123
    %434 = vmatpush1.msra.mxu0 %v122
    %435 = vmatprep.subr.mxu0 %v132
    %436 = vmatpush1.msra.mxu0 %v131
    %437 = vmatprep.subr.mxu0 %v141
    %438 = vmatpush1.msra.mxu0 %v140
    %439 = vmatprep.subr.mxu0 %v150
    %440 = vmatpush1.msra.mxu0 %v149
    %441 = vmatprep.subr.mxu0 %v159
    %442 = vmatpush1.msra.mxu0 %v158
    %443 = vmatprep.subr.mxu0 %v168
    %444 = vmatpush1.msra.mxu0 %v167
    %445 = vmatprep.subr.mxu0 %v177
    %446 = vmatpush1.msra.mxu0 %v176
    %447 = vmatprep.subr.mxu0 %v186
    %448 = vmatpush1.msra.mxu0 %v185
    %449 = vmatprep.subr.mxu0 %v195
    %450 = vmatpush1.msra.mxu0 %v194
    %451 = vmatprep.subr.mxu0 %v204
    %452 = vmatpush1.msra.mxu0 %v203
    %453 = vmatprep.subr.mxu0 0.0
    %454 = vmatpush1.msra.mxu0 0.0
    %455 = vmatprep.subr.mxu0 0.0
    %456 = vmatpush1.msra.mxu0 0.0
    %457 = vmatprep.subr.mxu0 0.0
    %458 = vmatpush1.msra.mxu0 0.0
    %459 = vmatprep.subr.mxu0 0.0
    %460 = vmatpush1.msra.mxu0 0.0
    %461 = vmatprep.subr.mxu0 0.0
    %462 = vmatpush1.msra.mxu0 0.0
    %463 = vmatprep.subr.mxu0 0.0
    %464 = vmatpush1.msra.mxu0 0.0
    %465 = vmatprep.subr.mxu0 0.0
    %466 = vmatpush1.msra.mxu0 0.0
    %467 = vmatprep.subr.mxu0 0.0
    %468 = vmatpush1.msra.mxu0 0.0
    %469 = vmatprep.subr.mxu0 0.0
    %470 = vmatpush1.msra.mxu0 0.0
    %471 = vmatprep.subr.mxu0 0.0
    %472 = vmatpush1.msra.mxu0 0.0
    %473 = vmatprep.subr.mxu0 0.0
    %474 = vmatpush1.msra.mxu0 0.0
    %475 = vmatprep.subr.mxu0 0.0
    %476 = vmatpush1.msra.mxu0 0.0
    %477 = vmatprep.subr.mxu0 0.0
    %478 = vmatpush1.msra.mxu0 0.0
    %479 = vmatprep.subr.mxu0 0.0
    %480 = vmatpush1.msra.mxu0 0.0
    %481 = vmatprep.subr.mxu0 0.0
    %482 = vmatpush1.msra.mxu0 0.0
    %483 = vmatprep.subr.mxu0 0.0
    %484 = vmatpush1.msra.mxu0 0.0
    %485 = vmatprep.mubr.f32.mxu0 0.0
    %486 = vmatmul.mubr.f32.gmra.mrb[0].mxu0 %v218
    %v487 = vpop.f32.mrb[0].mxu0
    %v488 = vadd.f32 %v241, %v487
    %v489 = vpop.f32.mrb[0].mxu0
    %v490 = vadd.f32 %v245, %v489
    %491 = vmatprep.mubr.f32.mxu0 0.0
    %492 = vmatmul.mubr.f32.gmra.mrb[0].mxu0 %v219
    %v493 = vpop.f32.mrb[0].mxu0
    %v494 = vadd.f32 %v241, %v493
    %v495 = vpop.f32.mrb[0].mxu0
    %v496 = vadd.f32 %v245, %v495
    %497 = vdwg.mxu0
    %498 = vmatprep.subr.mxu0 %v71
    %499 = vmatpush1.msra.mxu0 %v70
    %500 = vmatprep.subr.mxu0 %v80
    %501 = vmatpush1.msra.mxu0 %v79
    %502 = vmatprep.subr.mxu0 %v89
    %503 = vmatpush1.msra.mxu0 %v88
    %504 = vmatprep.subr.mxu0 %v98
    %505 = vmatpush1.msra.mxu0 %v97
    %506 = vmatprep.subr.mxu0 %v107
    %507 = vmatpush1.msra.mxu0 %v106
    %508 = vmatprep.subr.mxu0 %v116
    %509 = vmatpush1.msra.mxu0 %v115
    %510 = vmatprep.subr.mxu0 %v125
    %511 = vmatpush1.msra.mxu0 %v124
    %512 = vmatprep.subr.mxu0 %v134
    %513 = vmatpush1.msra.mxu0 %v133
    %514 = vmatprep.subr.mxu0 %v143
    %515 = vmatpush1.msra.mxu0 %v142
    %516 = vmatprep.subr.mxu0 %v152
    %517 = vmatpush1.msra.mxu0 %v151
    %518 = vmatprep.subr.mxu0 %v161
    %519 = vmatpush1.msra.mxu0 %v160
    %520 = vmatprep.subr.mxu0 %v170
    %521 = vmatpush1.msra.mxu0 %v169
    %522 = vmatprep.subr.mxu0 %v179
    %523 = vmatpush1.msra.mxu0 %v178
    %524 = vmatprep.subr.mxu0 %v188
    %525 = vmatpush1.msra.mxu0 %v187
    %526 = vmatprep.subr.mxu0 %v197
    %527 = vmatpush1.msra.mxu0 %v196
    %528 = vmatprep.subr.mxu0 %v206
    %529 = vmatpush1.msra.mxu0 %v205
    %530 = vmatprep.subr.mxu0 0.0
    %531 = vmatpush1.msra.mxu0 0.0
    %532 = vmatprep.subr.mxu0 0.0
    %533 = vmatpush1.msra.mxu0 0.0
    %534 = vmatprep.subr.mxu0 0.0
    %535 = vmatpush1.msra.mxu0 0.0
    %536 = vmatprep.subr.mxu0 0.0
    %537 = vmatpush1.msra.mxu0 0.0
    %538 = vmatprep.subr.mxu0 0.0
    %539 = vmatpush1.msra.mxu0 0.0
    %540 = vmatprep.subr.mxu0 0.0
    %541 = vmatpush1.msra.mxu0 0.0
    %542 = vmatprep.subr.mxu0 0.0
    %543 = vmatpush1.msra.mxu0 0.0
    %544 = vmatprep.subr.mxu0 0.0
    %545 = vmatpush1.msra.mxu0 0.0
    %546 = vmatprep.subr.mxu0 0.0
    %547 = vmatpush1.msra.mxu0 0.0
    %548 = vmatprep.subr.mxu0 0.0
    %549 = vmatpush1.msra.mxu0 0.0
    %550 = vmatprep.subr.mxu0 0.0
    %551 = vmatpush1.msra.mxu0 0.0
    %552 = vmatprep.subr.mxu0 0.0
    %553 = vmatpush1.msra.mxu0 0.0
    %554 = vmatprep.subr.mxu0 0.0
    %555 = vmatpush1.msra.mxu0 0.0
    %556 = vmatprep.subr.mxu0 0.0
    %557 = vmatpush1.msra.mxu0 0.0
    %558 = vmatprep.subr.mxu0 0.0
    %559 = vmatpush1.msra.mxu0 0.0
    %560 = vmatprep.subr.mxu0 0.0
    %561 = vmatpush1.msra.mxu0 0.0
    %562 = vmatprep.mubr.f32.mxu0 0.0
    %563 = vmatmul.mubr.f32.gmra.mrb[0].mxu0 %v218
    %v564 = vpop.f32.mrb[0].mxu0
    %v565 = vadd.f32 %v249, %v564
    %v566 = vpop.f32.mrb[0].mxu0
    %v567 = vadd.f32 %v253, %v566
    %568 = vmatprep.mubr.f32.mxu0 0.0
    %569 = vmatmul.mubr.f32.gmra.mrb[0].mxu0 %v219
    %v570 = vpop.f32.mrb[0].mxu0
    %v571 = vadd.f32 %v249, %v570
    %v572 = vpop.f32.mrb[0].mxu0
    %v573 = vadd.f32 %v253, %v572
    %574 = vdwg.mxu0
    %575 = vmatprep.subr.mxu0 0.0
    %576 = vmatpush1.msra.mxu0 %v72
    %577 = vmatprep.subr.mxu0 0.0
    %578 = vmatpush1.msra.mxu0 %v81
    %579 = vmatprep.subr.mxu0 0.0
    %580 = vmatpush1.msra.mxu0 %v90
    %581 = vmatprep.subr.mxu0 0.0
    %582 = vmatpush1.msra.mxu0 %v99
    %583 = vmatprep.subr.mxu0 0.0
    %584 = vmatpush1.msra.mxu0 %v108
    %585 = vmatprep.subr.mxu0 0.0
    %586 = vmatpush1.msra.mxu0 %v117
    %587 = vmatprep.subr.mxu0 0.0
    %588 = vmatpush1.msra.mxu0 %v126
    %589 = vmatprep.subr.mxu0 0.0
    %590 = vmatpush1.msra.mxu0 %v135
    %591 = vmatprep.subr.mxu0 0.0
    %592 = vmatpush1.msra.mxu0 %v144
    %593 = vmatprep.subr.mxu0 0.0
    %594 = vmatpush1.msra.mxu0 %v153
    %595 = vmatprep.subr.mxu0 0.0
    %596 = vmatpush1.msra.mxu0 %v162
    %597 = vmatprep.subr.mxu0 0.0
    %598 = vmatpush1.msra.mxu0 %v171
    %599 = vmatprep.subr.mxu0 0.0
    %600 = vmatpush1.msra.mxu0 %v180
    %601 = vmatprep.subr.mxu0 0.0
    %602 = vmatpush1.msra.mxu0 %v189
    %603 = vmatprep.subr.mxu0 0.0
    %604 = vmatpush1.msra.mxu0 %v198
    %605 = vmatprep.subr.mxu0 0.0
    %606 = vmatpush1.msra.mxu0 %v207
    %607 = vmatprep.subr.mxu0 0.0
    %608 = vmatpush1.msra.mxu0 0.0
    %609 = vmatprep.subr.mxu0 0.0
    %610 = vmatpush1.msra.mxu0 0.0
    %611 = vmatprep.subr.mxu0 0.0
    %612 = vmatpush1.msra.mxu0 0.0
    %613 = vmatprep.subr.mxu0 0.0
    %614 = vmatpush1.msra.mxu0 0.0
    %615 = vmatprep.subr.mxu0 0.0
    %616 = vmatpush1.msra.mxu0 0.0
    %617 = vmatprep.subr.mxu0 0.0
    %618 = vmatpush1.msra.mxu0 0.0
    %619 = vmatprep.subr.mxu0 0.0
    %620 = vmatpush1.msra.mxu0 0.0
    %621 = vmatprep.subr.mxu0 0.0
    %622 = vmatpush1.msra.mxu0 0.0
    %623 = vmatprep.subr.mxu0 0.0
    %624 = vmatpush1.msra.mxu0 0.0
    %625 = vmatprep.subr.mxu0 0.0
    %626 = vmatpush1.msra.mxu0 0.0
    %627 = vmatprep.subr.mxu0 0.0
    %628 = vmatpush1.msra.mxu0 0.0
    %629 = vmatprep.subr.mxu0 0.0
    %630 = vmatpush1.msra.mxu0 0.0
    %631 = vmatprep.subr.mxu0 0.0
    %632 = vmatpush1.msra.mxu0 0.0
    %633 = vmatprep.subr.mxu0 0.0
    %634 = vmatpush1.msra.mxu0 0.0
    %635 = vmatprep.subr.mxu0 0.0
    %636 = vmatpush1.msra.mxu0 0.0
    %637 = vmatprep.subr.mxu0 0.0
    %638 = vmatpush1.msra.mxu0 0.0
    %639 = vmatprep.mubr.f32.mxu0 0.0
    %640 = vmatmul.mubr.f32.gmra.mrb[0].mxu0 %v218
    %v641 = vpop.f32.mrb[0].mxu0
    %v642 = vadd.f32 %v257, %v641
    %v643 = vpop.f32.mrb[0].mxu0
    %644 = vmatprep.mubr.f32.mxu0 0.0
    %645 = vmatmul.mubr.f32.gmra.mrb[0].mxu0 %v219
    %v646 = vpop.f32.mrb[0].mxu0
    %v647 = vadd.f32 %v257, %v646
    %v648 = vpop.f32.mrb[0].mxu0
    %649 = vdwg.mxu0
    %vm650 = vcmask 130048
    %v652 = vsel %vm650, %v62, 0
    %654 = vmatprep.subr.mxu0 %v488
    %655 = vmatpush1.msra.mxu0 %v413
    %656 = vmatprep.subr.mxu0 %v567
    %657 = vmatpush1.msra.mxu0 %v565
    %658 = vmatprep.subr.mxu0 0.0
    %659 = vmatpush1.msra.mxu0 0.0
    %660 = vmatprep.subr.mxu0 0.0
    %661 = vmatpush1.msra.mxu0 0.0
    %662 = vmatprep.subr.mxu0 0.0
    %663 = vmatpush1.msra.mxu0 0.0
    %664 = vmatprep.subr.mxu0 0.0
    %665 = vmatpush1.msra.mxu0 0.0
    %666 = vmatprep.subr.mxu0 0.0
    %667 = vmatpush1.msra.mxu0 0.0
    %668 = vmatprep.subr.mxu0 0.0
    %669 = vmatpush1.msra.mxu0 0.0
    %670 = vmatprep.subr.mxu0 0.0
    %671 = vmatpush1.msra.mxu0 0.0
    %672 = vmatprep.subr.mxu0 0.0
    %673 = vmatpush1.msra.mxu0 0.0
    %674 = vmatprep.subr.mxu0 0.0
    %675 = vmatpush1.msra.mxu0 0.0
    %676 = vmatprep.subr.mxu0 0.0
    %677 = vmatpush1.msra.mxu0 0.0
    %678 = vmatprep.subr.mxu0 0.0
    %679 = vmatpush1.msra.mxu0 0.0
    %680 = vmatprep.subr.mxu0 0.0
    %681 = vmatpush1.msra.mxu0 0.0
    %682 = vmatprep.subr.mxu0 0.0
    %683 = vmatpush1.msra.mxu0 0.0
    %684 = vmatprep.subr.mxu0 0.0
    %685 = vmatpush1.msra.mxu0 0.0
    %686 = vmatprep.subr.mxu0 0.0
    %687 = vmatpush1.msra.mxu0 0.0
    %688 = vmatprep.subr.mxu0 0.0
    %689 = vmatpush1.msra.mxu0 0.0
    %690 = vmatprep.subr.mxu0 0.0
    %691 = vmatpush1.msra.mxu0 0.0
    %692 = vmatprep.subr.mxu0 0.0
    %693 = vmatpush1.msra.mxu0 0.0
    %694 = vmatprep.subr.mxu0 0.0
    %695 = vmatpush1.msra.mxu0 0.0
    %696 = vmatprep.subr.mxu0 0.0
    %697 = vmatpush1.msra.mxu0 0.0
    %698 = vmatprep.subr.mxu0 0.0
    %699 = vmatpush1.msra.mxu0 0.0
    %700 = vmatprep.subr.mxu0 0.0
    %701 = vmatpush1.msra.mxu0 0.0
    %702 = vmatprep.subr.mxu0 0.0
    %703 = vmatpush1.msra.mxu0 0.0
    %704 = vmatprep.subr.mxu0 0.0
    %705 = vmatpush1.msra.mxu0 0.0
    %706 = vmatprep.subr.mxu0 0.0
    %707 = vmatpush1.msra.mxu0 0.0
    %708 = vmatprep.subr.mxu0 0.0
    %709 = vmatpush1.msra.mxu0 0.0
    %710 = vmatprep.subr.mxu0 0.0
    %711 = vmatpush1.msra.mxu0 0.0
    %712 = vmatprep.subr.mxu0 0.0
    %713 = vmatpush1.msra.mxu0 0.0
    %714 = vmatprep.subr.mxu0 0.0
    %715 = vmatpush1.msra.mxu0 0.0
    %716 = vmatprep.subr.mxu0 0.0
    %717 = vmatpush1.msra.mxu0 0.0
    %718 = vmatprep.mubr.f32.mxu0 0.0
    %719 = vmatmul.mubr.f32.gmra.mrb[0].mxu0 %v652
    %v720 = vpop.f32.mrb[0].mxu0
    %v721 = vadd.f32 0.0, %v720
    %v722 = vpop.f32.mrb[0].mxu0
    %v723 = vadd.f32 0.0, %v722
    %724 = vdwg.mxu0
    %725 = vmatprep.subr.mxu0 0.0
    %726 = vmatpush1.msra.mxu0 %v490
    %727 = vmatprep.subr.mxu0 0.0
    %728 = vmatpush1.msra.mxu0 %v642
    %729 = vmatprep.subr.mxu0 0.0
    %730 = vmatpush1.msra.mxu0 0.0
    %731 = vmatprep.subr.mxu0 0.0
    %732 = vmatpush1.msra.mxu0 0.0
    %733 = vmatprep.subr.mxu0 0.0
    %734 = vmatpush1.msra.mxu0 0.0
    %735 = vmatprep.subr.mxu0 0.0
    %736 = vmatpush1.msra.mxu0 0.0
    %737 = vmatprep.subr.mxu0 0.0
    %738 = vmatpush1.msra.mxu0 0.0
    %739 = vmatprep.subr.mxu0 0.0
    %740 = vmatpush1.msra.mxu0 0.0
    %741 = vmatprep.subr.mxu0 0.0
    %742 = vmatpush1.msra.mxu0 0.0
    %743 = vmatprep.subr.mxu0 0.0
    %744 = vmatpush1.msra.mxu0 0.0
    %745 = vmatprep.subr.mxu0 0.0
    %746 = vmatpush1.msra.mxu0 0.0
    %747 = vmatprep.subr.mxu0 0.0
    %748 = vmatpush1.msra.mxu0 0.0
    %749 = vmatprep.subr.mxu0 0.0
    %750 = vmatpush1.msra.mxu0 0.0
    %751 = vmatprep.subr.mxu0 0.0
    %752 = vmatpush1.msra.mxu0 0.0
    %753 = vmatprep.subr.mxu0 0.0
    %754 = vmatpush1.msra.mxu0 0.0
    %755 = vmatprep.subr.mxu0 0.0
    %756 = vmatpush1.msra.mxu0 0.0
    %757 = vmatprep.subr.mxu0 0.0
    %758 = vmatpush1.msra.mxu0 0.0
    %759 = vmatprep.subr.mxu0 0.0
    %760 = vmatpush1.msra.mxu0 0.0
    %761 = vmatprep.subr.mxu0 0.0
    %762 = vmatpush1.msra.mxu0 0.0
    %763 = vmatprep.subr.mxu0 0.0
    %764 = vmatpush1.msra.mxu0 0.0
    %765 = vmatprep.subr.mxu0 0.0
    %766 = vmatpush1.msra.mxu0 0.0
    %767 = vmatprep.subr.mxu0 0.0
    %768 = vmatpush1.msra.mxu0 0.0
    %769 = vmatprep.subr.mxu0 0.0
    %770 = vmatpush1.msra.mxu0 0.0
    %771 = vmatprep.subr.mxu0 0.0
    %772 = vmatpush1.msra.mxu0 0.0
    %773 = vmatprep.subr.mxu0 0.0
    %774 = vmatpush1.msra.mxu0 0.0
    %775 = vmatprep.subr.mxu0 0.0
    %776 = vmatpush1.msra.mxu0 0.0
    %777 = vmatprep.subr.mxu0 0.0
    %778 = vmatpush1.msra.mxu0 0.0
    %779 = vmatprep.subr.mxu0 0.0
    %780 = vmatpush1.msra.mxu0 0.0
    %781 = vmatprep.subr.mxu0 0.0
    %782 = vmatpush1.msra.mxu0 0.0
    %783 = vmatprep.subr.mxu0 0.0
    %784 = vmatpush1.msra.mxu0 0.0
    %785 = vmatprep.subr.mxu0 0.0
    %786 = vmatpush1.msra.mxu0 0.0
    %787 = vmatprep.subr.mxu0 0.0
    %788 = vmatpush1.msra.mxu0 0.0
    %789 = vmatprep.mubr.f32.mxu0 0.0
    %790 = vmatmul.mubr.f32.gmra.mrb[0].mxu0 %v652
    %v791 = vpop.f32.mrb[0].mxu0
    %v792 = vadd.f32 0.0, %v791
    %v793 = vpop.f32.mrb[0].mxu0
    %794 = vdwg.mxu0
    %v796 = vsel %vm650, %v63, 0
    %798 = vmatprep.subr.mxu0 %v494
    %799 = vmatpush1.msra.mxu0 %v419
    %800 = vmatprep.subr.mxu0 %v573
    %801 = vmatpush1.msra.mxu0 %v571
    %802 = vmatprep.subr.mxu0 0.0
    %803 = vmatpush1.msra.mxu0 0.0
    %804 = vmatprep.subr.mxu0 0.0
    %805 = vmatpush1.msra.mxu0 0.0
    %806 = vmatprep.subr.mxu0 0.0
    %807 = vmatpush1.msra.mxu0 0.0
    %808 = vmatprep.subr.mxu0 0.0
    %809 = vmatpush1.msra.mxu0 0.0
    %810 = vmatprep.subr.mxu0 0.0
    %811 = vmatpush1.msra.mxu0 0.0
    %812 = vmatprep.subr.mxu0 0.0
    %813 = vmatpush1.msra.mxu0 0.0
    %814 = vmatprep.subr.mxu0 0.0
    %815 = vmatpush1.msra.mxu0 0.0
    %816 = vmatprep.subr.mxu0 0.0
    %817 = vmatpush1.msra.mxu0 0.0
    %818 = vmatprep.subr.mxu0 0.0
    %819 = vmatpush1.msra.mxu0 0.0
    %820 = vmatprep.subr.mxu0 0.0
    %821 = vmatpush1.msra.mxu0 0.0
    %822 = vmatprep.subr.mxu0 0.0
    %823 = vmatpush1.msra.mxu0 0.0
    %824 = vmatprep.subr.mxu0 0.0
    %825 = vmatpush1.msra.mxu0 0.0
    %826 = vmatprep.subr.mxu0 0.0
    %827 = vmatpush1.msra.mxu0 0.0
    %828 = vmatprep.subr.mxu0 0.0
    %829 = vmatpush1.msra.mxu0 0.0
    %830 = vmatprep.subr.mxu0 0.0
    %831 = vmatpush1.msra.mxu0 0.0
    %832 = vmatprep.subr.mxu0 0.0
    %833 = vmatpush1.msra.mxu0 0.0
    %834 = vmatprep.subr.mxu0 0.0
    %835 = vmatpush1.msra.mxu0 0.0
    %836 = vmatprep.subr.mxu0 0.0
    %837 = vmatpush1.msra.mxu0 0.0
    %838 = vmatprep.subr.mxu0 0.0
    %839 = vmatpush1.msra.mxu0 0.0
    %840 = vmatprep.subr.mxu0 0.0
    %841 = vmatpush1.msra.mxu0 0.0
    %842 = vmatprep.subr.mxu0 0.0
    %843 = vmatpush1.msra.mxu0 0.0
    %844 = vmatprep.subr.mxu0 0.0
    %845 = vmatpush1.msra.mxu0 0.0
    %846 = vmatprep.subr.mxu0 0.0
    %847 = vmatpush1.msra.mxu0 0.0
    %848 = vmatprep.subr.mxu0 0.0
    %849 = vmatpush1.msra.mxu0 0.0
    %850 = vmatprep.subr.mxu0 0.0
    %851 = vmatpush1.msra.mxu0 0.0
    %852 = vmatprep.subr.mxu0 0.0
    %853 = vmatpush1.msra.mxu0 0.0
    %854 = vmatprep.subr.mxu0 0.0
    %855 = vmatpush1.msra.mxu0 0.0
    %856 = vmatprep.subr.mxu0 0.0
    %857 = vmatpush1.msra.mxu0 0.0
    %858 = vmatprep.subr.mxu0 0.0
    %859 = vmatpush1.msra.mxu0 0.0
    %860 = vmatprep.subr.mxu0 0.0
    %861 = vmatpush1.msra.mxu0 0.0
    %862 = vmatprep.mubr.f32.mxu0 0.0
    %863 = vmatmul.mubr.f32.gmra.mrb[0].mxu0 %v796
    %v864 = vpop.f32.mrb[0].mxu0
    %v865 = vadd.f32 0.0, %v864
    %v866 = vpop.f32.mrb[0].mxu0
    %v867 = vadd.f32 0.0, %v866
    %868 = vdwg.mxu0
    %869 = vmatprep.subr.mxu0 0.0
    %870 = vmatpush1.msra.mxu0 %v496
    %871 = vmatprep.subr.mxu0 0.0
    %872 = vmatpush1.msra.mxu0 %v647
    %873 = vmatprep.subr.mxu0 0.0
    %874 = vmatpush1.msra.mxu0 0.0
    %875 = vmatprep.subr.mxu0 0.0
    %876 = vmatpush1.msra.mxu0 0.0
    %877 = vmatprep.subr.mxu0 0.0
    %878 = vmatpush1.msra.mxu0 0.0
    %879 = vmatprep.subr.mxu0 0.0
    %880 = vmatpush1.msra.mxu0 0.0
    %881 = vmatprep.subr.mxu0 0.0
    %882 = vmatpush1.msra.mxu0 0.0
    %883 = vmatprep.subr.mxu0 0.0
    %884 = vmatpush1.msra.mxu0 0.0
    %885 = vmatprep.subr.mxu0 0.0
    %886 = vmatpush1.msra.mxu0 0.0
    %887 = vmatprep.subr.mxu0 0.0
    %888 = vmatpush1.msra.mxu0 0.0
    %889 = vmatprep.subr.mxu0 0.0
    %890 = vmatpush1.msra.mxu0 0.0
    %891 = vmatprep.subr.mxu0 0.0
    %892 = vmatpush1.msra.mxu0 0.0
    %893 = vmatprep.subr.mxu0 0.0
    %894 = vmatpush1.msra.mxu0 0.0
    %895 = vmatprep.subr.mxu0 0.0
    %896 = vmatpush1.msra.mxu0 0.0
    %897 = vmatprep.subr.mxu0 0.0
    %898 = vmatpush1.msra.mxu0 0.0
    %899 = vmatprep.subr.mxu0 0.0
    %900 = vmatpush1.msra.mxu0 0.0
    %901 = vmatprep.subr.mxu0 0.0
    %902 = vmatpush1.msra.mxu0 0.0
    %903 = vmatprep.subr.mxu0 0.0
    %904 = vmatpush1.msra.mxu0 0.0
    %905 = vmatprep.subr.mxu0 0.0
    %906 = vmatpush1.msra.mxu0 0.0
    %907 = vmatprep.subr.mxu0 0.0
    %908 = vmatpush1.msra.mxu0 0.0
    %909 = vmatprep.subr.mxu0 0.0
    %910 = vmatpush1.msra.mxu0 0.0
    %911 = vmatprep.subr.mxu0 0.0
    %912 = vmatpush1.msra.mxu0 0.0
    %913 = vmatprep.subr.mxu0 0.0
    %914 = vmatpush1.msra.mxu0 0.0
    %915 = vmatprep.subr.mxu0 0.0
    %916 = vmatpush1.msra.mxu0 0.0
    %917 = vmatprep.subr.mxu0 0.0
    %918 = vmatpush1.msra.mxu0 0.0
    %919 = vmatprep.subr.mxu0 0.0
    %920 = vmatpush1.msra.mxu0 0.0
    %921 = vmatprep.subr.mxu0 0.0
    %922 = vmatpush1.msra.mxu0 0.0
    %923 = vmatprep.subr.mxu0 0.0
    %924 = vmatpush1.msra.mxu0 0.0
    %925 = vmatprep.subr.mxu0 0.0
    %926 = vmatpush1.msra.mxu0 0.0
    %927 = vmatprep.subr.mxu0 0.0
    %928 = vmatpush1.msra.mxu0 0.0
    %929 = vmatprep.subr.mxu0 0.0
    %930 = vmatpush1.msra.mxu0 0.0
    %931 = vmatprep.subr.mxu0 0.0
    %932 = vmatpush1.msra.mxu0 0.0
    %933 = vmatprep.mubr.f32.mxu0 0.0
    %934 = vmatmul.mubr.f32.gmra.mrb[0].mxu0 %v796
    %v935 = vpop.f32.mrb[0].mxu0
    %v936 = vadd.f32 0.0, %v935
    %v937 = vpop.f32.mrb[0].mxu0
    %938 = vdwg.mxu0
    %v940 = vlaneseq
    %v941 = vshrl.u32 %v940, 7
    %v942 = vsub.s32 0, %v941
    %v943 = vrot.slane %v210, %v942
    %v944 = vlaneseq
    %v945 = vshrl.u32 %v944, 7
    %v946 = vsub.s32 1, %v945
    %v947 = vrot.slane %v210, %v946
    %v948 = vlaneseq
    %v949 = vshrl.u32 %v948, 7
    %v950 = vsub.s32 2, %v949
    %v951 = vrot.slane %v210, %v950
    %v955 = vadd.f32 %v721, %v943
    %v956 = vadd.f32 %v723, %v947
    %v957 = vadd.f32 %v792, %v951
    %v958 = vadd.f32 %v865, %v943
    %v959 = vadd.f32 %v867, %v947
    %v960 = vadd.f32 %v936, %v951
    %v961 = vadd.f32 %v955, %v334
    %v962 = vadd.f32 %v958, %v340
    %v963 = vxor.u32 %v961, 2147483648
    %v964 = vxor.u32 %v962, 2147483648
    %v965 = vmul.f32 %v963, 1.442695
    %v966 = vpow.pop %v965
    %v967 = vmul.f32 %v964, 1.442695
    %v968 = vpow.pop %v967
    %v969 = vadd.f32 %v966, 1.0
    %v970 = vadd.f32 %v968, 1.0
    %v971 = vrcp.pop %v969
    %v972 = vmul.f32 1.0, %v971
    %v973 = vrcp.pop %v970
    %v974 = vmul.f32 1.0, %v973
    %v975 = vadd.f32 %v956, %v336
    %v976 = vadd.f32 %v959, %v342
    %v977 = vxor.u32 %v975, 2147483648
    %v978 = vxor.u32 %v976, 2147483648
    %v979 = vmul.f32 %v977, 1.442695
    %v980 = vpow.pop %v979
    %v981 = vmul.f32 %v978, 1.442695
    %v982 = vpow.pop %v981
    %v983 = vadd.f32 %v980, 1.0
    %v984 = vadd.f32 %v982, 1.0
    %v985 = vrcp.pop %v983
    %v986 = vmul.f32 1.0, %v985
    %v987 = vrcp.pop %v984
    %v988 = vmul.f32 1.0, %v987
    %v989 = vmul.f32 %v972, %v411
    %v990 = vmul.f32 %v974, %v417
    %v991 = vadd.f32 %v957, %v989
    %v992 = vadd.f32 %v960, %v990
    %v993 = vtanh.pop %v991
    %v994 = vtanh.pop %v992
    %v995 = vsub.f32 %v218, %v993
    %v996 = vsub.f32 %v219, %v994
    %v997 = vmul.f32 %v986, %v995
    %v998 = vmul.f32 %v988, %v996
    %v999 = vadd.f32 %v993, %v997
    %v1000 = vadd.f32 %v994, %v998
    %1001 = vmatprep.subr.mxu0 %v65
    %1002 = vmatpush1.msra.mxu0 %v64
    %1003 = vmatprep.subr.mxu0 %v74
    %1004 = vmatpush1.msra.mxu0 %v73
    %1005 = vmatprep.subr.mxu0 %v83
    %1006 = vmatpush1.msra.mxu0 %v82
    %1007 = vmatprep.subr.mxu0 %v92
    %1008 = vmatpush1.msra.mxu0 %v91
    %1009 = vmatprep.subr.mxu0 %v101
    %1010 = vmatpush1.msra.mxu0 %v100
    %1011 = vmatprep.subr.mxu0 %v110
    %1012 = vmatpush1.msra.mxu0 %v109
    %1013 = vmatprep.subr.mxu0 %v119
    %1014 = vmatpush1.msra.mxu0 %v118
    %1015 = vmatprep.subr.mxu0 %v128
    %1016 = vmatpush1.msra.mxu0 %v127
    %1017 = vmatprep.subr.mxu0 %v137
    %1018 = vmatpush1.msra.mxu0 %v136
    %1019 = vmatprep.subr.mxu0 %v146
    %1020 = vmatpush1.msra.mxu0 %v145
    %1021 = vmatprep.subr.mxu0 %v155
    %1022 = vmatpush1.msra.mxu0 %v154
    %1023 = vmatprep.subr.mxu0 %v164
    %1024 = vmatpush1.msra.mxu0 %v163
    %1025 = vmatprep.subr.mxu0 %v173
    %1026 = vmatpush1.msra.mxu0 %v172
    %1027 = vmatprep.subr.mxu0 %v182
    %1028 = vmatpush1.msra.mxu0 %v181
    %1029 = vmatprep.subr.mxu0 %v191
    %1030 = vmatpush1.msra.mxu0 %v190
    %1031 = vmatprep.subr.mxu0 %v200
    %1032 = vmatpush1.msra.mxu0 %v199
    %1033 = vmatprep.subr.mxu0 0.0
    %1034 = vmatpush1.msra.mxu0 0.0
    %1035 = vmatprep.subr.mxu0 0.0
    %1036 = vmatpush1.msra.mxu0 0.0
    %1037 = vmatprep.subr.mxu0 0.0
    %1038 = vmatpush1.msra.mxu0 0.0
    %1039 = vmatprep.subr.mxu0 0.0
    %1040 = vmatpush1.msra.mxu0 0.0
    %1041 = vmatprep.subr.mxu0 0.0
    %1042 = vmatpush1.msra.mxu0 0.0
    %1043 = vmatprep.subr.mxu0 0.0
    %1044 = vmatpush1.msra.mxu0 0.0
    %1045 = vmatprep.subr.mxu0 0.0
    %1046 = vmatpush1.msra.mxu0 0.0
    %1047 = vmatprep.subr.mxu0 0.0
    %1048 = vmatpush1.msra.mxu0 0.0
    %1049 = vmatprep.subr.mxu0 0.0
    %1050 = vmatpush1.msra.mxu0 0.0
    %1051 = vmatprep.subr.mxu0 0.0
    %1052 = vmatpush1.msra.mxu0 0.0
    %1053 = vmatprep.subr.mxu0 0.0
    %1054 = vmatpush1.msra.mxu0 0.0
    %1055 = vmatprep.subr.mxu0 0.0
    %1056 = vmatpush1.msra.mxu0 0.0
    %1057 = vmatprep.subr.mxu0 0.0
    %1058 = vmatpush1.msra.mxu0 0.0
    %1059 = vmatprep.subr.mxu0 0.0
    %1060 = vmatpush1.msra.mxu0 0.0
    %1061 = vmatprep.subr.mxu0 0.0
    %1062 = vmatpush1.msra.mxu0 0.0
    %1063 = vmatprep.subr.mxu0 0.0
    %1064 = vmatpush1.msra.mxu0 0.0
    %1065 = vmatprep.mubr.f32.mxu0 0.0
    %1066 = vmatmul.mubr.f32.gmra.mrb[0].mxu0 %v999
    %v1067 = vpop.f32.mrb[0].mxu0
    %v1068 = vadd.f32 %v225, %v1067
    %v1069 = vpop.f32.mrb[0].mxu0
    %v1070 = vadd.f32 %v229, %v1069
    %1071 = vmatprep.mubr.f32.mxu0 0.0
    %1072 = vmatmul.mubr.f32.gmra.mrb[0].mxu0 %v1000
    %v1073 = vpop.f32.mrb[0].mxu0
    %v1074 = vadd.f32 %v225, %v1073
    %v1075 = vpop.f32.mrb[0].mxu0
    %v1076 = vadd.f32 %v229, %v1075
    %1077 = vdwg.mxu0
    %1078 = vmatprep.subr.mxu0 %v67
    %1079 = vmatpush1.msra.mxu0 %v66
    %1080 = vmatprep.subr.mxu0 %v76
    %1081 = vmatpush1.msra.mxu0 %v75
    %1082 = vmatprep.subr.mxu0 %v85
    %1083 = vmatpush1.msra.mxu0 %v84
    %1084 = vmatprep.subr.mxu0 %v94
    %1085 = vmatpush1.msra.mxu0 %v93
    %1086 = vmatprep.subr.mxu0 %v103
    %1087 = vmatpush1.msra.mxu0 %v102
    %1088 = vmatprep.subr.mxu0 %v112
    %1089 = vmatpush1.msra.mxu0 %v111
    %1090 = vmatprep.subr.mxu0 %v121
    %1091 = vmatpush1.msra.mxu0 %v120
    %1092 = vmatprep.subr.mxu0 %v130
    %1093 = vmatpush1.msra.mxu0 %v129
    %1094 = vmatprep.subr.mxu0 %v139
    %1095 = vmatpush1.msra.mxu0 %v138
    %1096 = vmatprep.subr.mxu0 %v148
    %1097 = vmatpush1.msra.mxu0 %v147
    %1098 = vmatprep.subr.mxu0 %v157
    %1099 = vmatpush1.msra.mxu0 %v156
    %1100 = vmatprep.subr.mxu0 %v166
    %1101 = vmatpush1.msra.mxu0 %v165
    %1102 = vmatprep.subr.mxu0 %v175
    %1103 = vmatpush1.msra.mxu0 %v174
    %1104 = vmatprep.subr.mxu0 %v184
    %1105 = vmatpush1.msra.mxu0 %v183
    %1106 = vmatprep.subr.mxu0 %v193
    %1107 = vmatpush1.msra.mxu0 %v192
    %1108 = vmatprep.subr.mxu0 %v202
    %1109 = vmatpush1.msra.mxu0 %v201
    %1110 = vmatprep.subr.mxu0 0.0
    %1111 = vmatpush1.msra.mxu0 0.0
    %1112 = vmatprep.subr.mxu0 0.0
    %1113 = vmatpush1.msra.mxu0 0.0
    %1114 = vmatprep.subr.mxu0 0.0
    %1115 = vmatpush1.msra.mxu0 0.0
    %1116 = vmatprep.subr.mxu0 0.0
    %1117 = vmatpush1.msra.mxu0 0.0
    %1118 = vmatprep.subr.mxu0 0.0
    %1119 = vmatpush1.msra.mxu0 0.0
    %1120 = vmatprep.subr.mxu0 0.0
    %1121 = vmatpush1.msra.mxu0 0.0
    %1122 = vmatprep.subr.mxu0 0.0
    %1123 = vmatpush1.msra.mxu0 0.0
    %1124 = vmatprep.subr.mxu0 0.0
    %1125 = vmatpush1.msra.mxu0 0.0
    %1126 = vmatprep.subr.mxu0 0.0
    %1127 = vmatpush1.msra.mxu0 0.0
    %1128 = vmatprep.subr.mxu0 0.0
    %1129 = vmatpush1.msra.mxu0 0.0
    %1130 = vmatprep.subr.mxu0 0.0
    %1131 = vmatpush1.msra.mxu0 0.0
    %1132 = vmatprep.subr.mxu0 0.0
    %1133 = vmatpush1.msra.mxu0 0.0
    %1134 = vmatprep.subr.mxu0 0.0
    %1135 = vmatpush1.msra.mxu0 0.0
    %1136 = vmatprep.subr.mxu0 0.0
    %1137 = vmatpush1.msra.mxu0 0.0
    %1138 = vmatprep.subr.mxu0 0.0
    %1139 = vmatpush1.msra.mxu0 0.0
    %1140 = vmatprep.subr.mxu0 0.0
    %1141 = vmatpush1.msra.mxu0 0.0
    %1142 = vmatprep.mubr.f32.mxu0 0.0
    %1143 = vmatmul.mubr.f32.gmra.mrb[0].mxu0 %v999
    %v1144 = vpop.f32.mrb[0].mxu0
    %v1145 = vadd.f32 %v233, %v1144
    %v1146 = vpop.f32.mrb[0].mxu0
    %v1147 = vadd.f32 %v237, %v1146
    %1148 = vmatprep.mubr.f32.mxu0 0.0
    %1149 = vmatmul.mubr.f32.gmra.mrb[0].mxu0 %v1000
    %v1150 = vpop.f32.mrb[0].mxu0
    %v1151 = vadd.f32 %v233, %v1150
    %v1152 = vpop.f32.mrb[0].mxu0
    %v1153 = vadd.f32 %v237, %v1152
    %1154 = vdwg.mxu0
    %1155 = vmatprep.subr.mxu0 %v69
    %1156 = vmatpush1.msra.mxu0 %v68
    %1157 = vmatprep.subr.mxu0 %v78
    %1158 = vmatpush1.msra.mxu0 %v77
    %1159 = vmatprep.subr.mxu0 %v87
    %1160 = vmatpush1.msra.mxu0 %v86
    %1161 = vmatprep.subr.mxu0 %v96
    %1162 = vmatpush1.msra.mxu0 %v95
    %1163 = vmatprep.subr.mxu0 %v105
    %1164 = vmatpush1.msra.mxu0 %v104
    %1165 = vmatprep.subr.mxu0 %v114
    %1166 = vmatpush1.msra.mxu0 %v113
    %1167 = vmatprep.subr.mxu0 %v123
    %1168 = vmatpush1.msra.mxu0 %v122
    %1169 = vmatprep.subr.mxu0 %v132
    %1170 = vmatpush1.msra.mxu0 %v131
    %1171 = vmatprep.subr.mxu0 %v141
    %1172 = vmatpush1.msra.mxu0 %v140
    %1173 = vmatprep.subr.mxu0 %v150
    %1174 = vmatpush1.msra.mxu0 %v149
    %1175 = vmatprep.subr.mxu0 %v159
    %1176 = vmatpush1.msra.mxu0 %v158
    %1177 = vmatprep.subr.mxu0 %v168
    %1178 = vmatpush1.msra.mxu0 %v167
    %1179 = vmatprep.subr.mxu0 %v177
    %1180 = vmatpush1.msra.mxu0 %v176
    %1181 = vmatprep.subr.mxu0 %v186
    %1182 = vmatpush1.msra.mxu0 %v185
    %1183 = vmatprep.subr.mxu0 %v195
    %1184 = vmatpush1.msra.mxu0 %v194
    %1185 = vmatprep.subr.mxu0 %v204
    %1186 = vmatpush1.msra.mxu0 %v203
    %1187 = vmatprep.subr.mxu0 0.0
    %1188 = vmatpush1.msra.mxu0 0.0
    %1189 = vmatprep.subr.mxu0 0.0
    %1190 = vmatpush1.msra.mxu0 0.0
    %1191 = vmatprep.subr.mxu0 0.0
    %1192 = vmatpush1.msra.mxu0 0.0
    %1193 = vmatprep.subr.mxu0 0.0
    %1194 = vmatpush1.msra.mxu0 0.0
    %1195 = vmatprep.subr.mxu0 0.0
    %1196 = vmatpush1.msra.mxu0 0.0
    %1197 = vmatprep.subr.mxu0 0.0
    %1198 = vmatpush1.msra.mxu0 0.0
    %1199 = vmatprep.subr.mxu0 0.0
    %1200 = vmatpush1.msra.mxu0 0.0
    %1201 = vmatprep.subr.mxu0 0.0
    %1202 = vmatpush1.msra.mxu0 0.0
    %1203 = vmatprep.subr.mxu0 0.0
    %1204 = vmatpush1.msra.mxu0 0.0
    %1205 = vmatprep.subr.mxu0 0.0
    %1206 = vmatpush1.msra.mxu0 0.0
    %1207 = vmatprep.subr.mxu0 0.0
    %1208 = vmatpush1.msra.mxu0 0.0
    %1209 = vmatprep.subr.mxu0 0.0
    %1210 = vmatpush1.msra.mxu0 0.0
    %1211 = vmatprep.subr.mxu0 0.0
    %1212 = vmatpush1.msra.mxu0 0.0
    %1213 = vmatprep.subr.mxu0 0.0
    %1214 = vmatpush1.msra.mxu0 0.0
    %1215 = vmatprep.subr.mxu0 0.0
    %1216 = vmatpush1.msra.mxu0 0.0
    %1217 = vmatprep.subr.mxu0 0.0
    %1218 = vmatpush1.msra.mxu0 0.0
    %1219 = vmatprep.mubr.f32.mxu0 0.0
    %1220 = vmatmul.mubr.f32.gmra.mrb[0].mxu0 %v999
    %v1221 = vpop.f32.mrb[0].mxu0
    %v1222 = vadd.f32 %v241, %v1221
    %v1223 = vpop.f32.mrb[0].mxu0
    %v1224 = vadd.f32 %v245, %v1223
    %1225 = vmatprep.mubr.f32.mxu0 0.0
    %1226 = vmatmul.mubr.f32.gmra.mrb[0].mxu0 %v1000
    %v1227 = vpop.f32.mrb[0].mxu0
    %v1228 = vadd.f32 %v241, %v1227
    %v1229 = vpop.f32.mrb[0].mxu0
    %v1230 = vadd.f32 %v245, %v1229
    %1231 = vdwg.mxu0
    %1232 = vmatprep.subr.mxu0 %v71
    %1233 = vmatpush1.msra.mxu0 %v70
    %1234 = vmatprep.subr.mxu0 %v80
    %1235 = vmatpush1.msra.mxu0 %v79
    %1236 = vmatprep.subr.mxu0 %v89
    %1237 = vmatpush1.msra.mxu0 %v88
    %1238 = vmatprep.subr.mxu0 %v98
    %1239 = vmatpush1.msra.mxu0 %v97
    %1240 = vmatprep.subr.mxu0 %v107
    %1241 = vmatpush1.msra.mxu0 %v106
    %1242 = vmatprep.subr.mxu0 %v116
    %1243 = vmatpush1.msra.mxu0 %v115
    %1244 = vmatprep.subr.mxu0 %v125
    %1245 = vmatpush1.msra.mxu0 %v124
    %1246 = vmatprep.subr.mxu0 %v134
    %1247 = vmatpush1.msra.mxu0 %v133
    %1248 = vmatprep.subr.mxu0 %v143
    %1249 = vmatpush1.msra.mxu0 %v142
    %1250 = vmatprep.subr.mxu0 %v152
    %1251 = vmatpush1.msra.mxu0 %v151
    %1252 = vmatprep.subr.mxu0 %v161
    %1253 = vmatpush1.msra.mxu0 %v160
    %1254 = vmatprep.subr.mxu0 %v170
    %1255 = vmatpush1.msra.mxu0 %v169
    %1256 = vmatprep.subr.mxu0 %v179
    %1257 = vmatpush1.msra.mxu0 %v178
    %1258 = vmatprep.subr.mxu0 %v188
    %1259 = vmatpush1.msra.mxu0 %v187
    %1260 = vmatprep.subr.mxu0 %v197
    %1261 = vmatpush1.msra.mxu0 %v196
    %1262 = vmatprep.subr.mxu0 %v206
    %1263 = vmatpush1.msra.mxu0 %v205
    %1264 = vmatprep.subr.mxu0 0.0
    %1265 = vmatpush1.msra.mxu0 0.0
    %1266 = vmatprep.subr.mxu0 0.0
    %1267 = vmatpush1.msra.mxu0 0.0
    %1268 = vmatprep.subr.mxu0 0.0
    %1269 = vmatpush1.msra.mxu0 0.0
    %1270 = vmatprep.subr.mxu0 0.0
    %1271 = vmatpush1.msra.mxu0 0.0
    %1272 = vmatprep.subr.mxu0 0.0
    %1273 = vmatpush1.msra.mxu0 0.0
    %1274 = vmatprep.subr.mxu0 0.0
    %1275 = vmatpush1.msra.mxu0 0.0
    %1276 = vmatprep.subr.mxu0 0.0
    %1277 = vmatpush1.msra.mxu0 0.0
    %1278 = vmatprep.subr.mxu0 0.0
    %1279 = vmatpush1.msra.mxu0 0.0
    %1280 = vmatprep.subr.mxu0 0.0
    %1281 = vmatpush1.msra.mxu0 0.0
    %1282 = vmatprep.subr.mxu0 0.0
    %1283 = vmatpush1.msra.mxu0 0.0
    %1284 = vmatprep.subr.mxu0 0.0
    %1285 = vmatpush1.msra.mxu0 0.0
    %1286 = vmatprep.subr.mxu0 0.0
    %1287 = vmatpush1.msra.mxu0 0.0
    %1288 = vmatprep.subr.mxu0 0.0
    %1289 = vmatpush1.msra.mxu0 0.0
    %1290 = vmatprep.subr.mxu0 0.0
    %1291 = vmatpush1.msra.mxu0 0.0
    %1292 = vmatprep.subr.mxu0 0.0
    %1293 = vmatpush1.msra.mxu0 0.0
    %1294 = vmatprep.subr.mxu0 0.0
    %1295 = vmatpush1.msra.mxu0 0.0
    %1296 = vmatprep.mubr.f32.mxu0 0.0
    %1297 = vmatmul.mubr.f32.gmra.mrb[0].mxu0 %v999
    %v1298 = vpop.f32.mrb[0].mxu0
    %v1299 = vadd.f32 %v249, %v1298
    %v1300 = vpop.f32.mrb[0].mxu0
    %v1301 = vadd.f32 %v253, %v1300
    %1302 = vmatprep.mubr.f32.mxu0 0.0
    %1303 = vmatmul.mubr.f32.gmra.mrb[0].mxu0 %v1000
    %v1304 = vpop.f32.mrb[0].mxu0
    %v1305 = vadd.f32 %v249, %v1304
    %v1306 = vpop.f32.mrb[0].mxu0
    %v1307 = vadd.f32 %v253, %v1306
    %1308 = vdwg.mxu0
    %1309 = vmatprep.subr.mxu0 0.0
    %1310 = vmatpush1.msra.mxu0 %v72
    %1311 = vmatprep.subr.mxu0 0.0
    %1312 = vmatpush1.msra.mxu0 %v81
    %1313 = vmatprep.subr.mxu0 0.0
    %1314 = vmatpush1.msra.mxu0 %v90
    %1315 = vmatprep.subr.mxu0 0.0
    %1316 = vmatpush1.msra.mxu0 %v99
    %1317 = vmatprep.subr.mxu0 0.0
    %1318 = vmatpush1.msra.mxu0 %v108
    %1319 = vmatprep.subr.mxu0 0.0
    %1320 = vmatpush1.msra.mxu0 %v117
    %1321 = vmatprep.subr.mxu0 0.0
    %1322 = vmatpush1.msra.mxu0 %v126
    %1323 = vmatprep.subr.mxu0 0.0
    %1324 = vmatpush1.msra.mxu0 %v135
    %1325 = vmatprep.subr.mxu0 0.0
    %1326 = vmatpush1.msra.mxu0 %v144
    %1327 = vmatprep.subr.mxu0 0.0
    %1328 = vmatpush1.msra.mxu0 %v153
    %1329 = vmatprep.subr.mxu0 0.0
    %1330 = vmatpush1.msra.mxu0 %v162
    %1331 = vmatprep.subr.mxu0 0.0
    %1332 = vmatpush1.msra.mxu0 %v171
    %1333 = vmatprep.subr.mxu0 0.0
    %1334 = vmatpush1.msra.mxu0 %v180
    %1335 = vmatprep.subr.mxu0 0.0
    %1336 = vmatpush1.msra.mxu0 %v189
    %1337 = vmatprep.subr.mxu0 0.0
    %1338 = vmatpush1.msra.mxu0 %v198
    %1339 = vmatprep.subr.mxu0 0.0
    %1340 = vmatpush1.msra.mxu0 %v207
    %1341 = vmatprep.subr.mxu0 0.0
    %1342 = vmatpush1.msra.mxu0 0.0
    %1343 = vmatprep.subr.mxu0 0.0
    %1344 = vmatpush1.msra.mxu0 0.0
    %1345 = vmatprep.subr.mxu0 0.0
    %1346 = vmatpush1.msra.mxu0 0.0
    %1347 = vmatprep.subr.mxu0 0.0
    %1348 = vmatpush1.msra.mxu0 0.0
    %1349 = vmatprep.subr.mxu0 0.0
    %1350 = vmatpush1.msra.mxu0 0.0
    %1351 = vmatprep.subr.mxu0 0.0
    %1352 = vmatpush1.msra.mxu0 0.0
    %1353 = vmatprep.subr.mxu0 0.0
    %1354 = vmatpush1.msra.mxu0 0.0
    %1355 = vmatprep.subr.mxu0 0.0
    %1356 = vmatpush1.msra.mxu0 0.0
    %1357 = vmatprep.subr.mxu0 0.0
    %1358 = vmatpush1.msra.mxu0 0.0
    %1359 = vmatprep.subr.mxu0 0.0
    %1360 = vmatpush1.msra.mxu0 0.0
    %1361 = vmatprep.subr.mxu0 0.0
    %1362 = vmatpush1.msra.mxu0 0.0
    %1363 = vmatprep.subr.mxu0 0.0
    %1364 = vmatpush1.msra.mxu0 0.0
    %1365 = vmatprep.subr.mxu0 0.0
    %1366 = vmatpush1.msra.mxu0 0.0
    %1367 = vmatprep.subr.mxu0 0.0
    %1368 = vmatpush1.msra.mxu0 0.0
    %1369 = vmatprep.subr.mxu0 0.0
    %1370 = vmatpush1.msra.mxu0 0.0
    %1371 = vmatprep.subr.mxu0 0.0
    %1372 = vmatpush1.msra.mxu0 0.0
    %1373 = vmatprep.mubr.f32.mxu0 0.0
    %1374 = vmatmul.mubr.f32.gmra.mrb[0].mxu0 %v999
    %v1375 = vpop.f32.mrb[0].mxu0
    %v1376 = vadd.f32 %v257, %v1375
    %v1377 = vpop.f32.mrb[0].mxu0
    %1378 = vmatprep.mubr.f32.mxu0 0.0
    %1379 = vmatmul.mubr.f32.gmra.mrb[0].mxu0 %v1000
    %v1380 = vpop.f32.mrb[0].mxu0
    %v1381 = vadd.f32 %v257, %v1380
    %v1382 = vpop.f32.mrb[0].mxu0
    %1383 = vdwg.mxu0
    %1384 = vmatprep.subr.mxu0 %v1222
    %1385 = vmatpush1.msra.mxu0 %v1147
    %1386 = vmatprep.subr.mxu0 %v1301
    %1387 = vmatpush1.msra.mxu0 %v1299
    %1388 = vmatprep.subr.mxu0 0.0
    %1389 = vmatpush1.msra.mxu0 0.0
    %1390 = vmatprep.subr.mxu0 0.0
    %1391 = vmatpush1.msra.mxu0 0.0
    %1392 = vmatprep.subr.mxu0 0.0
    %1393 = vmatpush1.msra.mxu0 0.0
    %1394 = vmatprep.subr.mxu0 0.0
    %1395 = vmatpush1.msra.mxu0 0.0
    %1396 = vmatprep.subr.mxu0 0.0
    %1397 = vmatpush1.msra.mxu0 0.0
    %1398 = vmatprep.subr.mxu0 0.0
    %1399 = vmatpush1.msra.mxu0 0.0
    %1400 = vmatprep.subr.mxu0 0.0
    %1401 = vmatpush1.msra.mxu0 0.0
    %1402 = vmatprep.subr.mxu0 0.0
    %1403 = vmatpush1.msra.mxu0 0.0
    %1404 = vmatprep.subr.mxu0 0.0
    %1405 = vmatpush1.msra.mxu0 0.0
    %1406 = vmatprep.subr.mxu0 0.0
    %1407 = vmatpush1.msra.mxu0 0.0
    %1408 = vmatprep.subr.mxu0 0.0
    %1409 = vmatpush1.msra.mxu0 0.0
    %1410 = vmatprep.subr.mxu0 0.0
    %1411 = vmatpush1.msra.mxu0 0.0
    %1412 = vmatprep.subr.mxu0 0.0
    %1413 = vmatpush1.msra.mxu0 0.0
    %1414 = vmatprep.subr.mxu0 0.0
    %1415 = vmatpush1.msra.mxu0 0.0
    %1416 = vmatprep.subr.mxu0 0.0
    %1417 = vmatpush1.msra.mxu0 0.0
    %1418 = vmatprep.subr.mxu0 0.0
    %1419 = vmatpush1.msra.mxu0 0.0
    %1420 = vmatprep.subr.mxu0 0.0
    %1421 = vmatpush1.msra.mxu0 0.0
    %1422 = vmatprep.subr.mxu0 0.0
    %1423 = vmatpush1.msra.mxu0 0.0
    %1424 = vmatprep.subr.mxu0 0.0
    %1425 = vmatpush1.msra.mxu0 0.0
    %1426 = vmatprep.subr.mxu0 0.0
    %1427 = vmatpush1.msra.mxu0 0.0
    %1428 = vmatprep.subr.mxu0 0.0
    %1429 = vmatpush1.msra.mxu0 0.0
    %1430 = vmatprep.subr.mxu0 0.0
    %1431 = vmatpush1.msra.mxu0 0.0
    %1432 = vmatprep.subr.mxu0 0.0
    %1433 = vmatpush1.msra.mxu0 0.0
    %1434 = vmatprep.subr.mxu0 0.0
    %1435 = vmatpush1.msra.mxu0 0.0
    %1436 = vmatprep.subr.mxu0 0.0
    %1437 = vmatpush1.msra.mxu0 0.0
    %1438 = vmatprep.subr.mxu0 0.0
    %1439 = vmatpush1.msra.mxu0 0.0
    %1440 = vmatprep.subr.mxu0 0.0
    %1441 = vmatpush1.msra.mxu0 0.0
    %1442 = vmatprep.subr.mxu0 0.0
    %1443 = vmatpush1.msra.mxu0 0.0
    %1444 = vmatprep.subr.mxu0 0.0
    %1445 = vmatpush1.msra.mxu0 0.0
    %1446 = vmatprep.subr.mxu0 0.0
    %1447 = vmatpush1.msra.mxu0 0.0
    %1448 = vmatprep.mubr.f32.mxu0 0.0
    %1449 = vmatmul.mubr.f32.gmra.mrb[0].mxu0 %v652
    %v1450 = vpop.f32.mrb[0].mxu0
    %v1451 = vadd.f32 0.0, %v1450
    %v1452 = vpop.f32.mrb[0].mxu0
    %v1453 = vadd.f32 0.0, %v1452
    %1454 = vdwg.mxu0
    %1455 = vmatprep.subr.mxu0 0.0
    %1456 = vmatpush1.msra.mxu0 %v1224
    %1457 = vmatprep.subr.mxu0 0.0
    %1458 = vmatpush1.msra.mxu0 %v1376
    %1459 = vmatprep.subr.mxu0 0.0
    %1460 = vmatpush1.msra.mxu0 0.0
    %1461 = vmatprep.subr.mxu0 0.0
    %1462 = vmatpush1.msra.mxu0 0.0
    %1463 = vmatprep.subr.mxu0 0.0
    %1464 = vmatpush1.msra.mxu0 0.0
    %1465 = vmatprep.subr.mxu0 0.0
    %1466 = vmatpush1.msra.mxu0 0.0
    %1467 = vmatprep.subr.mxu0 0.0
    %1468 = vmatpush1.msra.mxu0 0.0
    %1469 = vmatprep.subr.mxu0 0.0
    %1470 = vmatpush1.msra.mxu0 0.0
    %1471 = vmatprep.subr.mxu0 0.0
    %1472 = vmatpush1.msra.mxu0 0.0
    %1473 = vmatprep.subr.mxu0 0.0
    %1474 = vmatpush1.msra.mxu0 0.0
    %1475 = vmatprep.subr.mxu0 0.0
    %1476 = vmatpush1.msra.mxu0 0.0
    %1477 = vmatprep.subr.mxu0 0.0
    %1478 = vmatpush1.msra.mxu0 0.0
    %1479 = vmatprep.subr.mxu0 0.0
    %1480 = vmatpush1.msra.mxu0 0.0
    %1481 = vmatprep.subr.mxu0 0.0
    %1482 = vmatpush1.msra.mxu0 0.0
    %1483 = vmatprep.subr.mxu0 0.0
    %1484 = vmatpush1.msra.mxu0 0.0
    %1485 = vmatprep.subr.mxu0 0.0
    %1486 = vmatpush1.msra.mxu0 0.0
    %1487 = vmatprep.subr.mxu0 0.0
    %1488 = vmatpush1.msra.mxu0 0.0
    %1489 = vmatprep.subr.mxu0 0.0
    %1490 = vmatpush1.msra.mxu0 0.0
    %1491 = vmatprep.subr.mxu0 0.0
    %1492 = vmatpush1.msra.mxu0 0.0
    %1493 = vmatprep.subr.mxu0 0.0
    %1494 = vmatpush1.msra.mxu0 0.0
    %1495 = vmatprep.subr.mxu0 0.0
    %1496 = vmatpush1.msra.mxu0 0.0
    %1497 = vmatprep.subr.mxu0 0.0
    %1498 = vmatpush1.msra.mxu0 0.0
    %1499 = vmatprep.subr.mxu0 0.0
    %1500 = vmatpush1.msra.mxu0 0.0
    %1501 = vmatprep.subr.mxu0 0.0
    %1502 = vmatpush1.msra.mxu0 0.0
    %1503 = vmatprep.subr.mxu0 0.0
    %1504 = vmatpush1.msra.mxu0 0.0
    %1505 = vmatprep.subr.mxu0 0.0
    %1506 = vmatpush1.msra.mxu0 0.0
    %1507 = vmatprep.subr.mxu0 0.0
    %1508 = vmatpush1.msra.mxu0 0.0
    %1509 = vmatprep.subr.mxu0 0.0
    %1510 = vmatpush1.msra.mxu0 0.0
    %1511 = vmatprep.subr.mxu0 0.0
    %1512 = vmatpush1.msra.mxu0 0.0
    %1513 = vmatprep.subr.mxu0 0.0
    %1514 = vmatpush1.msra.mxu0 0.0
    %1515 = vmatprep.subr.mxu0 0.0
    %1516 = vmatpush1.msra.mxu0 0.0
    %1517 = vmatprep.subr.mxu0 0.0
    %1518 = vmatpush1.msra.mxu0 0.0
    %1519 = vmatprep.mubr.f32.mxu0 0.0
    %1520 = vmatmul.mubr.f32.gmra.mrb[0].mxu0 %v652
    %v1521 = vpop.f32.mrb[0].mxu0
    %v1522 = vadd.f32 0.0, %v1521
    %v1523 = vpop.f32.mrb[0].mxu0
    %1524 = vdwg.mxu0
    %1525 = vmatprep.subr.mxu0 %v1228
    %1526 = vmatpush1.msra.mxu0 %v1153
    %1527 = vmatprep.subr.mxu0 %v1307
    %1528 = vmatpush1.msra.mxu0 %v1305
    %1529 = vmatprep.subr.mxu0 0.0
    %1530 = vmatpush1.msra.mxu0 0.0
    %1531 = vmatprep.subr.mxu0 0.0
    %1532 = vmatpush1.msra.mxu0 0.0
    %1533 = vmatprep.subr.mxu0 0.0
    %1534 = vmatpush1.msra.mxu0 0.0
    %1535 = vmatprep.subr.mxu0 0.0
    %1536 = vmatpush1.msra.mxu0 0.0
    %1537 = vmatprep.subr.mxu0 0.0
    %1538 = vmatpush1.msra.mxu0 0.0
    %1539 = vmatprep.subr.mxu0 0.0
    %1540 = vmatpush1.msra.mxu0 0.0
    %1541 = vmatprep.subr.mxu0 0.0
    %1542 = vmatpush1.msra.mxu0 0.0
    %1543 = vmatprep.subr.mxu0 0.0
    %1544 = vmatpush1.msra.mxu0 0.0
    %1545 = vmatprep.subr.mxu0 0.0
    %1546 = vmatpush1.msra.mxu0 0.0
    %1547 = vmatprep.subr.mxu0 0.0
    %1548 = vmatpush1.msra.mxu0 0.0
    %1549 = vmatprep.subr.mxu0 0.0
    %1550 = vmatpush1.msra.mxu0 0.0
    %1551 = vmatprep.subr.mxu0 0.0
    %1552 = vmatpush1.msra.mxu0 0.0
    %1553 = vmatprep.subr.mxu0 0.0
    %1554 = vmatpush1.msra.mxu0 0.0
    %1555 = vmatprep.subr.mxu0 0.0
    %1556 = vmatpush1.msra.mxu0 0.0
    %1557 = vmatprep.subr.mxu0 0.0
    %1558 = vmatpush1.msra.mxu0 0.0
    %1559 = vmatprep.subr.mxu0 0.0
    %1560 = vmatpush1.msra.mxu0 0.0
    %1561 = vmatprep.subr.mxu0 0.0
    %1562 = vmatpush1.msra.mxu0 0.0
    %1563 = vmatprep.subr.mxu0 0.0
    %1564 = vmatpush1.msra.mxu0 0.0
    %1565 = vmatprep.subr.mxu0 0.0
    %1566 = vmatpush1.msra.mxu0 0.0
    %1567 = vmatprep.subr.mxu0 0.0
    %1568 = vmatpush1.msra.mxu0 0.0
    %1569 = vmatprep.subr.mxu0 0.0
    %1570 = vmatpush1.msra.mxu0 0.0
    %1571 = vmatprep.subr.mxu0 0.0
    %1572 = vmatpush1.msra.mxu0 0.0
    %1573 = vmatprep.subr.mxu0 0.0
    %1574 = vmatpush1.msra.mxu0 0.0
    %1575 = vmatprep.subr.mxu0 0.0
    %1576 = vmatpush1.msra.mxu0 0.0
    %1577 = vmatprep.subr.mxu0 0.0
    %1578 = vmatpush1.msra.mxu0 0.0
    %1579 = vmatprep.subr.mxu0 0.0
    %1580 = vmatpush1.msra.mxu0 0.0
    %1581 = vmatprep.subr.mxu0 0.0
    %1582 = vmatpush1.msra.mxu0 0.0
    %1583 = vmatprep.subr.mxu0 0.0
    %1584 = vmatpush1.msra.mxu0 0.0
    %1585 = vmatprep.subr.mxu0 0.0
    %1586 = vmatpush1.msra.mxu0 0.0
    %1587 = vmatprep.subr.mxu0 0.0
    %1588 = vmatpush1.msra.mxu0 0.0
    %1589 = vmatprep.mubr.f32.mxu0 0.0
    %1590 = vmatmul.mubr.f32.gmra.mrb[0].mxu0 %v796
    %v1591 = vpop.f32.mrb[0].mxu0
    %v1592 = vadd.f32 0.0, %v1591
    %v1593 = vpop.f32.mrb[0].mxu0
    %v1594 = vadd.f32 0.0, %v1593
    %1595 = vdwg.mxu0
    %1596 = vmatprep.subr.mxu0 0.0
    %1597 = vmatpush1.msra.mxu0 %v1230
    %1598 = vmatprep.subr.mxu0 0.0
    %1599 = vmatpush1.msra.mxu0 %v1381
    %1600 = vmatprep.subr.mxu0 0.0
    %1601 = vmatpush1.msra.mxu0 0.0
    %1602 = vmatprep.subr.mxu0 0.0
    %1603 = vmatpush1.msra.mxu0 0.0
    %1604 = vmatprep.subr.mxu0 0.0
    %1605 = vmatpush1.msra.mxu0 0.0
    %1606 = vmatprep.subr.mxu0 0.0
    %1607 = vmatpush1.msra.mxu0 0.0
    %1608 = vmatprep.subr.mxu0 0.0
    %1609 = vmatpush1.msra.mxu0 0.0
    %1610 = vmatprep.subr.mxu0 0.0
    %1611 = vmatpush1.msra.mxu0 0.0
    %1612 = vmatprep.subr.mxu0 0.0
    %1613 = vmatpush1.msra.mxu0 0.0
    %1614 = vmatprep.subr.mxu0 0.0
    %1615 = vmatpush1.msra.mxu0 0.0
    %1616 = vmatprep.subr.mxu0 0.0
    %1617 = vmatpush1.msra.mxu0 0.0
    %1618 = vmatprep.subr.mxu0 0.0
    %1619 = vmatpush1.msra.mxu0 0.0
    %1620 = vmatprep.subr.mxu0 0.0
    %1621 = vmatpush1.msra.mxu0 0.0
    %1622 = vmatprep.subr.mxu0 0.0
    %1623 = vmatpush1.msra.mxu0 0.0
    %1624 = vmatprep.subr.mxu0 0.0
    %1625 = vmatpush1.msra.mxu0 0.0
    %1626 = vmatprep.subr.mxu0 0.0
    %1627 = vmatpush1.msra.mxu0 0.0
    %1628 = vmatprep.subr.mxu0 0.0
    %1629 = vmatpush1.msra.mxu0 0.0
    %1630 = vmatprep.subr.mxu0 0.0
    %1631 = vmatpush1.msra.mxu0 0.0
    %1632 = vmatprep.subr.mxu0 0.0
    %1633 = vmatpush1.msra.mxu0 0.0
    %1634 = vmatprep.subr.mxu0 0.0
    %1635 = vmatpush1.msra.mxu0 0.0
    %1636 = vmatprep.subr.mxu0 0.0
    %1637 = vmatpush1.msra.mxu0 0.0
    %1638 = vmatprep.subr.mxu0 0.0
    %1639 = vmatpush1.msra.mxu0 0.0
    %1640 = vmatprep.subr.mxu0 0.0
    %1641 = vmatpush1.msra.mxu0 0.0
    %1642 = vmatprep.subr.mxu0 0.0
    %1643 = vmatpush1.msra.mxu0 0.0
    %1644 = vmatprep.subr.mxu0 0.0
    %1645 = vmatpush1.msra.mxu0 0.0
    %1646 = vmatprep.subr.mxu0 0.0
    %1647 = vmatpush1.msra.mxu0 0.0
    %1648 = vmatprep.subr.mxu0 0.0
    %1649 = vmatpush1.msra.mxu0 0.0
    %1650 = vmatprep.subr.mxu0 0.0
    %1651 = vmatpush1.msra.mxu0 0.0
    %1652 = vmatprep.subr.mxu0 0.0
    %1653 = vmatpush1.msra.mxu0 0.0
    %1654 = vmatprep.subr.mxu0 0.0
    %1655 = vmatpush1.msra.mxu0 0.0
    %1656 = vmatprep.subr.mxu0 0.0
    %1657 = vmatpush1.msra.mxu0 0.0
    %1658 = vmatprep.subr.mxu0 0.0
    %1659 = vmatpush1.msra.mxu0 0.0
    %1660 = vmatprep.mubr.f32.mxu0 0.0
    %1661 = vmatmul.mubr.f32.gmra.mrb[0].mxu0 %v796
    %v1662 = vpop.f32.mrb[0].mxu0
    %v1663 = vadd.f32 0.0, %v1662
    %v1664 = vpop.f32.mrb[0].mxu0
    %1665 = vdwg.mxu0
    %v1666 = vadd.f32 %v1451, %v943
    %v1667 = vadd.f32 %v1453, %v947
    %v1668 = vadd.f32 %v1522, %v951
    %v1669 = vadd.f32 %v1592, %v943
    %v1670 = vadd.f32 %v1594, %v947
    %v1671 = vadd.f32 %v1663, %v951
    %v1672 = vadd.f32 %v1666, %v1068
    %v1673 = vadd.f32 %v1669, %v1074
    %v1674 = vxor.u32 %v1672, 2147483648
    %v1675 = vxor.u32 %v1673, 2147483648
    %v1676 = vmul.f32 %v1674, 1.442695
    %v1677 = vpow.pop %v1676
    %v1678 = vmul.f32 %v1675, 1.442695
    %v1679 = vpow.pop %v1678
    %v1680 = vadd.f32 %v1677, 1.0
    %v1681 = vadd.f32 %v1679, 1.0
    %v1682 = vrcp.pop %v1680
    %v1683 = vmul.f32 1.0, %v1682
    %v1684 = vrcp.pop %v1681
    %v1685 = vmul.f32 1.0, %v1684
    %v1686 = vadd.f32 %v1667, %v1070
    %v1687 = vadd.f32 %v1670, %v1076
    %v1688 = vxor.u32 %v1686, 2147483648
    %v1689 = vxor.u32 %v1687, 2147483648
    %v1690 = vmul.f32 %v1688, 1.442695
    %v1691 = vpow.pop %v1690
    %v1692 = vmul.f32 %v1689, 1.442695
    %v1693 = vpow.pop %v1692
    %v1694 = vadd.f32 %v1691, 1.0
    %v1695 = vadd.f32 %v1693, 1.0
    %v1696 = vrcp.pop %v1694
    %v1697 = vmul.f32 1.0, %v1696
    %v1698 = vrcp.pop %v1695
    %v1699 = vmul.f32 1.0, %v1698
    %v1700 = vmul.f32 %v1683, %v1145
    %v1701 = vmul.f32 %v1685, %v1151
    %v1702 = vadd.f32 %v1668, %v1700
    %v1703 = vadd.f32 %v1671, %v1701
    %v1704 = vtanh.pop %v1702
    %v1705 = vtanh.pop %v1703
    %v1706 = vsub.f32 %v999, %v1704
    %v1707 = vsub.f32 %v1000, %v1705
    %v1708 = vmul.f32 %v1697, %v1706
    %v1709 = vmul.f32 %v1699, %v1707
    %v1710 = vadd.f32 %v1704, %v1708
    %v1711 = vadd.f32 %v1705, %v1709
    %1712 = vst.msk [vmem:[#allocation9] sm:$0xff] %vm215, %v1710
    %1713 = vst.msk [vmem:[#allocation9 + $0x8] sm:$0xff] %vm215, %v1711
    // Predicated region
    $region34: #{tpu_custom_call.1} parent=1 // pred_check
      _
    $region35: #{tpu_custom_call.1} parent=1 // pred_check_branch
      %1715 = sbr.rel (0) target = $region37
    $region36: #{tpu_custom_call.1} parent=1 // pred_region
      %s1717 = ssub.s32 256, 256
      %1718 = vsyncadd [#allocation5], %s1717
      %s1719 = sshll.u32 [#allocation9], 4
      %s1720 = int_to_ptr.vmem [resolvable:$true] %s1719
      %1725 = dma.vmem_to_hbm [thread:$0]  %s1720, 256, %s5, [#allocation5], 128, 128, 8
    $region37: #{tpu_custom_call.1} parent=1 // pred_fallthru
      _
    // Predicated region
    $region38: #{tpu_custom_call.1} parent=1 // pred_check
      _
    $region39: #{tpu_custom_call.1} parent=1 // pred_check_branch
      %1727 = sbr.rel (0) target = $region41
    $region40: #{tpu_custom_call.1} parent=1 // pred_region
      %1728 = dma.done [#allocation5], 256
    $region41: #{tpu_custom_call.1} parent=1 // pred_fallthru
      _
    %1729 = vsyncpa [#allocation4], 1
    %1730 = vsyncpa [#allocation7], 1
    %1731 = vsyncpa [#allocation5], 1

// kernel: tpu_custom_call.1
$region0: #{tpu_custom_call.1}
  #allocation0 [shape = 'u32[]', space=smem, size = 0x4, offset = 0x4, fixed_abs, tag = 'smem constant byte address 0x4 - core index']
  #allocation1 [shape = 'u32[144,128]{1,0:T(1,128)}', space=vmem, size = 0x12000, scoped, tag = 'internal scratch']
  #allocation2 [shape = 'f32[2,8,128]{2,1,0:T(8,128)}', space=vmem, size = 0x2000, scoped, tag = 'scratch operand']
  %s0 = inlined_call_operand.hbm [shape: f32[2,8,16], index: 0, kind: input, shape index: {}]
  %s1 = inlined_call_operand.hbm [shape: f32[2,8,32], index: 1, kind: input, shape index: {}]
  %s2 = inlined_call_operand.hbm [shape: f32[128,1152], index: 2, kind: input, shape index: {}]
  %s3 = inlined_call_operand.vmem [shape: f32[1,1152], index: 3, kind: input, shape index: {}]
  %s4 = inlined_call_operand.vmem [shape: f32[1,384], index: 4, kind: input, shape index: {}]
  %s5 = inlined_call_operand.hbm [shape: f32[2,8,32], index: 5, kind: output, shape index: {}]
  %s6 = sld [smem:[#allocation0]]
  $region42: #{tpu_custom_call.1} parent=0
    _
  %s8 = ssub.s32 1, %s6
  %s9 = scalar_select 0, %s8, %s6
  $region1: #{tpu_custom_call.1} parent=0
    #allocation3 [shape = 'u8[8192]{0}', space=vmem, size = 0x2000, scoped, tag = 'input window, operand 0, single buffered']
    #allocation4 [shape = 's32[1]{0}', space=sflag, size = 0x4, scoped, tag = 'scoped memory for tpu_custom_call.1']
    #allocation5 [shape = 's32[1]{0}', space=sflag, size = 0x4, scoped, tag = 'scoped memory for tpu_custom_call.1']
    #allocation6 [shape = 'u8[8192]{0}', space=vmem, size = 0x2000, scoped, tag = 'input window, operand 1, single buffered']
    #allocation7 [shape = 's32[1]{0}', space=sflag, size = 0x4, scoped, tag = 'scoped memory for tpu_custom_call.1']
    #allocation8 [shape = 'u8[589824]{0}', space=vmem, size = 0x90000, scoped, tag = 'input window, operand 2, single buffered']
    #allocation9 [shape = 'u8[8192]{0}', space=vmem, size = 0x2000, scoped, tag = 'output window, operand 0, single buffered']
    %10 = vsyncpa [#allocation4], 0
    %11 = vsyncpa [#allocation7], 0
    %12 = vsyncpa [#allocation5], 0
    // Predicated region
    $region2: #{tpu_custom_call.1} parent=1 // pred_check
      _
    $region3: #{tpu_custom_call.1} parent=1 // pred_check_branch
      %14 = sbr.rel (0) target = $region5
    $region4: #{tpu_custom_call.1} parent=1 // pred_region
      %s16 = ssub.s32 256, 256
      %17 = vsyncadd [#allocation4], %s16
      %s18 = sshll.u32 [#allocation3], 4
      %s19 = int_to_ptr.vmem [resolvable:$true] %s18
      %24 = dma.hbm_to_vmem [thread:$0]  %s0, 256, %s19, [#allocation4], 128, 128, 8
    $region5: #{tpu_custom_call.1} parent=1 // pred_fallthru
      _
    // Predicated region
    $region6: #{tpu_custom_call.1} parent=1 // pred_check
      _
    $region7: #{tpu_custom_call.1} parent=1 // pred_check_branch
      %26 = sbr.rel (0) target = $region9
    $region8: #{tpu_custom_call.1} parent=1 // pred_region
      %s28 = ssub.s32 256, 256
      %29 = vsyncadd [#allocation7], %s28
      %s30 = sshll.u32 [#allocation6], 4
      %s31 = int_to_ptr.vmem [resolvable:$true] %s30
      %36 = dma.hbm_to_vmem [thread:$0]  %s1, 256, %s31, [#allocation7], 128, 128, 8
    $region9: #{tpu_custom_call.1} parent=1 // pred_fallthru
      _
    // Predicated region
    $region10: #{tpu_custom_call.1} parent=1 // pred_check
      _
    $region11: #{tpu_custom_call.1} parent=1 // pred_check_branch
      %38 = sbr.rel (0) target = $region13
    $region12: #{tpu_custom_call.1} parent=1 // pred_region
      %s40 = ssub.s32 18432, 18432
      %41 = vsyncadd [#allocation7], %s40
      %s42 = sshll.u32 [#allocation8], 4
      %s43 = int_to_ptr.vmem [resolvable:$true] %s42
      %48 = dma.hbm_to_vmem [thread:$0]  %s2, 18432, %s43, [#allocation7], 1152, 1152, 72
    $region13: #{tpu_custom_call.1} parent=1 // pred_fallthru
      _
    // Predicated region
    $region14: #{tpu_custom_call.1} parent=1 // pred_check
      _
    $region15: #{tpu_custom_call.1} parent=1 // pred_check_branch
      %50 = sbr.rel (0) target = $region17
    $region16: #{tpu_custom_call.1} parent=1 // pred_region
      _
    $region17: #{tpu_custom_call.1} parent=1 // pred_fallthru
      _
    // Predicated region
    $region18: #{tpu_custom_call.1} parent=1 // pred_check
      _
    $region19: #{tpu_custom_call.1} parent=1 // pred_check_branch
      %52 = sbr.rel (0) target = $region21
    $region20: #{tpu_custom_call.1} parent=1 // pred_region
      _
    $region21: #{tpu_custom_call.1} parent=1 // pred_fallthru
      _
    // Predicated region
    $region22: #{tpu_custom_call.1} parent=1 // pred_check
      _
    $region23: #{tpu_custom_call.1} parent=1 // pred_check_branch
      %54 = sbr.rel (0) target = $region25
    $region24: #{tpu_custom_call.1} parent=1 // pred_region
      %55 = dma.done [#allocation4], 256
    $region25: #{tpu_custom_call.1} parent=1 // pred_fallthru
      _
    // Predicated region
    $region26: #{tpu_custom_call.1} parent=1 // pred_check
      _
    $region27: #{tpu_custom_call.1} parent=1 // pred_check_branch
      %57 = sbr.rel (0) target = $region29
    $region28: #{tpu_custom_call.1} parent=1 // pred_region
      %58 = dma.done [#allocation7], 256
    $region29: #{tpu_custom_call.1} parent=1 // pred_fallthru
      _
    // Predicated region
    $region30: #{tpu_custom_call.1} parent=1 // pred_check
      _
    $region31: #{tpu_custom_call.1} parent=1 // pred_check_branch
      %60 = sbr.rel (0) target = $region33
    $region32: #{tpu_custom_call.1} parent=1 // pred_region
      %61 = dma.done [#allocation7], 18432
    $region33: #{tpu_custom_call.1} parent=1 // pred_fallthru
      _
    %v62 = vld [vmem:[#allocation3] sm:$0xff]
    %v63 = vld [vmem:[#allocation3 + $0x8] sm:$0xff]
    %v64 = vld [vmem:[#allocation8] sm:$0xff]
    %v65 = vld [vmem:[#allocation8 + $0x8] sm:$0xff]
    %v66 = vld [vmem:[#allocation8 + $0x10] sm:$0xff]
    %v67 = vld [vmem:[#allocation8 + $0x18] sm:$0xff]
    %v68 = vld [vmem:[#allocation8 + $0x20] sm:$0xff]
    %v69 = vld [vmem:[#allocation8 + $0x28] sm:$0xff]
    %v70 = vld [vmem:[#allocation8 + $0x30] sm:$0xff]
    %v71 = vld [vmem:[#allocation8 + $0x38] sm:$0xff]
    %v72 = vld [vmem:[#allocation8 + $0x40] sm:$0xff]
    %v73 = vld [vmem:[#allocation8 + $0x48] sm:$0xff]
    %v74 = vld [vmem:[#allocation8 + $0x50] sm:$0xff]
    %v75 = vld [vmem:[#allocation8 + $0x58] sm:$0xff]
    %v76 = vld [vmem:[#allocation8 + $0x60] sm:$0xff]
    %v77 = vld [vmem:[#allocation8 + $0x68] sm:$0xff]
    %v78 = vld [vmem:[#allocation8 + $0x70] sm:$0xff]
    %v79 = vld [vmem:[#allocation8 + $0x78] sm:$0xff]
    %v80 = vld [vmem:[#allocation8 + $0x80] sm:$0xff]
    %v81 = vld [vmem:[#allocation8 + $0x88] sm:$0xff]
    %v82 = vld [vmem:[#allocation8 + $0x90] sm:$0xff]
    %v83 = vld [vmem:[#allocation8 + $0x98] sm:$0xff]
    %v84 = vld [vmem:[#allocation8 + $0xa0] sm:$0xff]
    %v85 = vld [vmem:[#allocation8 + $0xa8] sm:$0xff]
    %v86 = vld [vmem:[#allocation8 + $0xb0] sm:$0xff]
    %v87 = vld [vmem:[#allocation8 + $0xb8] sm:$0xff]
    %v88 = vld [vmem:[#allocation8 + $0xc0] sm:$0xff]
    %v89 = vld [vmem:[#allocation8 + $0xc8] sm:$0xff]
    %v90 = vld [vmem:[#allocation8 + $0xd0] sm:$0xff]
    %v91 = vld [vmem:[#allocation8 + $0xd8] sm:$0xff]
    %v92 = vld [vmem:[#allocation8 + $0xe0] sm:$0xff]
    %v93 = vld [vmem:[#allocation8 + $0xe8] sm:$0xff]
    %v94 = vld [vmem:[#allocation8 + $0xf0] sm:$0xff]
    %v95 = vld [vmem:[#allocation8 + $0xf8] sm:$0xff]
    %v96 = vld [vmem:[#allocation8 + $0x100] sm:$0xff]
    %v97 = vld [vmem:[#allocation8 + $0x108] sm:$0xff]
    %v98 = vld [vmem:[#allocation8 + $0x110] sm:$0xff]
    %v99 = vld [vmem:[#allocation8 + $0x118] sm:$0xff]
    %v100 = vld [vmem:[#allocation8 + $0x120] sm:$0xff]
    %v101 = vld [vmem:[#allocation8 + $0x128] sm:$0xff]
    %v102 = vld [vmem:[#allocation8 + $0x130] sm:$0xff]
    %v103 = vld [vmem:[#allocation8 + $0x138] sm:$0xff]
    %v104 = vld [vmem:[#allocation8 + $0x140] sm:$0xff]
    %v105 = vld [vmem:[#allocation8 + $0x148] sm:$0xff]
    %v106 = vld [vmem:[#allocation8 + $0x150] sm:$0xff]
    %v107 = vld [vmem:[#allocation8 + $0x158] sm:$0xff]
    %v108 = vld [vmem:[#allocation8 + $0x160] sm:$0xff]
    %v109 = vld [vmem:[#allocation8 + $0x168] sm:$0xff]
    %v110 = vld [vmem:[#allocation8 + $0x170] sm:$0xff]
    %v111 = vld [vmem:[#allocation8 + $0x178] sm:$0xff]
    %v112 = vld [vmem:[#allocation8 + $0x180] sm:$0xff]
    %v113 = vld [vmem:[#allocation8 + $0x188] sm:$0xff]
    %v114 = vld [vmem:[#allocation8 + $0x190] sm:$0xff]
    %v115 = vld [vmem:[#allocation8 + $0x198] sm:$0xff]
    %v116 = vld [vmem:[#allocation8 + $0x1a0] sm:$0xff]
    %v117 = vld [vmem:[#allocation8 + $0x1a8] sm:$0xff]
    %v118 = vld [vmem:[#allocation8 + $0x1b0] sm:$0xff]
    %v119 = vld [vmem:[#allocation8 + $0x1b8] sm:$0xff]
    %v120 = vld [vmem:[#allocation8 + $0x1c0] sm:$0xff]
    %v121 = vld [vmem:[#allocation8 + $0x1c8] sm:$0xff]
    %v122 = vld [vmem:[#allocation8 + $0x1d0] sm:$0xff]
    %v123 = vld [vmem:[#allocation8 + $0x1d8] sm:$0xff]
    %v124 = vld [vmem:[#allocation8 + $0x1e0] sm:$0xff]
    %v125 = vld [vmem:[#allocation8 + $0x1e8] sm:$0xff]
    %v126 = vld [vmem:[#allocation8 + $0x1f0] sm:$0xff]
    %v127 = vld [vmem:[#allocation8 + $0x1f8] sm:$0xff]
    %v128 = vld [vmem:[#allocation8 + $0x200] sm:$0xff]
    %v129 = vld [vmem:[#allocation8 + $0x208] sm:$0xff]
    %v130 = vld [vmem:[#allocation8 + $0x210] sm:$0xff]
    %v131 = vld [vmem:[#allocation8 + $0x218] sm:$0xff]
    %v132 = vld [vmem:[#allocation8 + $0x220] sm:$0xff]
    %v133 = vld [vmem:[#allocation8 + $0x228] sm:$0xff]
    %v134 = vld [vmem:[#allocation8 + $0x230] sm:$0xff]
    %v135 = vld [vmem:[#allocation8 + $0x238] sm:$0xff]
    %v136 = vld [vmem:[#allocation8 + $0x240] sm:$0xff]
    %v137 = vld [vmem:[#allocation8 + $0x248] sm:$0xff]
    %v138 = vld [vmem:[#allocation8 + $0x250] sm:$0xff]
    %v139 = vld [vmem:[#allocation8 + $0x258] sm:$0xff]
    %v140 = vld [vmem:[#allocation8 + $0x260] sm:$0xff]
    %v141 = vld [vmem:[#allocation8 + $0x268] sm:$0xff]
    %v142 = vld [vmem:[#allocation8 + $0x270] sm:$0xff]
    %v143 = vld [vmem:[#allocation8 + $0x278] sm:$0xff]
    %v144 = vld [vmem:[#allocation8 + $0x280] sm:$0xff]
    %v145 = vld [vmem:[#allocation8 + $0x288] sm:$0xff]
    %v146 = vld [vmem:[#allocation8 + $0x290] sm:$0xff]
    %v147 = vld [vmem:[#allocation8 + $0x298] sm:$0xff]
    %v148 = vld [vmem:[#allocation8 + $0x2a0] sm:$0xff]
    %v149 = vld [vmem:[#allocation8 + $0x2a8] sm:$0xff]
    %v150 = vld [vmem:[#allocation8 + $0x2b0] sm:$0xff]
    %v151 = vld [vmem:[#allocation8 + $0x2b8] sm:$0xff]
    %v152 = vld [vmem:[#allocation8 + $0x2c0] sm:$0xff]
    %v153 = vld [vmem:[#allocation8 + $0x2c8] sm:$0xff]
    %v154 = vld [vmem:[#allocation8 + $0x2d0] sm:$0xff]
    %v155 = vld [vmem:[#allocation8 + $0x2d8] sm:$0xff]
    %v156 = vld [vmem:[#allocation8 + $0x2e0] sm:$0xff]
    %v157 = vld [vmem:[#allocation8 + $0x2e8] sm:$0xff]
    %v158 = vld [vmem:[#allocation8 + $0x2f0] sm:$0xff]
    %v159 = vld [vmem:[#allocation8 + $0x2f8] sm:$0xff]
    %v160 = vld [vmem:[#allocation8 + $0x300] sm:$0xff]
    %v161 = vld [vmem:[#allocation8 + $0x308] sm:$0xff]
    %v162 = vld [vmem:[#allocation8 + $0x310] sm:$0xff]
    %v163 = vld [vmem:[#allocation8 + $0x318] sm:$0xff]
    %v164 = vld [vmem:[#allocation8 + $0x320] sm:$0xff]
    %v165 = vld [vmem:[#allocation8 + $0x328] sm:$0xff]
    %v166 = vld [vmem:[#allocation8 + $0x330] sm:$0xff]
    %v167 = vld [vmem:[#allocation8 + $0x338] sm:$0xff]
    %v168 = vld [vmem:[#allocation8 + $0x340] sm:$0xff]
    %v169 = vld [vmem:[#allocation8 + $0x348] sm:$0xff]
    %v170 = vld [vmem:[#allocation8 + $0x350] sm:$0xff]
    %v171 = vld [vmem:[#allocation8 + $0x358] sm:$0xff]
    %v172 = vld [vmem:[#allocation8 + $0x360] sm:$0xff]
    %v173 = vld [vmem:[#allocation8 + $0x368] sm:$0xff]
    %v174 = vld [vmem:[#allocation8 + $0x370] sm:$0xff]
    %v175 = vld [vmem:[#allocation8 + $0x378] sm:$0xff]
    %v176 = vld [vmem:[#allocation8 + $0x380] sm:$0xff]
    %v177 = vld [vmem:[#allocation8 + $0x388] sm:$0xff]
    %v178 = vld [vmem:[#allocation8 + $0x390] sm:$0xff]
    %v179 = vld [vmem:[#allocation8 + $0x398] sm:$0xff]
    %v180 = vld [vmem:[#allocation8 + $0x3a0] sm:$0xff]
    %v181 = vld [vmem:[#allocation8 + $0x3a8] sm:$0xff]
    %v182 = vld [vmem:[#allocation8 + $0x3b0] sm:$0xff]
    %v183 = vld [vmem:[#allocation8 + $0x3b8] sm:$0xff]
    %v184 = vld [vmem:[#allocation8 + $0x3c0] sm:$0xff]
    %v185 = vld [vmem:[#allocation8 + $0x3c8] sm:$0xff]
    %v186 = vld [vmem:[#allocation8 + $0x3d0] sm:$0xff]
    %v187 = vld [vmem:[#allocation8 + $0x3d8] sm:$0xff]
    %v188 = vld [vmem:[#allocation8 + $0x3e0] sm:$0xff]
    %v189 = vld [vmem:[#allocation8 + $0x3e8] sm:$0xff]
    %v190 = vld [vmem:[#allocation8 + $0x3f0] sm:$0xff]
    %v191 = vld [vmem:[#allocation8 + $0x3f8] sm:$0xff]
    %v192 = vld [vmem:[#allocation8 + $0x400] sm:$0xff]
    %v193 = vld [vmem:[#allocation8 + $0x408] sm:$0xff]
    %v194 = vld [vmem:[#allocation8 + $0x410] sm:$0xff]
    %v195 = vld [vmem:[#allocation8 + $0x418] sm:$0xff]
    %v196 = vld [vmem:[#allocation8 + $0x420] sm:$0xff]
    %v197 = vld [vmem:[#allocation8 + $0x428] sm:$0xff]
    %v198 = vld [vmem:[#allocation8 + $0x430] sm:$0xff]
    %v199 = vld [vmem:[#allocation8 + $0x438] sm:$0xff]
    %v200 = vld [vmem:[#allocation8 + $0x440] sm:$0xff]
    %v201 = vld [vmem:[#allocation8 + $0x448] sm:$0xff]
    %v202 = vld [vmem:[#allocation8 + $0x450] sm:$0xff]
    %v203 = vld [vmem:[#allocation8 + $0x458] sm:$0xff]
    %v204 = vld [vmem:[#allocation8 + $0x460] sm:$0xff]
    %v205 = vld [vmem:[#allocation8 + $0x468] sm:$0xff]
    %v206 = vld [vmem:[#allocation8 + $0x470] sm:$0xff]
    %v207 = vld [vmem:[#allocation8 + $0x478] sm:$0xff]
    %v208 = vld [vmem:[%s3] sm:$0xff]
    %v209 = vld [vmem:[%s3 + $0x8] sm:$0x1]
    %v210 = vld [vmem:[%s4] sm:$0x7]
    %211 = vst [vmem:[#allocation2] sm:$0xff] 0.0
    %212 = vst [vmem:[#allocation2 + $0x8] sm:$0xff] 0.0
    %v213 = vld [vmem:[#allocation6] sm:$0xff]
    %v214 = vld [vmem:[#allocation6 + $0x8] sm:$0xff]
    %vm215 = vcmask 261120
    %216 = vst.msk [vmem:[#allocation2] sm:$0xff] %vm215, %v213
    %217 = vst.msk [vmem:[#allocation2 + $0x8] sm:$0xff] %vm215, %v214
    %v218 = vld [vmem:[#allocation2] sm:$0xff]
    %v219 = vld [vmem:[#allocation2 + $0x8] sm:$0xff]
    %v222 = vlaneseq
    %v223 = vshrl.u32 %v222, 7
    %v224 = vsub.s32 0, %v223
    %v225 = vrot.slane %v208, %v224
    %v226 = vlaneseq
    %v227 = vshrl.u32 %v226, 7
    %v228 = vsub.s32 1, %v227
    %v229 = vrot.slane %v208, %v228
    %v230 = vlaneseq
    %v231 = vshrl.u32 %v230, 7
    %v232 = vsub.s32 2, %v231
    %v233 = vrot.slane %v208, %v232
    %v234 = vlaneseq
    %v235 = vshrl.u32 %v234, 7
    %v236 = vsub.s32 3, %v235
    %v237 = vrot.slane %v208, %v236
    %v238 = vlaneseq
    %v239 = vshrl.u32 %v238, 7
    %v240 = vsub.s32 4, %v239
    %v241 = vrot.slane %v208, %v240
    %v242 = vlaneseq
    %v243 = vshrl.u32 %v242, 7
    %v244 = vsub.s32 5, %v243
    %v245 = vrot.slane %v208, %v244
    %v246 = vlaneseq
    %v247 = vshrl.u32 %v246, 7
    %v248 = vsub.s32 6, %v247
    %v249 = vrot.slane %v208, %v248
    %v250 = vlaneseq
    %v251 = vshrl.u32 %v250, 7
    %v252 = vsub.s32 7, %v251
    %v253 = vrot.slane %v208, %v252
    %v254 = vlaneseq
    %v255 = vshrl.u32 %v254, 7
    %v256 = vsub.s32 0, %v255
    %v257 = vrot.slane %v209, %v256
    %267 = vmatprep.subr.mxu0 %v65
    %268 = vmatpush1.msra.mxu0 %v64
    %269 = vmatprep.subr.mxu0 %v74
    %270 = vmatpush1.msra.mxu0 %v73
    %271 = vmatprep.subr.mxu0 %v83
    %272 = vmatpush1.msra.mxu0 %v82
    %273 = vmatprep.subr.mxu0 %v92
    %274 = vmatpush1.msra.mxu0 %v91
    %275 = vmatprep.subr.mxu0 %v101
    %276 = vmatpush1.msra.mxu0 %v100
    %277 = vmatprep.subr.mxu0 %v110
    %278 = vmatpush1.msra.mxu0 %v109
    %279 = vmatprep.subr.mxu0 %v119
    %280 = vmatpush1.msra.mxu0 %v118
    %281 = vmatprep.subr.mxu0 %v128
    %282 = vmatpush1.msra.mxu0 %v127
    %283 = vmatprep.subr.mxu0 %v137
    %284 = vmatpush1.msra.mxu0 %v136
    %285 = vmatprep.subr.mxu0 %v146
    %286 = vmatpush1.msra.mxu0 %v145
    %287 = vmatprep.subr.mxu0 %v155
    %288 = vmatpush1.msra.mxu0 %v154
    %289 = vmatprep.subr.mxu0 %v164
    %290 = vmatpush1.msra.mxu0 %v163
    %291 = vmatprep.subr.mxu0 %v173
    %292 = vmatpush1.msra.mxu0 %v172
    %293 = vmatprep.subr.mxu0 %v182
    %294 = vmatpush1.msra.mxu0 %v181
    %295 = vmatprep.subr.mxu0 %v191
    %296 = vmatpush1.msra.mxu0 %v190
    %297 = vmatprep.subr.mxu0 %v200
    %298 = vmatpush1.msra.mxu0 %v199
    %299 = vmatprep.subr.mxu0 0.0
    %300 = vmatpush1.msra.mxu0 0.0
    %301 = vmatprep.subr.mxu0 0.0
    %302 = vmatpush1.msra.mxu0 0.0
    %303 = vmatprep.subr.mxu0 0.0
    %304 = vmatpush1.msra.mxu0 0.0
    %305 = vmatprep.subr.mxu0 0.0
    %306 = vmatpush1.msra.mxu0 0.0
    %307 = vmatprep.subr.mxu0 0.0
    %308 = vmatpush1.msra.mxu0 0.0
    %309 = vmatprep.subr.mxu0 0.0
    %310 = vmatpush1.msra.mxu0 0.0
    %311 = vmatprep.subr.mxu0 0.0
    %312 = vmatpush1.msra.mxu0 0.0
    %313 = vmatprep.subr.mxu0 0.0
    %314 = vmatpush1.msra.mxu0 0.0
    %315 = vmatprep.subr.mxu0 0.0
    %316 = vmatpush1.msra.mxu0 0.0
    %317 = vmatprep.subr.mxu0 0.0
    %318 = vmatpush1.msra.mxu0 0.0
    %319 = vmatprep.subr.mxu0 0.0
    %320 = vmatpush1.msra.mxu0 0.0
    %321 = vmatprep.subr.mxu0 0.0
    %322 = vmatpush1.msra.mxu0 0.0
    %323 = vmatprep.subr.mxu0 0.0
    %324 = vmatpush1.msra.mxu0 0.0
    %325 = vmatprep.subr.mxu0 0.0
    %326 = vmatpush1.msra.mxu0 0.0
    %327 = vmatprep.subr.mxu0 0.0
    %328 = vmatpush1.msra.mxu0 0.0
    %329 = vmatprep.subr.mxu0 0.0
    %330 = vmatpush1.msra.mxu0 0.0
    %331 = vmatprep.mubr.f32.mxu0 0.0
    %332 = vmatmul.mubr.f32.gmra.mrb[0].mxu0 %v218
    %v333 = vpop.f32.mrb[0].mxu0
    %v334 = vadd.f32 %v225, %v333
    %v335 = vpop.f32.mrb[0].mxu0
    %v336 = vadd.f32 %v229, %v335
    %337 = vmatprep.mubr.f32.mxu0 0.0
    %338 = vmatmul.mubr.f32.gmra.mrb[0].mxu0 %v219
    %v339 = vpop.f32.mrb[0].mxu0
    %v340 = vadd.f32 %v225, %v339
    %v341 = vpop.f32.mrb[0].mxu0
    %v342 = vadd.f32 %v229, %v341
    %343 = vdwg.mxu0
    %344 = vmatprep.subr.mxu0 %v67
    %345 = vmatpush1.msra.mxu0 %v66
    %346 = vmatprep.subr.mxu0 %v76
    %347 = vmatpush1.msra.mxu0 %v75
    %348 = vmatprep.subr.mxu0 %v85
    %349 = vmatpush1.msra.mxu0 %v84
    %350 = vmatprep.subr.mxu0 %v94
    %351 = vmatpush1.msra.mxu0 %v93
    %352 = vmatprep.subr.mxu0 %v103
    %353 = vmatpush1.msra.mxu0 %v102
    %354 = vmatprep.subr.mxu0 %v112
    %355 = vmatpush1.msra.mxu0 %v111
    %356 = vmatprep.subr.mxu0 %v121
    %357 = vmatpush1.msra.mxu0 %v120
    %358 = vmatprep.subr.mxu0 %v130
    %359 = vmatpush1.msra.mxu0 %v129
    %360 = vmatprep.subr.mxu0 %v139
    %361 = vmatpush1.msra.mxu0 %v138
    %362 = vmatprep.subr.mxu0 %v148
    %363 = vmatpush1.msra.mxu0 %v147
    %364 = vmatprep.subr.mxu0 %v157
    %365 = vmatpush1.msra.mxu0 %v156
    %366 = vmatprep.subr.mxu0 %v166
    %367 = vmatpush1.msra.mxu0 %v165
    %368 = vmatprep.subr.mxu0 %v175
    %369 = vmatpush1.msra.mxu0 %v174
    %370 = vmatprep.subr.mxu0 %v184
    %371 = vmatpush1.msra.mxu0 %v183
    %372 = vmatprep.subr.mxu0 %v193
    %373 = vmatpush1.msra.mxu0 %v192
    %374 = vmatprep.subr.mxu0 %v202
    %375 = vmatpush1.msra.mxu0 %v201
    %376 = vmatprep.subr.mxu0 0.0
    %377 = vmatpush1.msra.mxu0 0.0
    %378 = vmatprep.subr.mxu0 0.0
    %379 = vmatpush1.msra.mxu0 0.0
    %380 = vmatprep.subr.mxu0 0.0
    %381 = vmatpush1.msra.mxu0 0.0
    %382 = vmatprep.subr.mxu0 0.0
    %383 = vmatpush1.msra.mxu0 0.0
    %384 = vmatprep.subr.mxu0 0.0
    %385 = vmatpush1.msra.mxu0 0.0
    %386 = vmatprep.subr.mxu0 0.0
    %387 = vmatpush1.msra.mxu0 0.0
    %388 = vmatprep.subr.mxu0 0.0
    %389 = vmatpush1.msra.mxu0 0.0
    %390 = vmatprep.subr.mxu0 0.0
    %391 = vmatpush1.msra.mxu0 0.0
    %392 = vmatprep.subr.mxu0 0.0
    %393 = vmatpush1.msra.mxu0 0.0
    %394 = vmatprep.subr.mxu0 0.0
    %395 = vmatpush1.msra.mxu0 0.0
    %396 = vmatprep.subr.mxu0 0.0
    %397 = vmatpush1.msra.mxu0 0.0
    %398 = vmatprep.subr.mxu0 0.0
    %399 = vmatpush1.msra.mxu0 0.0
    %400 = vmatprep.subr.mxu0 0.0
    %401 = vmatpush1.msra.mxu0 0.0
    %402 = vmatprep.subr.mxu0 0.0
    %403 = vmatpush1.msra.mxu0 0.0
    %404 = vmatprep.subr.mxu0 0.0
    %405 = vmatpush1.msra.mxu0 0.0
    %406 = vmatprep.subr.mxu0 0.0
    %407 = vmatpush1.msra.mxu0 0.0
    %408 = vmatprep.mubr.f32.mxu0 0.0
    %409 = vmatmul.mubr.f32.gmra.mrb[0].mxu0 %v218
    %v410 = vpop.f32.mrb[0].mxu0
    %v411 = vadd.f32 %v233, %v410
    %v412 = vpop.f32.mrb[0].mxu0
    %v413 = vadd.f32 %v237, %v412
    %414 = vmatprep.mubr.f32.mxu0 0.0
    %415 = vmatmul.mubr.f32.gmra.mrb[0].mxu0 %v219
    %v416 = vpop.f32.mrb[0].mxu0
    %v417 = vadd.f32 %v233, %v416
    %v418 = vpop.f32.mrb[0].mxu0
    %v419 = vadd.f32 %v237, %v418
    %420 = vdwg.mxu0
    %421 = vmatprep.subr.mxu0 %v69
    %422 = vmatpush1.msra.mxu0 %v68
    %423 = vmatprep.subr.mxu0 %v78
    %424 = vmatpush1.msra.mxu0 %v77
    %425 = vmatprep.subr.mxu0 %v87
    %426 = vmatpush1.msra.mxu0 %v86
    %427 = vmatprep.subr.mxu0 %v96
    %428 = vmatpush1.msra.mxu0 %v95
    %429 = vmatprep.subr.mxu0 %v105
    %430 = vmatpush1.msra.mxu0 %v104
    %431 = vmatprep.subr.mxu0 %v114
    %432 = vmatpush1.msra.mxu0 %v113
    %433 = vmatprep.subr.mxu0 %v123
    %434 = vmatpush1.msra.mxu0 %v122
    %435 = vmatprep.subr.mxu0 %v132
    %436 = vmatpush1.msra.mxu0 %v131
    %437 = vmatprep.subr.mxu0 %v141
    %438 = vmatpush1.msra.mxu0 %v140
    %439 = vmatprep.subr.mxu0 %v150
    %440 = vmatpush1.msra.mxu0 %v149
    %441 = vmatprep.subr.mxu0 %v159
    %442 = vmatpush1.msra.mxu0 %v158
    %443 = vmatprep.subr.mxu0 %v168
    %444 = vmatpush1.msra.mxu0 %v167
    %445 = vmatprep.subr.mxu0 %v177
    %446 = vmatpush1.msra.mxu0 %v176
    %447 = vmatprep.subr.mxu0 %v186
    %448 = vmatpush1.msra.mxu0 %v185
    %449 = vmatprep.subr.mxu0 %v195
    %450 = vmatpush1.msra.mxu0 %v194
    %451 = vmatprep.subr.mxu0 %v204
    %452 = vmatpush1.msra.mxu0 %v203
    %453 = vmatprep.subr.mxu0 0.0
    %454 = vmatpush1.msra.mxu0 0.0
    %455 = vmatprep.subr.mxu0 0.0
    %456 = vmatpush1.msra.mxu0 0.0
    %457 = vmatprep.subr.mxu0 0.0
    %458 = vmatpush1.msra.mxu0 0.0
    %459 = vmatprep.subr.mxu0 0.0
    %460 = vmatpush1.msra.mxu0 0.0
    %461 = vmatprep.subr.mxu0 0.0
    %462 = vmatpush1.msra.mxu0 0.0
    %463 = vmatprep.subr.mxu0 0.0
    %464 = vmatpush1.msra.mxu0 0.0
    %465 = vmatprep.subr.mxu0 0.0
    %466 = vmatpush1.msra.mxu0 0.0
    %467 = vmatprep.subr.mxu0 0.0
    %468 = vmatpush1.msra.mxu0 0.0
    %469 = vmatprep.subr.mxu0 0.0
    %470 = vmatpush1.msra.mxu0 0.0
    %471 = vmatprep.subr.mxu0 0.0
    %472 = vmatpush1.msra.mxu0 0.0
    %473 = vmatprep.subr.mxu0 0.0
    %474 = vmatpush1.msra.mxu0 0.0
    %475 = vmatprep.subr.mxu0 0.0
    %476 = vmatpush1.msra.mxu0 0.0
    %477 = vmatprep.subr.mxu0 0.0
    %478 = vmatpush1.msra.mxu0 0.0
    %479 = vmatprep.subr.mxu0 0.0
    %480 = vmatpush1.msra.mxu0 0.0
    %481 = vmatprep.subr.mxu0 0.0
    %482 = vmatpush1.msra.mxu0 0.0
    %483 = vmatprep.subr.mxu0 0.0
    %484 = vmatpush1.msra.mxu0 0.0
    %485 = vmatprep.mubr.f32.mxu0 0.0
    %486 = vmatmul.mubr.f32.gmra.mrb[0].mxu0 %v218
    %v487 = vpop.f32.mrb[0].mxu0
    %v488 = vadd.f32 %v241, %v487
    %v489 = vpop.f32.mrb[0].mxu0
    %v490 = vadd.f32 %v245, %v489
    %491 = vmatprep.mubr.f32.mxu0 0.0
    %492 = vmatmul.mubr.f32.gmra.mrb[0].mxu0 %v219
    %v493 = vpop.f32.mrb[0].mxu0
    %v494 = vadd.f32 %v241, %v493
    %v495 = vpop.f32.mrb[0].mxu0
    %v496 = vadd.f32 %v245, %v495
    %497 = vdwg.mxu0
    %498 = vmatprep.subr.mxu0 %v71
    %499 = vmatpush1.msra.mxu0 %v70
    %500 = vmatprep.subr.mxu0 %v80
    %501 = vmatpush1.msra.mxu0 %v79
    %502 = vmatprep.subr.mxu0 %v89
    %503 = vmatpush1.msra.mxu0 %v88
    %504 = vmatprep.subr.mxu0 %v98
    %505 = vmatpush1.msra.mxu0 %v97
    %506 = vmatprep.subr.mxu0 %v107
    %507 = vmatpush1.msra.mxu0 %v106
    %508 = vmatprep.subr.mxu0 %v116
    %509 = vmatpush1.msra.mxu0 %v115
    %510 = vmatprep.subr.mxu0 %v125
    %511 = vmatpush1.msra.mxu0 %v124
    %512 = vmatprep.subr.mxu0 %v134
    %513 = vmatpush1.msra.mxu0 %v133
    %514 = vmatprep.subr.mxu0 %v143
    %515 = vmatpush1.msra.mxu0 %v142
    %516 = vmatprep.subr.mxu0 %v152
    %517 = vmatpush1.msra.mxu0 %v151
    %518 = vmatprep.subr.mxu0 %v161
    %519 = vmatpush1.msra.mxu0 %v160
    %520 = vmatprep.subr.mxu0 %v170
    %521 = vmatpush1.msra.mxu0 %v169
    %522 = vmatprep.subr.mxu0 %v179
    %523 = vmatpush1.msra.mxu0 %v178
    %524 = vmatprep.subr.mxu0 %v188
    %525 = vmatpush1.msra.mxu0 %v187
    %526 = vmatprep.subr.mxu0 %v197
    %527 = vmatpush1.msra.mxu0 %v196
    %528 = vmatprep.subr.mxu0 %v206
    %529 = vmatpush1.msra.mxu0 %v205
    %530 = vmatprep.subr.mxu0 0.0
    %531 = vmatpush1.msra.mxu0 0.0
    %532 = vmatprep.subr.mxu0 0.0
    %533 = vmatpush1.msra.mxu0 0.0
    %534 = vmatprep.subr.mxu0 0.0
    %535 = vmatpush1.msra.mxu0 0.0
    %536 = vmatprep.subr.mxu0 0.0
    %537 = vmatpush1.msra.mxu0 0.0
    %538 = vmatprep.subr.mxu0 0.0
    %539 = vmatpush1.msra.mxu0 0.0
    %540 = vmatprep.subr.mxu0 0.0
    %541 = vmatpush1.msra.mxu0 0.0
    %542 = vmatprep.subr.mxu0 0.0
    %543 = vmatpush1.msra.mxu0 0.0
    %544 = vmatprep.subr.mxu0 0.0
    %545 = vmatpush1.msra.mxu0 0.0
    %546 = vmatprep.subr.mxu0 0.0
    %547 = vmatpush1.msra.mxu0 0.0
    %548 = vmatprep.subr.mxu0 0.0
    %549 = vmatpush1.msra.mxu0 0.0
    %550 = vmatprep.subr.mxu0 0.0
    %551 = vmatpush1.msra.mxu0 0.0
    %552 = vmatprep.subr.mxu0 0.0
    %553 = vmatpush1.msra.mxu0 0.0
    %554 = vmatprep.subr.mxu0 0.0
    %555 = vmatpush1.msra.mxu0 0.0
    %556 = vmatprep.subr.mxu0 0.0
    %557 = vmatpush1.msra.mxu0 0.0
    %558 = vmatprep.subr.mxu0 0.0
    %559 = vmatpush1.msra.mxu0 0.0
    %560 = vmatprep.subr.mxu0 0.0
    %561 = vmatpush1.msra.mxu0 0.0
    %562 = vmatprep.mubr.f32.mxu0 0.0
    %563 = vmatmul.mubr.f32.gmra.mrb[0].mxu0 %v218
    %v564 = vpop.f32.mrb[0].mxu0
    %v565 = vadd.f32 %v249, %v564
    %v566 = vpop.f32.mrb[0].mxu0
    %v567 = vadd.f32 %v253, %v566
    %568 = vmatprep.mubr.f32.mxu0 0.0
    %569 = vmatmul.mubr.f32.gmra.mrb[0].mxu0 %v219
    %v570 = vpop.f32.mrb[0].mxu0
    %v571 = vadd.f32 %v249, %v570
    %v572 = vpop.f32.mrb[0].mxu0
    %v573 = vadd.f32 %v253, %v572
    %574 = vdwg.mxu0
    %575 = vmatprep.subr.mxu0 0.0
    %576 = vmatpush1.msra.mxu0 %v72
    %577 = vmatprep.subr.mxu0 0.0
    %578 = vmatpush1.msra.mxu0 %v81
    %579 = vmatprep.subr.mxu0 0.0
    %580 = vmatpush1.msra.mxu0 %v90
    %581 = vmatprep.subr.mxu0 0.0
    %582 = vmatpush1.msra.mxu0 %v99
    %583 = vmatprep.subr.mxu0 0.0
    %584 = vmatpush1.msra.mxu0 %v108
    %585 = vmatprep.subr.mxu0 0.0
    %586 = vmatpush1.msra.mxu0 %v117
    %587 = vmatprep.subr.mxu0 0.0
    %588 = vmatpush1.msra.mxu0 %v126
    %589 = vmatprep.subr.mxu0 0.0
    %590 = vmatpush1.msra.mxu0 %v135
    %591 = vmatprep.subr.mxu0 0.0
    %592 = vmatpush1.msra.mxu0 %v144
    %593 = vmatprep.subr.mxu0 0.0
    %594 = vmatpush1.msra.mxu0 %v153
    %595 = vmatprep.subr.mxu0 0.0
    %596 = vmatpush1.msra.mxu0 %v162
    %597 = vmatprep.subr.mxu0 0.0
    %598 = vmatpush1.msra.mxu0 %v171
    %599 = vmatprep.subr.mxu0 0.0
    %600 = vmatpush1.msra.mxu0 %v180
    %601 = vmatprep.subr.mxu0 0.0
    %602 = vmatpush1.msra.mxu0 %v189
    %603 = vmatprep.subr.mxu0 0.0
    %604 = vmatpush1.msra.mxu0 %v198
    %605 = vmatprep.subr.mxu0 0.0
    %606 = vmatpush1.msra.mxu0 %v207
    %607 = vmatprep.subr.mxu0 0.0
    %608 = vmatpush1.msra.mxu0 0.0
    %609 = vmatprep.subr.mxu0 0.0
    %610 = vmatpush1.msra.mxu0 0.0
    %611 = vmatprep.subr.mxu0 0.0
    %612 = vmatpush1.msra.mxu0 0.0
    %613 = vmatprep.subr.mxu0 0.0
    %614 = vmatpush1.msra.mxu0 0.0
    %615 = vmatprep.subr.mxu0 0.0
    %616 = vmatpush1.msra.mxu0 0.0
    %617 = vmatprep.subr.mxu0 0.0
    %618 = vmatpush1.msra.mxu0 0.0
    %619 = vmatprep.subr.mxu0 0.0
    %620 = vmatpush1.msra.mxu0 0.0
    %621 = vmatprep.subr.mxu0 0.0
    %622 = vmatpush1.msra.mxu0 0.0
    %623 = vmatprep.subr.mxu0 0.0
    %624 = vmatpush1.msra.mxu0 0.0
    %625 = vmatprep.subr.mxu0 0.0
    %626 = vmatpush1.msra.mxu0 0.0
    %627 = vmatprep.subr.mxu0 0.0
    %628 = vmatpush1.msra.mxu0 0.0
    %629 = vmatprep.subr.mxu0 0.0
    %630 = vmatpush1.msra.mxu0 0.0
    %631 = vmatprep.subr.mxu0 0.0
    %632 = vmatpush1.msra.mxu0 0.0
    %633 = vmatprep.subr.mxu0 0.0
    %634 = vmatpush1.msra.mxu0 0.0
    %635 = vmatprep.subr.mxu0 0.0
    %636 = vmatpush1.msra.mxu0 0.0
    %637 = vmatprep.subr.mxu0 0.0
    %638 = vmatpush1.msra.mxu0 0.0
    %639 = vmatprep.mubr.f32.mxu0 0.0
    %640 = vmatmul.mubr.f32.gmra.mrb[0].mxu0 %v218
    %v641 = vpop.f32.mrb[0].mxu0
    %v642 = vadd.f32 %v257, %v641
    %v643 = vpop.f32.mrb[0].mxu0
    %644 = vmatprep.mubr.f32.mxu0 0.0
    %645 = vmatmul.mubr.f32.gmra.mrb[0].mxu0 %v219
    %v646 = vpop.f32.mrb[0].mxu0
    %v647 = vadd.f32 %v257, %v646
    %v648 = vpop.f32.mrb[0].mxu0
    %649 = vdwg.mxu0
    %vm650 = vcmask 130048
    %v652 = vsel %vm650, %v62, 0
    %654 = vmatprep.subr.mxu0 %v488
    %655 = vmatpush1.msra.mxu0 %v413
    %656 = vmatprep.subr.mxu0 %v567
    %657 = vmatpush1.msra.mxu0 %v565
    %658 = vmatprep.subr.mxu0 0.0
    %659 = vmatpush1.msra.mxu0 0.0
    %660 = vmatprep.subr.mxu0 0.0
    %661 = vmatpush1.msra.mxu0 0.0
    %662 = vmatprep.subr.mxu0 0.0
    %663 = vmatpush1.msra.mxu0 0.0
    %664 = vmatprep.subr.mxu0 0.0
    %665 = vmatpush1.msra.mxu0 0.0
    %666 = vmatprep.subr.mxu0 0.0
    %667 = vmatpush1.msra.mxu0 0.0
    %668 = vmatprep.subr.mxu0 0.0
    %669 = vmatpush1.msra.mxu0 0.0
    %670 = vmatprep.subr.mxu0 0.0
    %671 = vmatpush1.msra.mxu0 0.0
    %672 = vmatprep.subr.mxu0 0.0
    %673 = vmatpush1.msra.mxu0 0.0
    %674 = vmatprep.subr.mxu0 0.0
    %675 = vmatpush1.msra.mxu0 0.0
    %676 = vmatprep.subr.mxu0 0.0
    %677 = vmatpush1.msra.mxu0 0.0
    %678 = vmatprep.subr.mxu0 0.0
    %679 = vmatpush1.msra.mxu0 0.0
    %680 = vmatprep.subr.mxu0 0.0
    %681 = vmatpush1.msra.mxu0 0.0
    %682 = vmatprep.subr.mxu0 0.0
    %683 = vmatpush1.msra.mxu0 0.0
    %684 = vmatprep.subr.mxu0 0.0
    %685 = vmatpush1.msra.mxu0 0.0
    %686 = vmatprep.subr.mxu0 0.0
    %687 = vmatpush1.msra.mxu0 0.0
    %688 = vmatprep.subr.mxu0 0.0
    %689 = vmatpush1.msra.mxu0 0.0
    %690 = vmatprep.subr.mxu0 0.0
    %691 = vmatpush1.msra.mxu0 0.0
    %692 = vmatprep.subr.mxu0 0.0
    %693 = vmatpush1.msra.mxu0 0.0
    %694 = vmatprep.subr.mxu0 0.0
    %695 = vmatpush1.msra.mxu0 0.0
    %696 = vmatprep.subr.mxu0 0.0
    %697 = vmatpush1.msra.mxu0 0.0
    %698 = vmatprep.subr.mxu0 0.0
    %699 = vmatpush1.msra.mxu0 0.0
    %700 = vmatprep.subr.mxu0 0.0
    %701 = vmatpush1.msra.mxu0 0.0
    %702 = vmatprep.subr.mxu0 0.0
    %703 = vmatpush1.msra.mxu0 0.0
    %704 = vmatprep.subr.mxu0 0.0
    %705 = vmatpush1.msra.mxu0 0.0
    %706 = vmatprep.subr.mxu0 0.0
    %707 = vmatpush1.msra.mxu0 0.0
    %708 = vmatprep.subr.mxu0 0.0
    %709 = vmatpush1.msra.mxu0 0.0
    %710 = vmatprep.subr.mxu0 0.0
    %711 = vmatpush1.msra.mxu0 0.0
    %712 = vmatprep.subr.mxu0 0.0
    %713 = vmatpush1.msra.mxu0 0.0
    %714 = vmatprep.subr.mxu0 0.0
    %715 = vmatpush1.msra.mxu0 0.0
    %716 = vmatprep.subr.mxu0 0.0
    %717 = vmatpush1.msra.mxu0 0.0
    %718 = vmatprep.mubr.f32.mxu0 0.0
    %719 = vmatmul.mubr.f32.gmra.mrb[0].mxu0 %v652
    %v720 = vpop.f32.mrb[0].mxu0
    %v721 = vadd.f32 0.0, %v720
    %v722 = vpop.f32.mrb[0].mxu0
    %v723 = vadd.f32 0.0, %v722
    %724 = vdwg.mxu0
    %725 = vmatprep.subr.mxu0 0.0
    %726 = vmatpush1.msra.mxu0 %v490
    %727 = vmatprep.subr.mxu0 0.0
    %728 = vmatpush1.msra.mxu0 %v642
    %729 = vmatprep.subr.mxu0 0.0
    %730 = vmatpush1.msra.mxu0 0.0
    %731 = vmatprep.subr.mxu0 0.0
    %732 = vmatpush1.msra.mxu0 0.0
    %733 = vmatprep.subr.mxu0 0.0
    %734 = vmatpush1.msra.mxu0 0.0
    %735 = vmatprep.subr.mxu0 0.0
    %736 = vmatpush1.msra.mxu0 0.0
    %737 = vmatprep.subr.mxu0 0.0
    %738 = vmatpush1.msra.mxu0 0.0
    %739 = vmatprep.subr.mxu0 0.0
    %740 = vmatpush1.msra.mxu0 0.0
    %741 = vmatprep.subr.mxu0 0.0
    %742 = vmatpush1.msra.mxu0 0.0
    %743 = vmatprep.subr.mxu0 0.0
    %744 = vmatpush1.msra.mxu0 0.0
    %745 = vmatprep.subr.mxu0 0.0
    %746 = vmatpush1.msra.mxu0 0.0
    %747 = vmatprep.subr.mxu0 0.0
    %748 = vmatpush1.msra.mxu0 0.0
    %749 = vmatprep.subr.mxu0 0.0
    %750 = vmatpush1.msra.mxu0 0.0
    %751 = vmatprep.subr.mxu0 0.0
    %752 = vmatpush1.msra.mxu0 0.0
    %753 = vmatprep.subr.mxu0 0.0
    %754 = vmatpush1.msra.mxu0 0.0
    %755 = vmatprep.subr.mxu0 0.0
    %756 = vmatpush1.msra.mxu0 0.0
    %757 = vmatprep.subr.mxu0 0.0
    %758 = vmatpush1.msra.mxu0 0.0
    %759 = vmatprep.subr.mxu0 0.0
    %760 = vmatpush1.msra.mxu0 0.0
    %761 = vmatprep.subr.mxu0 0.0
    %762 = vmatpush1.msra.mxu0 0.0
    %763 = vmatprep.subr.mxu0 0.0
    %764 = vmatpush1.msra.mxu0 0.0
    %765 = vmatprep.subr.mxu0 0.0
    %766 = vmatpush1.msra.mxu0 0.0
    %767 = vmatprep.subr.mxu0 0.0
    %768 = vmatpush1.msra.mxu0 0.0
    %769 = vmatprep.subr.mxu0 0.0
    %770 = vmatpush1.msra.mxu0 0.0
    %771 = vmatprep.subr.mxu0 0.0
    %772 = vmatpush1.msra.mxu0 0.0
    %773 = vmatprep.subr.mxu0 0.0
    %774 = vmatpush1.msra.mxu0 0.0
    %775 = vmatprep.subr.mxu0 0.0
    %776 = vmatpush1.msra.mxu0 0.0
    %777 = vmatprep.subr.mxu0 0.0
    %778 = vmatpush1.msra.mxu0 0.0
    %779 = vmatprep.subr.mxu0 0.0
    %780 = vmatpush1.msra.mxu0 0.0
    %781 = vmatprep.subr.mxu0 0.0
    %782 = vmatpush1.msra.mxu0 0.0
    %783 = vmatprep.subr.mxu0 0.0
    %784 = vmatpush1.msra.mxu0 0.0
    %785 = vmatprep.subr.mxu0 0.0
    %786 = vmatpush1.msra.mxu0 0.0
    %787 = vmatprep.subr.mxu0 0.0
    %788 = vmatpush1.msra.mxu0 0.0
    %789 = vmatprep.mubr.f32.mxu0 0.0
    %790 = vmatmul.mubr.f32.gmra.mrb[0].mxu0 %v652
    %v791 = vpop.f32.mrb[0].mxu0
    %v792 = vadd.f32 0.0, %v791
    %v793 = vpop.f32.mrb[0].mxu0
    %794 = vdwg.mxu0
    %v796 = vsel %vm650, %v63, 0
    %798 = vmatprep.subr.mxu0 %v494
    %799 = vmatpush1.msra.mxu0 %v419
    %800 = vmatprep.subr.mxu0 %v573
    %801 = vmatpush1.msra.mxu0 %v571
    %802 = vmatprep.subr.mxu0 0.0
    %803 = vmatpush1.msra.mxu0 0.0
    %804 = vmatprep.subr.mxu0 0.0
    %805 = vmatpush1.msra.mxu0 0.0
    %806 = vmatprep.subr.mxu0 0.0
    %807 = vmatpush1.msra.mxu0 0.0
    %808 = vmatprep.subr.mxu0 0.0
    %809 = vmatpush1.msra.mxu0 0.0
    %810 = vmatprep.subr.mxu0 0.0
    %811 = vmatpush1.msra.mxu0 0.0
    %812 = vmatprep.subr.mxu0 0.0
    %813 = vmatpush1.msra.mxu0 0.0
    %814 = vmatprep.subr.mxu0 0.0
    %815 = vmatpush1.msra.mxu0 0.0
    %816 = vmatprep.subr.mxu0 0.0
    %817 = vmatpush1.msra.mxu0 0.0
    %818 = vmatprep.subr.mxu0 0.0
    %819 = vmatpush1.msra.mxu0 0.0
    %820 = vmatprep.subr.mxu0 0.0
    %821 = vmatpush1.msra.mxu0 0.0
    %822 = vmatprep.subr.mxu0 0.0
    %823 = vmatpush1.msra.mxu0 0.0
    %824 = vmatprep.subr.mxu0 0.0
    %825 = vmatpush1.msra.mxu0 0.0
    %826 = vmatprep.subr.mxu0 0.0
    %827 = vmatpush1.msra.mxu0 0.0
    %828 = vmatprep.subr.mxu0 0.0
    %829 = vmatpush1.msra.mxu0 0.0
    %830 = vmatprep.subr.mxu0 0.0
    %831 = vmatpush1.msra.mxu0 0.0
    %832 = vmatprep.subr.mxu0 0.0
    %833 = vmatpush1.msra.mxu0 0.0
    %834 = vmatprep.subr.mxu0 0.0
    %835 = vmatpush1.msra.mxu0 0.0
    %836 = vmatprep.subr.mxu0 0.0
    %837 = vmatpush1.msra.mxu0 0.0
    %838 = vmatprep.subr.mxu0 0.0
    %839 = vmatpush1.msra.mxu0 0.0
    %840 = vmatprep.subr.mxu0 0.0
    %841 = vmatpush1.msra.mxu0 0.0
    %842 = vmatprep.subr.mxu0 0.0
    %843 = vmatpush1.msra.mxu0 0.0
    %844 = vmatprep.subr.mxu0 0.0
    %845 = vmatpush1.msra.mxu0 0.0
    %846 = vmatprep.subr.mxu0 0.0
    %847 = vmatpush1.msra.mxu0 0.0
    %848 = vmatprep.subr.mxu0 0.0
    %849 = vmatpush1.msra.mxu0 0.0
    %850 = vmatprep.subr.mxu0 0.0
    %851 = vmatpush1.msra.mxu0 0.0
    %852 = vmatprep.subr.mxu0 0.0
    %853 = vmatpush1.msra.mxu0 0.0
    %854 = vmatprep.subr.mxu0 0.0
    %855 = vmatpush1.msra.mxu0 0.0
    %856 = vmatprep.subr.mxu0 0.0
    %857 = vmatpush1.msra.mxu0 0.0
    %858 = vmatprep.subr.mxu0 0.0
    %859 = vmatpush1.msra.mxu0 0.0
    %860 = vmatprep.subr.mxu0 0.0
    %861 = vmatpush1.msra.mxu0 0.0
    %862 = vmatprep.mubr.f32.mxu0 0.0
    %863 = vmatmul.mubr.f32.gmra.mrb[0].mxu0 %v796
    %v864 = vpop.f32.mrb[0].mxu0
    %v865 = vadd.f32 0.0, %v864
    %v866 = vpop.f32.mrb[0].mxu0
    %v867 = vadd.f32 0.0, %v866
    %868 = vdwg.mxu0
    %869 = vmatprep.subr.mxu0 0.0
    %870 = vmatpush1.msra.mxu0 %v496
    %871 = vmatprep.subr.mxu0 0.0
    %872 = vmatpush1.msra.mxu0 %v647
    %873 = vmatprep.subr.mxu0 0.0
    %874 = vmatpush1.msra.mxu0 0.0
    %875 = vmatprep.subr.mxu0 0.0
    %876 = vmatpush1.msra.mxu0 0.0
    %877 = vmatprep.subr.mxu0 0.0
    %878 = vmatpush1.msra.mxu0 0.0
    %879 = vmatprep.subr.mxu0 0.0
    %880 = vmatpush1.msra.mxu0 0.0
    %881 = vmatprep.subr.mxu0 0.0
    %882 = vmatpush1.msra.mxu0 0.0
    %883 = vmatprep.subr.mxu0 0.0
    %884 = vmatpush1.msra.mxu0 0.0
    %885 = vmatprep.subr.mxu0 0.0
    %886 = vmatpush1.msra.mxu0 0.0
    %887 = vmatprep.subr.mxu0 0.0
    %888 = vmatpush1.msra.mxu0 0.0
    %889 = vmatprep.subr.mxu0 0.0
    %890 = vmatpush1.msra.mxu0 0.0
    %891 = vmatprep.subr.mxu0 0.0
    %892 = vmatpush1.msra.mxu0 0.0
    %893 = vmatprep.subr.mxu0 0.0
    %894 = vmatpush1.msra.mxu0 0.0
    %895 = vmatprep.subr.mxu0 0.0
    %896 = vmatpush1.msra.mxu0 0.0
    %897 = vmatprep.subr.mxu0 0.0
    %898 = vmatpush1.msra.mxu0 0.0
    %899 = vmatprep.subr.mxu0 0.0
    %900 = vmatpush1.msra.mxu0 0.0
    %901 = vmatprep.subr.mxu0 0.0
    %902 = vmatpush1.msra.mxu0 0.0
    %903 = vmatprep.subr.mxu0 0.0
    %904 = vmatpush1.msra.mxu0 0.0
    %905 = vmatprep.subr.mxu0 0.0
    %906 = vmatpush1.msra.mxu0 0.0
    %907 = vmatprep.subr.mxu0 0.0
    %908 = vmatpush1.msra.mxu0 0.0
    %909 = vmatprep.subr.mxu0 0.0
    %910 = vmatpush1.msra.mxu0 0.0
    %911 = vmatprep.subr.mxu0 0.0
    %912 = vmatpush1.msra.mxu0 0.0
    %913 = vmatprep.subr.mxu0 0.0
    %914 = vmatpush1.msra.mxu0 0.0
    %915 = vmatprep.subr.mxu0 0.0
    %916 = vmatpush1.msra.mxu0 0.0
    %917 = vmatprep.subr.mxu0 0.0
    %918 = vmatpush1.msra.mxu0 0.0
    %919 = vmatprep.subr.mxu0 0.0
    %920 = vmatpush1.msra.mxu0 0.0
    %921 = vmatprep.subr.mxu0 0.0
    %922 = vmatpush1.msra.mxu0 0.0
    %923 = vmatprep.subr.mxu0 0.0
    %924 = vmatpush1.msra.mxu0 0.0
    %925 = vmatprep.subr.mxu0 0.0
    %926 = vmatpush1.msra.mxu0 0.0
    %927 = vmatprep.subr.mxu0 0.0
    %928 = vmatpush1.msra.mxu0 0.0
    %929 = vmatprep.subr.mxu0 0.0
    %930 = vmatpush1.msra.mxu0 0.0
    %931 = vmatprep.subr.mxu0 0.0
    %932 = vmatpush1.msra.mxu0 0.0
    %933 = vmatprep.mubr.f32.mxu0 0.0
    %934 = vmatmul.mubr.f32.gmra.mrb[0].mxu0 %v796
    %v935 = vpop.f32.mrb[0].mxu0
    %v936 = vadd.f32 0.0, %v935
    %v937 = vpop.f32.mrb[0].mxu0
    %938 = vdwg.mxu0
    %v940 = vlaneseq
    %v941 = vshrl.u32 %v940, 7
    %v942 = vsub.s32 0, %v941
    %v943 = vrot.slane %v210, %v942
    %v944 = vlaneseq
    %v945 = vshrl.u32 %v944, 7
    %v946 = vsub.s32 1, %v945
    %v947 = vrot.slane %v210, %v946
    %v948 = vlaneseq
    %v949 = vshrl.u32 %v948, 7
    %v950 = vsub.s32 2, %v949
    %v951 = vrot.slane %v210, %v950
    %v955 = vadd.f32 %v721, %v943
    %v956 = vadd.f32 %v723, %v947
    %v957 = vadd.f32 %v792, %v951
    %v958 = vadd.f32 %v865, %v943
    %v959 = vadd.f32 %v867, %v947
    %v960 = vadd.f32 %v936, %v951
    %v961 = vadd.f32 %v955, %v334
    %v962 = vadd.f32 %v958, %v340
    %v963 = vxor.u32 %v961, 2147483648
    %v964 = vxor.u32 %v962, 2147483648
    %v965 = vmul.f32 %v963, 1.442695
    %v966 = vpow.pop %v965
    %v967 = vmul.f32 %v964, 1.442695
    %v968 = vpow.pop %v967
    %v969 = vadd.f32 %v966, 1.0
    %v970 = vadd.f32 %v968, 1.0
    %v971 = vrcp.pop %v969
    %v972 = vmul.f32 1.0, %v971
    %v973 = vrcp.pop %v970
    %v974 = vmul.f32 1.0, %v973
    %v975 = vadd.f32 %v956, %v336
    %v976 = vadd.f32 %v959, %v342
    %v977 = vxor.u32 %v975, 2147483648
    %v978 = vxor.u32 %v976, 2147483648
    %v979 = vmul.f32 %v977, 1.442695
    %v980 = vpow.pop %v979
    %v981 = vmul.f32 %v978, 1.442695
    %v982 = vpow.pop %v981
    %v983 = vadd.f32 %v980, 1.0
    %v984 = vadd.f32 %v982, 1.0
    %v985 = vrcp.pop %v983
    %v986 = vmul.f32 1.0, %v985
    %v987 = vrcp.pop %v984
    %v988 = vmul.f32 1.0, %v987
    %v989 = vmul.f32 %v972, %v411
    %v990 = vmul.f32 %v974, %v417
    %v991 = vadd.f32 %v957, %v989
    %v992 = vadd.f32 %v960, %v990
    %v993 = vtanh.pop %v991
    %v994 = vtanh.pop %v992
    %v995 = vsub.f32 %v218, %v993
    %v996 = vsub.f32 %v219, %v994
    %v997 = vmul.f32 %v986, %v995
    %v998 = vmul.f32 %v988, %v996
    %v999 = vadd.f32 %v993, %v997
    %v1000 = vadd.f32 %v994, %v998
    %1001 = vmatprep.subr.mxu0 %v65
    %1002 = vmatpush1.msra.mxu0 %v64
    %1003 = vmatprep.subr.mxu0 %v74
    %1004 = vmatpush1.msra.mxu0 %v73
    %1005 = vmatprep.subr.mxu0 %v83
    %1006 = vmatpush1.msra.mxu0 %v82
    %1007 = vmatprep.subr.mxu0 %v92
    %1008 = vmatpush1.msra.mxu0 %v91
    %1009 = vmatprep.subr.mxu0 %v101
    %1010 = vmatpush1.msra.mxu0 %v100
    %1011 = vmatprep.subr.mxu0 %v110
    %1012 = vmatpush1.msra.mxu0 %v109
    %1013 = vmatprep.subr.mxu0 %v119
    %1014 = vmatpush1.msra.mxu0 %v118
    %1015 = vmatprep.subr.mxu0 %v128
    %1016 = vmatpush1.msra.mxu0 %v127
    %1017 = vmatprep.subr.mxu0 %v137
    %1018 = vmatpush1.msra.mxu0 %v136
    %1019 = vmatprep.subr.mxu0 %v146
    %1020 = vmatpush1.msra.mxu0 %v145
    %1021 = vmatprep.subr.mxu0 %v155
    %1022 = vmatpush1.msra.mxu0 %v154
    %1023 = vmatprep.subr.mxu0 %v164
    %1024 = vmatpush1.msra.mxu0 %v163
    %1025 = vmatprep.subr.mxu0 %v173
    %1026 = vmatpush1.msra.mxu0 %v172
    %1027 = vmatprep.subr.mxu0 %v182
    %1028 = vmatpush1.msra.mxu0 %v181
    %1029 = vmatprep.subr.mxu0 %v191
    %1030 = vmatpush1.msra.mxu0 %v190
    %1031 = vmatprep.subr.mxu0 %v200
    %1032 = vmatpush1.msra.mxu0 %v199
    %1033 = vmatprep.subr.mxu0 0.0
    %1034 = vmatpush1.msra.mxu0 0.0
    %1035 = vmatprep.subr.mxu0 0.0
    %1036 = vmatpush1.msra.mxu0 0.0
    %1037 = vmatprep.subr.mxu0 0.0
    %1038 = vmatpush1.msra.mxu0 0.0
    %1039 = vmatprep.subr.mxu0 0.0
    %1040 = vmatpush1.msra.mxu0 0.0
    %1041 = vmatprep.subr.mxu0 0.0
    %1042 = vmatpush1.msra.mxu0 0.0
    %1043 = vmatprep.subr.mxu0 0.0
    %1044 = vmatpush1.msra.mxu0 0.0
    %1045 = vmatprep.subr.mxu0 0.0
    %1046 = vmatpush1.msra.mxu0 0.0
    %1047 = vmatprep.subr.mxu0 0.0
    %1048 = vmatpush1.msra.mxu0 0.0
    %1049 = vmatprep.subr.mxu0 0.0
    %1050 = vmatpush1.msra.mxu0 0.0
    %1051 = vmatprep.subr.mxu0 0.0
    %1052 = vmatpush1.msra.mxu0 0.0
    %1053 = vmatprep.subr.mxu0 0.0
    %1054 = vmatpush1.msra.mxu0 0.0
    %1055 = vmatprep.subr.mxu0 0.0
    %1056 = vmatpush1.msra.mxu0 0.0
    %1057 = vmatprep.subr.mxu0 0.0
    %1058 = vmatpush1.msra.mxu0 0.0
    %1059 = vmatprep.subr.mxu0 0.0
    %1060 = vmatpush1.msra.mxu0 0.0
    %1061 = vmatprep.subr.mxu0 0.0
    %1062 = vmatpush1.msra.mxu0 0.0
    %1063 = vmatprep.subr.mxu0 0.0
    %1064 = vmatpush1.msra.mxu0 0.0
    %1065 = vmatprep.mubr.f32.mxu0 0.0
    %1066 = vmatmul.mubr.f32.gmra.mrb[0].mxu0 %v999
    %v1067 = vpop.f32.mrb[0].mxu0
    %v1068 = vadd.f32 %v225, %v1067
    %v1069 = vpop.f32.mrb[0].mxu0
    %v1070 = vadd.f32 %v229, %v1069
    %1071 = vmatprep.mubr.f32.mxu0 0.0
    %1072 = vmatmul.mubr.f32.gmra.mrb[0].mxu0 %v1000
    %v1073 = vpop.f32.mrb[0].mxu0
    %v1074 = vadd.f32 %v225, %v1073
    %v1075 = vpop.f32.mrb[0].mxu0
    %v1076 = vadd.f32 %v229, %v1075
    %1077 = vdwg.mxu0
    %1078 = vmatprep.subr.mxu0 %v67
    %1079 = vmatpush1.msra.mxu0 %v66
    %1080 = vmatprep.subr.mxu0 %v76
    %1081 = vmatpush1.msra.mxu0 %v75
    %1082 = vmatprep.subr.mxu0 %v85
    %1083 = vmatpush1.msra.mxu0 %v84
    %1084 = vmatprep.subr.mxu0 %v94
    %1085 = vmatpush1.msra.mxu0 %v93
    %1086 = vmatprep.subr.mxu0 %v103
    %1087 = vmatpush1.msra.mxu0 %v102
    %1088 = vmatprep.subr.mxu0 %v112
    %1089 = vmatpush1.msra.mxu0 %v111
    %1090 = vmatprep.subr.mxu0 %v121
    %1091 = vmatpush1.msra.mxu0 %v120
    %1092 = vmatprep.subr.mxu0 %v130
    %1093 = vmatpush1.msra.mxu0 %v129
    %1094 = vmatprep.subr.mxu0 %v139
    %1095 = vmatpush1.msra.mxu0 %v138
    %1096 = vmatprep.subr.mxu0 %v148
    %1097 = vmatpush1.msra.mxu0 %v147
    %1098 = vmatprep.subr.mxu0 %v157
    %1099 = vmatpush1.msra.mxu0 %v156
    %1100 = vmatprep.subr.mxu0 %v166
    %1101 = vmatpush1.msra.mxu0 %v165
    %1102 = vmatprep.subr.mxu0 %v175
    %1103 = vmatpush1.msra.mxu0 %v174
    %1104 = vmatprep.subr.mxu0 %v184
    %1105 = vmatpush1.msra.mxu0 %v183
    %1106 = vmatprep.subr.mxu0 %v193
    %1107 = vmatpush1.msra.mxu0 %v192
    %1108 = vmatprep.subr.mxu0 %v202
    %1109 = vmatpush1.msra.mxu0 %v201
    %1110 = vmatprep.subr.mxu0 0.0
    %1111 = vmatpush1.msra.mxu0 0.0
    %1112 = vmatprep.subr.mxu0 0.0
    %1113 = vmatpush1.msra.mxu0 0.0
    %1114 = vmatprep.subr.mxu0 0.0
    %1115 = vmatpush1.msra.mxu0 0.0
    %1116 = vmatprep.subr.mxu0 0.0
    %1117 = vmatpush1.msra.mxu0 0.0
    %1118 = vmatprep.subr.mxu0 0.0
    %1119 = vmatpush1.msra.mxu0 0.0
    %1120 = vmatprep.subr.mxu0 0.0
    %1121 = vmatpush1.msra.mxu0 0.0
    %1122 = vmatprep.subr.mxu0 0.0
    %1123 = vmatpush1.msra.mxu0 0.0
    %1124 = vmatprep.subr.mxu0 0.0
    %1125 = vmatpush1.msra.mxu0 0.0
    %1126 = vmatprep.subr.mxu0 0.0
    %1127 = vmatpush1.msra.mxu0 0.0
    %1128 = vmatprep.subr.mxu0 0.0
    %1129 = vmatpush1.msra.mxu0 0.0
    %1130 = vmatprep.subr.mxu0 0.0
    %1131 = vmatpush1.msra.mxu0 0.0
    %1132 = vmatprep.subr.mxu0 0.0
    %1133 = vmatpush1.msra.mxu0 0.0
    %1134 = vmatprep.subr.mxu0 0.0
    %1135 = vmatpush1.msra.mxu0 0.0
    %1136 = vmatprep.subr.mxu0 0.0
    %1137 = vmatpush1.msra.mxu0 0.0
    %1138 = vmatprep.subr.mxu0 0.0
    %1139 = vmatpush1.msra.mxu0 0.0
    %1140 = vmatprep.subr.mxu0 0.0
    %1141 = vmatpush1.msra.mxu0 0.0
    %1142 = vmatprep.mubr.f32.mxu0 0.0
    %1143 = vmatmul.mubr.f32.gmra.mrb[0].mxu0 %v999
    %v1144 = vpop.f32.mrb[0].mxu0
    %v1145 = vadd.f32 %v233, %v1144
    %v1146 = vpop.f32.mrb[0].mxu0
    %v1147 = vadd.f32 %v237, %v1146
    %1148 = vmatprep.mubr.f32.mxu0 0.0
    %1149 = vmatmul.mubr.f32.gmra.mrb[0].mxu0 %v1000
    %v1150 = vpop.f32.mrb[0].mxu0
    %v1151 = vadd.f32 %v233, %v1150
    %v1152 = vpop.f32.mrb[0].mxu0
    %v1153 = vadd.f32 %v237, %v1152
    %1154 = vdwg.mxu0
    %1155 = vmatprep.subr.mxu0 %v69
    %1156 = vmatpush1.msra.mxu0 %v68
    %1157 = vmatprep.subr.mxu0 %v78
    %1158 = vmatpush1.msra.mxu0 %v77
    %1159 = vmatprep.subr.mxu0 %v87
    %1160 = vmatpush1.msra.mxu0 %v86
    %1161 = vmatprep.subr.mxu0 %v96
    %1162 = vmatpush1.msra.mxu0 %v95
    %1163 = vmatprep.subr.mxu0 %v105
    %1164 = vmatpush1.msra.mxu0 %v104
    %1165 = vmatprep.subr.mxu0 %v114
    %1166 = vmatpush1.msra.mxu0 %v113
    %1167 = vmatprep.subr.mxu0 %v123
    %1168 = vmatpush1.msra.mxu0 %v122
    %1169 = vmatprep.subr.mxu0 %v132
    %1170 = vmatpush1.msra.mxu0 %v131
    %1171 = vmatprep.subr.mxu0 %v141
    %1172 = vmatpush1.msra.mxu0 %v140
    %1173 = vmatprep.subr.mxu0 %v150
    %1174 = vmatpush1.msra.mxu0 %v149
    %1175 = vmatprep.subr.mxu0 %v159
    %1176 = vmatpush1.msra.mxu0 %v158
    %1177 = vmatprep.subr.mxu0 %v168
    %1178 = vmatpush1.msra.mxu0 %v167
    %1179 = vmatprep.subr.mxu0 %v177
    %1180 = vmatpush1.msra.mxu0 %v176
    %1181 = vmatprep.subr.mxu0 %v186
    %1182 = vmatpush1.msra.mxu0 %v185
    %1183 = vmatprep.subr.mxu0 %v195
    %1184 = vmatpush1.msra.mxu0 %v194
    %1185 = vmatprep.subr.mxu0 %v204
    %1186 = vmatpush1.msra.mxu0 %v203
    %1187 = vmatprep.subr.mxu0 0.0
    %1188 = vmatpush1.msra.mxu0 0.0
    %1189 = vmatprep.subr.mxu0 0.0
    %1190 = vmatpush1.msra.mxu0 0.0
    %1191 = vmatprep.subr.mxu0 0.0
    %1192 = vmatpush1.msra.mxu0 0.0
    %1193 = vmatprep.subr.mxu0 0.0
    %1194 = vmatpush1.msra.mxu0 0.0
    %1195 = vmatprep.subr.mxu0 0.0
    %1196 = vmatpush1.msra.mxu0 0.0
    %1197 = vmatprep.subr.mxu0 0.0
    %1198 = vmatpush1.msra.mxu0 0.0
    %1199 = vmatprep.subr.mxu0 0.0
    %1200 = vmatpush1.msra.mxu0 0.0
    %1201 = vmatprep.subr.mxu0 0.0
    %1202 = vmatpush1.msra.mxu0 0.0
    %1203 = vmatprep.subr.mxu0 0.0
    %1204 = vmatpush1.msra.mxu0 0.0
    %1205 = vmatprep.subr.mxu0 0.0
    %1206 = vmatpush1.msra.mxu0 0.0
    %1207 = vmatprep.subr.mxu0 0.0
    %1208 = vmatpush1.msra.mxu0 0.0
    %1209 = vmatprep.subr.mxu0 0.0
    %1210 = vmatpush1.msra.mxu0 0.0
    %1211 = vmatprep.subr.mxu0 0.0
    %1212 = vmatpush1.msra.mxu0 0.0
    %1213 = vmatprep.subr.mxu0 0.0
    %1214 = vmatpush1.msra.mxu0 0.0
    %1215 = vmatprep.subr.mxu0 0.0
    %1216 = vmatpush1.msra.mxu0 0.0
    %1217 = vmatprep.subr.mxu0 0.0
    %1218 = vmatpush1.msra.mxu0 0.0
    %1219 = vmatprep.mubr.f32.mxu0 0.0
    %1220 = vmatmul.mubr.f32.gmra.mrb[0].mxu0 %v999
    %v1221 = vpop.f32.mrb[0].mxu0
    %v1222 = vadd.f32 %v241, %v1221
    %v1223 = vpop.f32.mrb[0].mxu0
    %v1224 = vadd.f32 %v245, %v1223
    %1225 = vmatprep.mubr.f32.mxu0 0.0
    %1226 = vmatmul.mubr.f32.gmra.mrb[0].mxu0 %v1000
    %v1227 = vpop.f32.mrb[0].mxu0
    %v1228 = vadd.f32 %v241, %v1227
    %v1229 = vpop.f32.mrb[0].mxu0
    %v1230 = vadd.f32 %v245, %v1229
    %1231 = vdwg.mxu0
    %1232 = vmatprep.subr.mxu0 %v71
    %1233 = vmatpush1.msra.mxu0 %v70
    %1234 = vmatprep.subr.mxu0 %v80
    %1235 = vmatpush1.msra.mxu0 %v79
    %1236 = vmatprep.subr.mxu0 %v89
    %1237 = vmatpush1.msra.mxu0 %v88
    %1238 = vmatprep.subr.mxu0 %v98
    %1239 = vmatpush1.msra.mxu0 %v97
    %1240 = vmatprep.subr.mxu0 %v107
    %1241 = vmatpush1.msra.mxu0 %v106
    %1242 = vmatprep.subr.mxu0 %v116
    %1243 = vmatpush1.msra.mxu0 %v115
    %1244 = vmatprep.subr.mxu0 %v125
    %1245 = vmatpush1.msra.mxu0 %v124
    %1246 = vmatprep.subr.mxu0 %v134
    %1247 = vmatpush1.msra.mxu0 %v133
    %1248 = vmatprep.subr.mxu0 %v143
    %1249 = vmatpush1.msra.mxu0 %v142
    %1250 = vmatprep.subr.mxu0 %v152
    %1251 = vmatpush1.msra.mxu0 %v151
    %1252 = vmatprep.subr.mxu0 %v161
    %1253 = vmatpush1.msra.mxu0 %v160
    %1254 = vmatprep.subr.mxu0 %v170
    %1255 = vmatpush1.msra.mxu0 %v169
    %1256 = vmatprep.subr.mxu0 %v179
    %1257 = vmatpush1.msra.mxu0 %v178
    %1258 = vmatprep.subr.mxu0 %v188
    %1259 = vmatpush1.msra.mxu0 %v187
    %1260 = vmatprep.subr.mxu0 %v197
    %1261 = vmatpush1.msra.mxu0 %v196
    %1262 = vmatprep.subr.mxu0 %v206
    %1263 = vmatpush1.msra.mxu0 %v205
    %1264 = vmatprep.subr.mxu0 0.0
    %1265 = vmatpush1.msra.mxu0 0.0
    %1266 = vmatprep.subr.mxu0 0.0
    %1267 = vmatpush1.msra.mxu0 0.0
    %1268 = vmatprep.subr.mxu0 0.0
    %1269 = vmatpush1.msra.mxu0 0.0
    %1270 = vmatprep.subr.mxu0 0.0
    %1271 = vmatpush1.msra.mxu0 0.0
    %1272 = vmatprep.subr.mxu0 0.0
    %1273 = vmatpush1.msra.mxu0 0.0
    %1274 = vmatprep.subr.mxu0 0.0
    %1275 = vmatpush1.msra.mxu0 0.0
    %1276 = vmatprep.subr.mxu0 0.0
    %1277 = vmatpush1.msra.mxu0 0.0
    %1278 = vmatprep.subr.mxu0 0.0
    %1279 = vmatpush1.msra.mxu0 0.0
    %1280 = vmatprep.subr.mxu0 0.0
    %1281 = vmatpush1.msra.mxu0 0.0
    %1282 = vmatprep.subr.mxu0 0.0
    %1283 = vmatpush1.msra.mxu0 0.0
    %1284 = vmatprep.subr.mxu0 0.0
    %1285 = vmatpush1.msra.mxu0 0.0
    %1286 = vmatprep.subr.mxu0 0.0
    %1287 = vmatpush1.msra.mxu0 0.0
    %1288 = vmatprep.subr.mxu0 0.0
    %1289 = vmatpush1.msra.mxu0 0.0
    %1290 = vmatprep.subr.mxu0 0.0
    %1291 = vmatpush1.msra.mxu0 0.0
    %1292 = vmatprep.subr.mxu0 0.0
    %1293 = vmatpush1.msra.mxu0 0.0
    %1294 = vmatprep.subr.mxu0 0.0
    %1295 = vmatpush1.msra.mxu0 0.0
    %1296 = vmatprep.mubr.f32.mxu0 0.0
    %1297 = vmatmul.mubr.f32.gmra.mrb[0].mxu0 %v999
    %v1298 = vpop.f32.mrb[0].mxu0
    %v1299 = vadd.f32 %v249, %v1298
    %v1300 = vpop.f32.mrb[0].mxu0
    %v1301 = vadd.f32 %v253, %v1300
    %1302 = vmatprep.mubr.f32.mxu0 0.0
    %1303 = vmatmul.mubr.f32.gmra.mrb[0].mxu0 %v1000
    %v1304 = vpop.f32.mrb[0].mxu0
    %v1305 = vadd.f32 %v249, %v1304
    %v1306 = vpop.f32.mrb[0].mxu0
    %v1307 = vadd.f32 %v253, %v1306
    %1308 = vdwg.mxu0
    %1309 = vmatprep.subr.mxu0 0.0
    %1310 = vmatpush1.msra.mxu0 %v72
    %1311 = vmatprep.subr.mxu0 0.0
    %1312 = vmatpush1.msra.mxu0 %v81
    %1313 = vmatprep.subr.mxu0 0.0
    %1314 = vmatpush1.msra.mxu0 %v90
    %1315 = vmatprep.subr.mxu0 0.0
    %1316 = vmatpush1.msra.mxu0 %v99
    %1317 = vmatprep.subr.mxu0 0.0
    %1318 = vmatpush1.msra.mxu0 %v108
    %1319 = vmatprep.subr.mxu0 0.0
    %1320 = vmatpush1.msra.mxu0 %v117
    %1321 = vmatprep.subr.mxu0 0.0
    %1322 = vmatpush1.msra.mxu0 %v126
    %1323 = vmatprep.subr.mxu0 0.0
    %1324 = vmatpush1.msra.mxu0 %v135
    %1325 = vmatprep.subr.mxu0 0.0
    %1326 = vmatpush1.msra.mxu0 %v144
    %1327 = vmatprep.subr.mxu0 0.0
    %1328 = vmatpush1.msra.mxu0 %v153
    %1329 = vmatprep.subr.mxu0 0.0
    %1330 = vmatpush1.msra.mxu0 %v162
    %1331 = vmatprep.subr.mxu0 0.0
    %1332 = vmatpush1.msra.mxu0 %v171
    %1333 = vmatprep.subr.mxu0 0.0
    %1334 = vmatpush1.msra.mxu0 %v180
    %1335 = vmatprep.subr.mxu0 0.0
    %1336 = vmatpush1.msra.mxu0 %v189
    %1337 = vmatprep.subr.mxu0 0.0
    %1338 = vmatpush1.msra.mxu0 %v198
    %1339 = vmatprep.subr.mxu0 0.0
    %1340 = vmatpush1.msra.mxu0 %v207
    %1341 = vmatprep.subr.mxu0 0.0
    %1342 = vmatpush1.msra.mxu0 0.0
    %1343 = vmatprep.subr.mxu0 0.0
    %1344 = vmatpush1.msra.mxu0 0.0
    %1345 = vmatprep.subr.mxu0 0.0
    %1346 = vmatpush1.msra.mxu0 0.0
    %1347 = vmatprep.subr.mxu0 0.0
    %1348 = vmatpush1.msra.mxu0 0.0
    %1349 = vmatprep.subr.mxu0 0.0
    %1350 = vmatpush1.msra.mxu0 0.0
    %1351 = vmatprep.subr.mxu0 0.0
    %1352 = vmatpush1.msra.mxu0 0.0
    %1353 = vmatprep.subr.mxu0 0.0
    %1354 = vmatpush1.msra.mxu0 0.0
    %1355 = vmatprep.subr.mxu0 0.0
    %1356 = vmatpush1.msra.mxu0 0.0
    %1357 = vmatprep.subr.mxu0 0.0
    %1358 = vmatpush1.msra.mxu0 0.0
    %1359 = vmatprep.subr.mxu0 0.0
    %1360 = vmatpush1.msra.mxu0 0.0
    %1361 = vmatprep.subr.mxu0 0.0
    %1362 = vmatpush1.msra.mxu0 0.0
    %1363 = vmatprep.subr.mxu0 0.0
    %1364 = vmatpush1.msra.mxu0 0.0
    %1365 = vmatprep.subr.mxu0 0.0
    %1366 = vmatpush1.msra.mxu0 0.0
    %1367 = vmatprep.subr.mxu0 0.0
    %1368 = vmatpush1.msra.mxu0 0.0
    %1369 = vmatprep.subr.mxu0 0.0
    %1370 = vmatpush1.msra.mxu0 0.0
    %1371 = vmatprep.subr.mxu0 0.0
    %1372 = vmatpush1.msra.mxu0 0.0
    %1373 = vmatprep.mubr.f32.mxu0 0.0
    %1374 = vmatmul.mubr.f32.gmra.mrb[0].mxu0 %v999
    %v1375 = vpop.f32.mrb[0].mxu0
    %v1376 = vadd.f32 %v257, %v1375
    %v1377 = vpop.f32.mrb[0].mxu0
    %1378 = vmatprep.mubr.f32.mxu0 0.0
    %1379 = vmatmul.mubr.f32.gmra.mrb[0].mxu0 %v1000
    %v1380 = vpop.f32.mrb[0].mxu0
    %v1381 = vadd.f32 %v257, %v1380
    %v1382 = vpop.f32.mrb[0].mxu0
    %1383 = vdwg.mxu0
    %1384 = vmatprep.subr.mxu0 %v1222
    %1385 = vmatpush1.msra.mxu0 %v1147
    %1386 = vmatprep.subr.mxu0 %v1301
    %1387 = vmatpush1.msra.mxu0 %v1299
    %1388 = vmatprep.subr.mxu0 0.0
    %1389 = vmatpush1.msra.mxu0 0.0
    %1390 = vmatprep.subr.mxu0 0.0
    %1391 = vmatpush1.msra.mxu0 0.0
    %1392 = vmatprep.subr.mxu0 0.0
    %1393 = vmatpush1.msra.mxu0 0.0
    %1394 = vmatprep.subr.mxu0 0.0
    %1395 = vmatpush1.msra.mxu0 0.0
    %1396 = vmatprep.subr.mxu0 0.0
    %1397 = vmatpush1.msra.mxu0 0.0
    %1398 = vmatprep.subr.mxu0 0.0
    %1399 = vmatpush1.msra.mxu0 0.0
    %1400 = vmatprep.subr.mxu0 0.0
    %1401 = vmatpush1.msra.mxu0 0.0
    %1402 = vmatprep.subr.mxu0 0.0
    %1403 = vmatpush1.msra.mxu0 0.0
    %1404 = vmatprep.subr.mxu0 0.0
    %1405 = vmatpush1.msra.mxu0 0.0
    %1406 = vmatprep.subr.mxu0 0.0
    %1407 = vmatpush1.msra.mxu0 0.0
    %1408 = vmatprep.subr.mxu0 0.0
    %1409 = vmatpush1.msra.mxu0 0.0
    %1410 = vmatprep.subr.mxu0 0.0
    %1411 = vmatpush1.msra.mxu0 0.0
    %1412 = vmatprep.subr.mxu0 0.0
    %1413 = vmatpush1.msra.mxu0 0.0
    %1414 = vmatprep.subr.mxu0 0.0
    %1415 = vmatpush1.msra.mxu0 0.0
    %1416 = vmatprep.subr.mxu0 0.0
    %1417 = vmatpush1.msra.mxu0 0.0
    %1418 = vmatprep.subr.mxu0 0.0
    %1419 = vmatpush1.msra.mxu0 0.0
    %1420 = vmatprep.subr.mxu0 0.0
    %1421 = vmatpush1.msra.mxu0 0.0
    %1422 = vmatprep.subr.mxu0 0.0
    %1423 = vmatpush1.msra.mxu0 0.0
    %1424 = vmatprep.subr.mxu0 0.0
    %1425 = vmatpush1.msra.mxu0 0.0
    %1426 = vmatprep.subr.mxu0 0.0
    %1427 = vmatpush1.msra.mxu0 0.0
    %1428 = vmatprep.subr.mxu0 0.0
    %1429 = vmatpush1.msra.mxu0 0.0
    %1430 = vmatprep.subr.mxu0 0.0
    %1431 = vmatpush1.msra.mxu0 0.0
    %1432 = vmatprep.subr.mxu0 0.0
    %1433 = vmatpush1.msra.mxu0 0.0
    %1434 = vmatprep.subr.mxu0 0.0
    %1435 = vmatpush1.msra.mxu0 0.0
    %1436 = vmatprep.subr.mxu0 0.0
    %1437 = vmatpush1.msra.mxu0 0.0
    %1438 = vmatprep.subr.mxu0 0.0
    %1439 = vmatpush1.msra.mxu0 0.0
    %1440 = vmatprep.subr.mxu0 0.0
    %1441 = vmatpush1.msra.mxu0 0.0
    %1442 = vmatprep.subr.mxu0 0.0
    %1443 = vmatpush1.msra.mxu0 0.0
    %1444 = vmatprep.subr.mxu0 0.0
    %1445 = vmatpush1.msra.mxu0 0.0
    %1446 = vmatprep.subr.mxu0 0.0
    %1447 = vmatpush1.msra.mxu0 0.0
    %1448 = vmatprep.mubr.f32.mxu0 0.0
    %1449 = vmatmul.mubr.f32.gmra.mrb[0].mxu0 %v652
    %v1450 = vpop.f32.mrb[0].mxu0
    %v1451 = vadd.f32 0.0, %v1450
    %v1452 = vpop.f32.mrb[0].mxu0
    %v1453 = vadd.f32 0.0, %v1452
    %1454 = vdwg.mxu0
    %1455 = vmatprep.subr.mxu0 0.0
    %1456 = vmatpush1.msra.mxu0 %v1224
    %1457 = vmatprep.subr.mxu0 0.0
    %1458 = vmatpush1.msra.mxu0 %v1376
    %1459 = vmatprep.subr.mxu0 0.0
    %1460 = vmatpush1.msra.mxu0 0.0
    %1461 = vmatprep.subr.mxu0 0.0
    %1462 = vmatpush1.msra.mxu0 0.0
    %1463 = vmatprep.subr.mxu0 0.0
    %1464 = vmatpush1.msra.mxu0 0.0
    %1465 = vmatprep.subr.mxu0 0.0
    %1466 = vmatpush1.msra.mxu0 0.0
    %1467 = vmatprep.subr.mxu0 0.0
    %1468 = vmatpush1.msra.mxu0 0.0
    %1469 = vmatprep.subr.mxu0 0.0
    %1470 = vmatpush1.msra.mxu0 0.0
    %1471 = vmatprep.subr.mxu0 0.0
    %1472 = vmatpush1.msra.mxu0 0.0
    %1473 = vmatprep.subr.mxu0 0.0
    %1474 = vmatpush1.msra.mxu0 0.0
    %1475 = vmatprep.subr.mxu0 0.0
    %1476 = vmatpush1.msra.mxu0 0.0
    %1477 = vmatprep.subr.mxu0 0.0
    %1478 = vmatpush1.msra.mxu0 0.0
    %1479 = vmatprep.subr.mxu0 0.0
    %1480 = vmatpush1.msra.mxu0 0.0
    %1481 = vmatprep.subr.mxu0 0.0
    %1482 = vmatpush1.msra.mxu0 0.0
    %1483 = vmatprep.subr.mxu0 0.0
    %1484 = vmatpush1.msra.mxu0 0.0
    %1485 = vmatprep.subr.mxu0 0.0
    %1486 = vmatpush1.msra.mxu0 0.0
    %1487 = vmatprep.subr.mxu0 0.0
    %1488 = vmatpush1.msra.mxu0 0.0
    %1489 = vmatprep.subr.mxu0 0.0
    %1490 = vmatpush1.msra.mxu0 0.0
    %1491 = vmatprep.subr.mxu0 0.0
    %1492 = vmatpush1.msra.mxu0 0.0
    %1493 = vmatprep.subr.mxu0 0.0
    %1494 = vmatpush1.msra.mxu0 0.0
    %1495 = vmatprep.subr.mxu0 0.0
    %1496 = vmatpush1.msra.mxu0 0.0
    %1497 = vmatprep.subr.mxu0 0.0
    %1498 = vmatpush1.msra.mxu0 0.0
    %1499 = vmatprep.subr.mxu0 0.0
    %1500 = vmatpush1.msra.mxu0 0.0
    %1501 = vmatprep.subr.mxu0 0.0
    %1502 = vmatpush1.msra.mxu0 0.0
    %1503 = vmatprep.subr.mxu0 0.0
    %1504 = vmatpush1.msra.mxu0 0.0
    %1505 = vmatprep.subr.mxu0 0.0
    %1506 = vmatpush1.msra.mxu0 0.0
    %1507 = vmatprep.subr.mxu0 0.0
    %1508 = vmatpush1.msra.mxu0 0.0
    %1509 = vmatprep.subr.mxu0 0.0
    %1510 = vmatpush1.msra.mxu0 0.0
    %1511 = vmatprep.subr.mxu0 0.0
    %1512 = vmatpush1.msra.mxu0 0.0
    %1513 = vmatprep.subr.mxu0 0.0
    %1514 = vmatpush1.msra.mxu0 0.0
    %1515 = vmatprep.subr.mxu0 0.0
    %1516 = vmatpush1.msra.mxu0 0.0
    %1517 = vmatprep.subr.mxu0 0.0
    %1518 = vmatpush1.msra.mxu0 0.0
    %1519 = vmatprep.mubr.f32.mxu0 0.0
    %1520 = vmatmul.mubr.f32.gmra.mrb[0].mxu0 %v652
    %v1521 = vpop.f32.mrb[0].mxu0
    %v1522 = vadd.f32 0.0, %v1521
    %v1523 = vpop.f32.mrb[0].mxu0
    %1524 = vdwg.mxu0
    %1525 = vmatprep.subr.mxu0 %v1228
    %1526 = vmatpush1.msra.mxu0 %v1153
    %1527 = vmatprep.subr.mxu0 %v1307
    %1528 = vmatpush1.msra.mxu0 %v1305
    %1529 = vmatprep.subr.mxu0 0.0
    %1530 = vmatpush1.msra.mxu0 0.0
    %1531 = vmatprep.subr.mxu0 0.0
    %1532 = vmatpush1.msra.mxu0 0.0
    %1533 = vmatprep.subr.mxu0 0.0
    %1534 = vmatpush1.msra.mxu0 0.0
    %1535 = vmatprep.subr.mxu0 0.0
    %1536 = vmatpush1.msra.mxu0 0.0
    %1537 = vmatprep.subr.mxu0 0.0
    %1538 = vmatpush1.msra.mxu0 0.0
    %1539 = vmatprep.subr.mxu0 0.0
    %1540 = vmatpush1.msra.mxu0 0.0
    %1541 = vmatprep.subr.mxu0 0.0
    %1542 = vmatpush1.msra.mxu0 0.0
    %1543 = vmatprep.subr.mxu0 0.0
    %1544 = vmatpush1.msra.mxu0 0.0
    %1545 = vmatprep.subr.mxu0 0.0
    %1546 = vmatpush1.msra.mxu0 0.0
    %1547 = vmatprep.subr.mxu0 0.0
    %1548 = vmatpush1.msra.mxu0 0.0
    %1549 = vmatprep.subr.mxu0 0.0
    %1550 = vmatpush1.msra.mxu0 0.0
    %1551 = vmatprep.subr.mxu0 0.0
    %1552 = vmatpush1.msra.mxu0 0.0
    %1553 = vmatprep.subr.mxu0 0.0
    %1554 = vmatpush1.msra.mxu0 0.0
    %1555 = vmatprep.subr.mxu0 0.0
    %1556 = vmatpush1.msra.mxu0 0.0
    %1557 = vmatprep.subr.mxu0 0.0
    %1558 = vmatpush1.msra.mxu0 0.0
    %1559 = vmatprep.subr.mxu0 0.0
    %1560 = vmatpush1.msra.mxu0 0.0
    %1561 = vmatprep.subr.mxu0 0.0
    %1562 = vmatpush1.msra.mxu0 0.0
    %1563 = vmatprep.subr.mxu0 0.0
    %1564 = vmatpush1.msra.mxu0 0.0
    %1565 = vmatprep.subr.mxu0 0.0
    %1566 = vmatpush1.msra.mxu0 0.0
    %1567 = vmatprep.subr.mxu0 0.0
    %1568 = vmatpush1.msra.mxu0 0.0
    %1569 = vmatprep.subr.mxu0 0.0
    %1570 = vmatpush1.msra.mxu0 0.0
    %1571 = vmatprep.subr.mxu0 0.0
    %1572 = vmatpush1.msra.mxu0 0.0
    %1573 = vmatprep.subr.mxu0 0.0
    %1574 = vmatpush1.msra.mxu0 0.0
    %1575 = vmatprep.subr.mxu0 0.0
    %1576 = vmatpush1.msra.mxu0 0.0
    %1577 = vmatprep.subr.mxu0 0.0
    %1578 = vmatpush1.msra.mxu0 0.0
    %1579 = vmatprep.subr.mxu0 0.0
    %1580 = vmatpush1.msra.mxu0 0.0
    %1581 = vmatprep.subr.mxu0 0.0
    %1582 = vmatpush1.msra.mxu0 0.0
    %1583 = vmatprep.subr.mxu0 0.0
    %1584 = vmatpush1.msra.mxu0 0.0
    %1585 = vmatprep.subr.mxu0 0.0
    %1586 = vmatpush1.msra.mxu0 0.0
    %1587 = vmatprep.subr.mxu0 0.0
    %1588 = vmatpush1.msra.mxu0 0.0
    %1589 = vmatprep.mubr.f32.mxu0 0.0
    %1590 = vmatmul.mubr.f32.gmra.mrb[0].mxu0 %v796
    %v1591 = vpop.f32.mrb[0].mxu0
    %v1592 = vadd.f32 0.0, %v1591
    %v1593 = vpop.f32.mrb[0].mxu0
    %v1594 = vadd.f32 0.0, %v1593
    %1595 = vdwg.mxu0
    %1596 = vmatprep.subr.mxu0 0.0
    %1597 = vmatpush1.msra.mxu0 %v1230
    %1598 = vmatprep.subr.mxu0 0.0
    %1599 = vmatpush1.msra.mxu0 %v1381
    %1600 = vmatprep.subr.mxu0 0.0
    %1601 = vmatpush1.msra.mxu0 0.0
    %1602 = vmatprep.subr.mxu0 0.0
    %1603 = vmatpush1.msra.mxu0 0.0
    %1604 = vmatprep.subr.mxu0 0.0
    %1605 = vmatpush1.msra.mxu0 0.0
    %1606 = vmatprep.subr.mxu0 0.0
    %1607 = vmatpush1.msra.mxu0 0.0
    %1608 = vmatprep.subr.mxu0 0.0
    %1609 = vmatpush1.msra.mxu0 0.0
    %1610 = vmatprep.subr.mxu0 0.0
    %1611 = vmatpush1.msra.mxu0 0.0
    %1612 = vmatprep.subr.mxu0 0.0
    %1613 = vmatpush1.msra.mxu0 0.0
    %1614 = vmatprep.subr.mxu0 0.0
    %1615 = vmatpush1.msra.mxu0 0.0
    %1616 = vmatprep.subr.mxu0 0.0
    %1617 = vmatpush1.msra.mxu0 0.0
    %1618 = vmatprep.subr.mxu0 0.0
    %1619 = vmatpush1.msra.mxu0 0.0
    %1620 = vmatprep.subr.mxu0 0.0
    %1621 = vmatpush1.msra.mxu0 0.0
    %1622 = vmatprep.subr.mxu0 0.0
    %1623 = vmatpush1.msra.mxu0 0.0
    %1624 = vmatprep.subr.mxu0 0.0
    %1625 = vmatpush1.msra.mxu0 0.0
    %1626 = vmatprep.subr.mxu0 0.0
    %1627 = vmatpush1.msra.mxu0 0.0
    %1628 = vmatprep.subr.mxu0 0.0
    %1629 = vmatpush1.msra.mxu0 0.0
    %1630 = vmatprep.subr.mxu0 0.0
    %1631 = vmatpush1.msra.mxu0 0.0
    %1632 = vmatprep.subr.mxu0 0.0
    %1633 = vmatpush1.msra.mxu0 0.0
    %1634 = vmatprep.subr.mxu0 0.0
    %1635 = vmatpush1.msra.mxu0 0.0
    %1636 = vmatprep.subr.mxu0 0.0
    %1637 = vmatpush1.msra.mxu0 0.0
    %1638 = vmatprep.subr.mxu0 0.0
    %1639 = vmatpush1.msra.mxu0 0.0
    %1640 = vmatprep.subr.mxu0 0.0
    %1641 = vmatpush1.msra.mxu0 0.0
    %1642 = vmatprep.subr.mxu0 0.0
    %1643 = vmatpush1.msra.mxu0 0.0
    %1644 = vmatprep.subr.mxu0 0.0
    %1645 = vmatpush1.msra.mxu0 0.0
    %1646 = vmatprep.subr.mxu0 0.0
    %1647 = vmatpush1.msra.mxu0 0.0
    %1648 = vmatprep.subr.mxu0 0.0
    %1649 = vmatpush1.msra.mxu0 0.0
    %1650 = vmatprep.subr.mxu0 0.0
    %1651 = vmatpush1.msra.mxu0 0.0
    %1652 = vmatprep.subr.mxu0 0.0
    %1653 = vmatpush1.msra.mxu0 0.0
    %1654 = vmatprep.subr.mxu0 0.0
    %1655 = vmatpush1.msra.mxu0 0.0
    %1656 = vmatprep.subr.mxu0 0.0
    %1657 = vmatpush1.msra.mxu0 0.0
    %1658 = vmatprep.subr.mxu0 0.0
    %1659 = vmatpush1.msra.mxu0 0.0
    %1660 = vmatprep.mubr.f32.mxu0 0.0
    %1661 = vmatmul.mubr.f32.gmra.mrb[0].mxu0 %v796
    %v1662 = vpop.f32.mrb[0].mxu0
    %v1663 = vadd.f32 0.0, %v1662
    %v1664 = vpop.f32.mrb[0].mxu0
    %1665 = vdwg.mxu0
    %v1666 = vadd.f32 %v1451, %v943
    %v1667 = vadd.f32 %v1453, %v947
    %v1668 = vadd.f32 %v1522, %v951
    %v1669 = vadd.f32 %v1592, %v943
    %v1670 = vadd.f32 %v1594, %v947
    %v1671 = vadd.f32 %v1663, %v951
    %v1672 = vadd.f32 %v1666, %v1068
    %v1673 = vadd.f32 %v1669, %v1074
    %v1674 = vxor.u32 %v1672, 2147483648
    %v1675 = vxor.u32 %v1673, 2147483648
    %v1676 = vmul.f32 %v1674, 1.442695
    %v1677 = vpow.pop %v1676
    %v1678 = vmul.f32 %v1675, 1.442695
    %v1679 = vpow.pop %v1678
    %v1680 = vadd.f32 %v1677, 1.0
    %v1681 = vadd.f32 %v1679, 1.0
    %v1682 = vrcp.pop %v1680
    %v1683 = vmul.f32 1.0, %v1682
    %v1684 = vrcp.pop %v1681
    %v1685 = vmul.f32 1.0, %v1684
    %v1686 = vadd.f32 %v1667, %v1070
    %v1687 = vadd.f32 %v1670, %v1076
    %v1688 = vxor.u32 %v1686, 2147483648
    %v1689 = vxor.u32 %v1687, 2147483648
    %v1690 = vmul.f32 %v1688, 1.442695
    %v1691 = vpow.pop %v1690
    %v1692 = vmul.f32 %v1689, 1.442695
    %v1693 = vpow.pop %v1692
    %v1694 = vadd.f32 %v1691, 1.0
    %v1695 = vadd.f32 %v1693, 1.0
    %v1696 = vrcp.pop %v1694
    %v1697 = vmul.f32 1.0, %v1696
    %v1698 = vrcp.pop %v1695
    %v1699 = vmul.f32 1.0, %v1698
    %v1700 = vmul.f32 %v1683, %v1145
    %v1701 = vmul.f32 %v1685, %v1151
    %v1702 = vadd.f32 %v1668, %v1700
    %v1703 = vadd.f32 %v1671, %v1701
    %v1704 = vtanh.pop %v1702
    %v1705 = vtanh.pop %v1703
    %v1706 = vsub.f32 %v999, %v1704
    %v1707 = vsub.f32 %v1000, %v1705
    %v1708 = vmul.f32 %v1697, %v1706
    %v1709 = vmul.f32 %v1699, %v1707
    %v1710 = vadd.f32 %v1704, %v1708
    %v1711 = vadd.f32 %v1705, %v1709
    %1712 = vst.msk [vmem:[#allocation9] sm:$0xff] %vm215, %v1710
    %1713 = vst.msk [vmem:[#allocation9 + $0x8] sm:$0xff] %vm215, %v1711
    // Predicated region
    $region34: #{tpu_custom_call.1} parent=1 // pred_check
      _
    $region35: #{tpu_custom_call.1} parent=1 // pred_check_branch
      %1715 = sbr.rel (0) target = $region37
    $region36: #{tpu_custom_call.1} parent=1 // pred_region
      %s1717 = ssub.s32 256, 256
      %1718 = vsyncadd [#allocation5], %s1717
      %s1719 = sshll.u32 [#allocation9], 4
      %s1720 = int_to_ptr.vmem [resolvable:$true] %s1719
      %1725 = dma.vmem_to_hbm [thread:$0]  %s1720, 256, %s5, [#allocation5], 128, 128, 8
    $region37: #{tpu_custom_call.1} parent=1 // pred_fallthru
      _
    // Predicated region
    $region38: #{tpu_custom_call.1} parent=1 // pred_check
      _
    $region39: #{tpu_custom_call.1} parent=1 // pred_check_branch
      %1727 = sbr.rel (0) target = $region41
    $region40: #{tpu_custom_call.1} parent=1 // pred_region
      %1728 = dma.done [#allocation5], 256
    $region41: #{tpu_custom_call.1} parent=1 // pred_fallthru
      _
    %1729 = vsyncpa [#allocation4], 1
    %1730 = vsyncpa [#allocation7], 1
    %1731 = vsyncpa [#allocation5], 1

</llo_original>
